<compile_context>
chip_gen: v6e
topology: v6e:2x2x1
jax: 0.10.0
libtpu: 0.0.40
codegen_flags: <defaults>
</compile_context>

<pallas_src>
import math

import jax
import jax.numpy as jnp
from jax import lax
from jax.experimental import pallas as pl
from jax.experimental.pallas import tpu as pltpu

LANE = 128
SUBLANE = 8
# Max rows per M tile.  Raise to 1024-2048 for production-size layers; kept
# moderate here so the small test shapes also exercise multi-tile grids.
MAX_TM = 256
VMEM_TILE_BUDGET = 32 * 1024 * 1024   # tile-sizing budget (safe for v7x's 64 MiB VMEM)
VMEM_LIMIT_BYTES = 48 * 1024 * 1024


def _round_up(v, m):
    return (v + m - 1) // m * m


# ----------------------------------------------------------------------------
# Pallas kernels
# ----------------------------------------------------------------------------
def _make_conv_kernel(apply_act: bool, has_residual: bool):
    """Tiled matmul conv (+ residual add) (+ ReLU) with f32 accumulation."""

    def kernel(*refs):
        if has_residual:
            x_ref, w_ref, r_ref, o_ref, acc_ref = refs
        else:
            x_ref, w_ref, o_ref, acc_ref = refs
            r_ref = None
        k = pl.program_id(2)

        @pl.when(k == 0)
        def _():
            acc_ref[...] = jnp.zeros_like(acc_ref)

        acc_ref[...] += jnp.dot(
            x_ref[...], w_ref[...], preferred_element_type=jnp.float32
        )

        @pl.when(k == pl.num_programs(2) - 1)
        def _():
            y = acc_ref[...]
            if r_ref is not None:                    # fused skip-connection add
                y = y + r_ref[...].astype(jnp.float32)
            if apply_act:                            # fused ReLU
                y = jnp.maximum(y, 0.0)
            o_ref[...] = y.astype(o_ref.dtype)

    return kernel


def _avgpool2x2_kernel(x_ref, o_ref):
    # x_ref: (TR, 2, Wo, 2, C) -- the 2x2 pooling window lives on axes 1 and 3.
    x = x_ref[...].astype(jnp.float32)
    s = x[:, 0, :, 0, :] + x[:, 0, :, 1, :] + x[:, 1, :, 0, :] + x[:, 1, :, 1, :]
    o_ref[...] = (s * 0.25).astype(o_ref.dtype)


# ----------------------------------------------------------------------------
# Wrappers (layout / padding glue around the kernels)
# ----------------------------------------------------------------------------
def _pick_tm(m_rows, tk, tn, res_bytes, out_bytes):
    """Largest M tile (<= MAX_TM) whose double-buffered blocks fit the VMEM budget."""
    m_cap = _round_up(m_rows, SUBLANE)
    for tm in (2048, 1024, 512, 256, 128, 64, 32, 16, 8):
        if tm > MAX_TM or tm > m_cap:
            continue
        vmem = 2 * (tm * tk * 2 + tk * tn * 2 + tm * tn * out_bytes + tm * tn * res_bytes)
        vmem += tm * tn * 4  # f32 accumulator scratch
        if vmem <= VMEM_TILE_BUDGET:
            return tm
    return SUBLANE


def conv_act(x_nhwc, w_oihw, *, stride, act, residual=None, out_dtype=jnp.bfloat16):
    """conv(ks, stride, pad=ks//2, bias=False) -> [+residual] -> [ReLU]   (NHWC)."""
    N, H, W, Cin = x_nhwc.shape
    Cout, Cin_w, KH, KW = w_oihw.shape
    assert Cin == Cin_w
    pad = KH // 2
    Ho = (H + 2 * pad - KH) // stride + 1
    Wo = (W + 2 * pad - KW) // stride + 1
    M = N * Ho * Wo

    if KH == 1 and KW == 1 and stride == 1:
        patches = x_nhwc.reshape(M, Cin)              # 1x1 conv: no im2col needed
    else:
        # TODO(synk): in-kernel tap loop instead of materialized im2col (KHxKW blowup).
        xp = jnp.pad(x_nhwc, ((0, 0), (pad, pad), (pad, pad), (0, 0)))
        cols = [
            xp[:, kh:kh + stride * Ho:stride, kw:kw + stride * Wo:stride, :]
            for kh in range(KH) for kw in range(KW)
        ]
        patches = jnp.concatenate(cols, axis=-1).reshape(M, KH * KW * Cin)

    K = patches.shape[1]
    wmat = jnp.transpose(w_oihw, (2, 3, 1, 0)).reshape(K, Cout)

    # Lane-dense / MXU-aligned padding of channel (N) and contraction (K) dims.
    Np = _round_up(Cout, LANE)
    if K > LANE:
        Kp, TK = _round_up(K, LANE), LANE
    else:
        Kp, TK = K, K                                  # full-K block (no 128x blowup)
    TN = 256 if Np % 256 == 0 else LANE

    out_bytes = jnp.dtype(out_dtype).itemsize
    res_bytes = 2 if residual is not None else 0
    TM = _pick_tm(M, TK, TN, res_bytes, out_bytes)
    Mp = _round_up(M, TM)

    lhs = jnp.pad(patches.astype(jnp.bfloat16), ((0, Mp - M), (0, Kp - K)))
    rhs = jnp.pad(wmat.astype(jnp.bfloat16), ((0, Kp - K), (0, Np - Cout)))

    args = [lhs, rhs]
    in_specs = [
        pl.BlockSpec((TM, TK), lambda i, j, k: (i, k)),
        pl.BlockSpec((TK, TN), lambda i, j, k: (k, j)),
    ]
    if residual is not None:
        res = jnp.pad(residual.reshape(M, Cout).astype(jnp.bfloat16),
                      ((0, Mp - M), (0, Np - Cout)))
        args.append(res)
        in_specs.append(pl.BlockSpec((TM, TN), lambda i, j, k: (i, j)))

    grid = (Mp // TM, Np // TN, Kp // TK)
    kernel = _make_conv_kernel(apply_act=act, has_residual=residual is not None)
    bytes_accessed = (Mp * Kp + Kp * Np) * 2 + Mp * Np * out_bytes + Mp * Np * res_bytes

    out = pl.pallas_call(
        kernel,
        out_shape=jax.ShapeDtypeStruct((Mp, Np), out_dtype),
        grid_spec=pltpu.PrefetchScalarGridSpec(
            num_scalar_prefetch=0,
            grid=grid,
            in_specs=in_specs,
            out_specs=pl.BlockSpec((TM, TN), lambda i, j, k: (i, j)),
            scratch_shapes=[pltpu.VMEM((TM, TN), jnp.float32)],
        ),
        compiler_params=pltpu.CompilerParams(
            dimension_semantics=("parallel", "parallel", "arbitrary"),
            vmem_limit_bytes=VMEM_LIMIT_BYTES,
        ),
        cost_estimate=pl.CostEstimate(
            flops=2 * Mp * Kp * Np,
            transcendentals=0,
            bytes_accessed=bytes_accessed,
        ),
    )(*args)
    return out[:M, :Cout].reshape(N, Ho, Wo, Cout)


def avgpool2x2(x_nhwc, out_dtype=jnp.bfloat16):
    """nn.AvgPool2d(2, ceil_mode=True) for even spatial dims (NHWC)."""
    N, H, W, C = x_nhwc.shape
    # TODO(synk): ceil_mode edge handling (clipped windows) for odd H/W.
    assert H % 2 == 0 and W % 2 == 0
    Ho, Wo = H // 2, W // 2
    R = N * Ho
    xr = x_nhwc.reshape(R, 2, Wo, 2, C)      # pure reshape: no transpose copy in HBM
    TR = min(256, _round_up(R, SUBLANE))
    Rp = _round_up(R, TR)
    if Rp != R:
        xr = jnp.pad(xr, ((0, Rp - R), (0, 0), (0, 0), (0, 0)))

    out = pl.pallas_call(
        _avgpool2x2_kernel,
        out_shape=jax.ShapeDtypeStruct((Rp, Wo, C), out_dtype),
        grid=(Rp // TR,),
        in_specs=[pl.BlockSpec((TR, 2, Wo, 2, C), lambda i: (i, 0, 0, 0, 0))],
        out_specs=pl.BlockSpec((TR, Wo, C), lambda i: (i, 0, 0)),
        compiler_params=pltpu.CompilerParams(dimension_semantics=("parallel",)),
    )(xr)
    return out[:R].reshape(N, Ho, Wo, C)


# ----------------------------------------------------------------------------
# NBNResBlock parameters + forward
# ----------------------------------------------------------------------------
def _conv_layer_params(key, ni, nf, ks, stride, act):
    w = jax.random.normal(key, (nf, ni, ks, ks), jnp.float32) / math.sqrt(ni * ks * ks)
    return dict(w=w, stride=stride, act=act)


def init_resblock(key, expansion, ni, nh, stride):
    nf, ni_e = nh * expansion, ni * expansion
    k1, k2, k3, k4 = jax.random.split(key, 4)
    convs = [_conv_layer_params(k1, ni_e, nh, 1, 1, True)]
    if expansion == 1:
        convs.append(_conv_layer_params(k2, nh, nf, 3, stride, False))
    else:
        convs.append(_conv_layer_params(k2, nh, nh, 3, stride, True))
        convs.append(_conv_layer_params(k3, nh, nf, 1, 1, False))
    idconv = None if ni_e == nf else _conv_layer_params(k4, ni_e, nf, 1, 1, False)
    return dict(convs=convs, idconv=idconv, stride=stride)


def resblock_forward(x_nchw, params):
    """forward(x) = relu(convs(x) + idconv(pool(x)))   (PyTorch NCHW in/out)."""
    stride = params["stride"]
    x = jnp.transpose(x_nchw, (0, 2, 3, 1)).astype(jnp.float32)   # -> NHWC

    # convs branch (all layers but the last one).
    h = x
    for p in params["convs"][:-1]:
        h = conv_act(h, p["w"], stride=p["stride"], act=p["act"],
                     out_dtype=jnp.bfloat16)
    last = params["convs"][-1]

    # identity path: pool (noop if stride == 1).
    id_in = x if stride == 1 else avgpool2x2(x, out_dtype=jnp.bfloat16)

    if params["idconv"] is None:
        # idconv == noop: fuse "+ id + relu" into the last branch conv kernel.
        out = conv_act(h, last["w"], stride=last["stride"], act=True,
                       residual=id_in, out_dtype=jnp.float32)
    else:
        hb = conv_act(h, last["w"], stride=last["stride"], act=False,
                      out_dtype=jnp.bfloat16)
        pid = params["idconv"]
        # fuse "+ convs(x) + relu" into the idconv kernel.
        out = conv_act(id_in, pid["w"], stride=1, act=True,
                       residual=hb, out_dtype=jnp.float32)
    return jnp.transpose(out, (0, 3, 1, 2))              # -> NCHW


# ----------------------------------------------------------------------------
# Pure-JAX reference (f32, HIGHEST precision) for correctness check
# ----------------------------------------------------------------------------
def _conv_ref(x_nchw, p, act):
    ks = p["w"].shape[-1]
    pad = ks // 2
    y = lax.conv_general_dilated(
        x_nchw, p["w"], (p["stride"], p["stride"]), [(pad, pad), (pad, pad)],
        dimension_numbers=("NCHW", "OIHW", "NCHW"),
        precision=lax.Precision.HIGHEST,
    )
    return jnp.maximum(y, 0.0) if act else y


def resblock_ref(x_nchw, params):
    h = x_nchw
    for p in params["convs"]:
        h = _conv_ref(h, p, p["act"])
    idp = x_nchw
    if params["stride"] != 1:
        N, C, H, W = x_nchw.shape
        idp = jnp.mean(x_nchw.reshape(N, C, H // 2, 2, W // 2, 2), axis=(3, 5))
    if params["idconv"] is not None:
        idp = _conv_ref(idp, params["idconv"], False)
    return jnp.maximum(h + idp, 0.0)


# ----------------------------------------------------------------------------
if __name__ == "__main__":
    configs = [
        # expansion=1, idconv present, stride 2 (pool active)
        dict(expansion=1, ni=4, nh=8, stride=2, x_shape=(2, 4, 16, 16)),
        # expansion=1, idconv == noop (residual fused into last branch conv), pool active
        dict(expansion=1, ni=8, nh=8, stride=2, x_shape=(2, 8, 16, 16)),
        # expansion>1: 3-conv branch + real idconv, stride 1 (pool noop)
        dict(expansion=2, ni=1, nh=2, stride=1, x_shape=(2, 2, 16, 16)),
    ]
    key = jax.random.PRNGKey(0)
    for cfg in configs:
        key, kx, kp = jax.random.split(key, 3)
        x = jax.random.normal(kx, cfg["x_shape"], jnp.float32)
        params = init_resblock(kp, cfg["expansion"], cfg["ni"], cfg["nh"], cfg["stride"])

        out = jax.jit(lambda xx, p=params: resblock_forward(xx, p))(x)
        out = jax.block_until_ready(out)

        ref = resblock_ref(x, params)
        assert out.shape == ref.shape, (out.shape, ref.shape)
        err = float(jnp.max(jnp.abs(out.astype(jnp.float32) - ref)))
        tol = 5e-2 * (1.0 + float(jnp.max(jnp.abs(ref))))   # bf16 operands/activations
        assert err < tol, f"max abs err {err} (tol {tol}) for config {cfg}"

    print("KERNEL_OK")
</pallas_src>

<mosaic_0001>
module attributes {stable_mosaic.version = 11 : i64} {
  func.func @kernel(%arg0: i32, %arg1: i32, %arg2: i32, %arg3: memref<256x4xbf16, #tpu.memory_space<vmem>>, %arg4: memref<4x128xbf16, #tpu.memory_space<vmem>>, %arg5: memref<256x128xbf16, #tpu.memory_space<vmem>>, %arg6: memref<256x128xf32, #tpu.memory_space<vmem>>) attributes {dimension_semantics = [#tpu.dimension_semantics<parallel>, #tpu.dimension_semantics<parallel>, #tpu.dimension_semantics<arbitrary>], iteration_bounds = array<i64: 2, 1, 1>, scalar_prefetch = 0 : i64, scratch_operands = 1 : i64, tpu.core_type = #tpu.core_type<tc>, window_params = [{transform_indices = @transform_0, window_bounds = array<i64: 256, 4>}, {transform_indices = @transform_1, window_bounds = array<i64: 4, 128>}, {transform_indices = @transform_2, window_bounds = array<i64: 256, 128>}]} {
    %c0_i32 = arith.constant 0 : i32
    %0 = arith.cmpi eq, %arg2, %c0_i32 : i32
    %1 = arith.extui %0 : i1 to i32
    %c0_i32_0 = arith.constant 0 : i32
    %2 = arith.cmpi ne, %1, %c0_i32_0 : i32
    scf.if %2 {
      %cst_10 = arith.constant 0.000000e+00 : f32
      %12 = vector.broadcast %cst_10 : f32 to vector<256x128xf32>
      %c0_11 = arith.constant 0 : index
      %c0_12 = arith.constant 0 : index
      %13 = vector.load %arg6[%c0_11, %c0_12] : memref<256x128xf32, #tpu.memory_space<vmem>>, vector<256x128xf32>
      tpu.vector_store %arg6[%c0_11, %c0_12], %12 {strides = array<i32>} : memref<256x128xf32, #tpu.memory_space<vmem>>, vector<256x128xf32>,
    } else {
    }
    %c0 = arith.constant 0 : index
    %c0_1 = arith.constant 0 : index
    %3 = vector.load %arg6[%c0, %c0_1] : memref<256x128xf32, #tpu.memory_space<vmem>>, vector<256x128xf32>
    %c0_2 = arith.constant 0 : index
    %c0_3 = arith.constant 0 : index
    %4 = vector.load %arg3[%c0_2, %c0_3] : memref<256x4xbf16, #tpu.memory_space<vmem>>, vector<256x4xbf16>
    %c0_4 = arith.constant 0 : index
    %c0_5 = arith.constant 0 : index
    %5 = vector.load %arg4[%c0_4, %c0_5] : memref<4x128xbf16, #tpu.memory_space<vmem>>, vector<4x128xbf16>
    %cst = arith.constant dense<0.000000e+00> : vector<256x128xf32>
    %6 = tpu.matmul %4, %5, %cst {dimension_numbers = #tpu.dot_dimension_numbers<[1], [0], [0], [1], [0, 0, 1, 1], [], []>} : vector<256x4xbf16>, vector<4x128xbf16>, vector<256x128xf32> -> vector<256x128xf32>
    %7 = arith.addf %3, %6 : vector<256x128xf32>
    %c0_6 = arith.constant 0 : index
    %c0_7 = arith.constant 0 : index
    %8 = vector.load %arg6[%c0_6, %c0_7] : memref<256x128xf32, #tpu.memory_space<vmem>>, vector<256x128xf32>
    tpu.vector_store %arg6[%c0_6, %c0_7], %7 {strides = array<i32>} : memref<256x128xf32, #tpu.memory_space<vmem>>, vector<256x128xf32>,
    %c0_i32_8 = arith.constant 0 : i32
    %9 = arith.cmpi eq, %arg2, %c0_i32_8 : i32
    %10 = arith.extui %9 : i1 to i32
    %c0_i32_9 = arith.constant 0 : i32
    %11 = arith.cmpi ne, %10, %c0_i32_9 : i32
    scf.if %11 {
      %c0_10 = arith.constant 0 : index
      %c0_11 = arith.constant 0 : index
      %12 = vector.load %arg6[%c0_10, %c0_11] : memref<256x128xf32, #tpu.memory_space<vmem>>, vector<256x128xf32>
      %cst_12 = arith.constant 0.000000e+00 : f32
      %13 = vector.broadcast %cst_12 : f32 to vector<256x128xf32>
      %14 = arith.maximumf %12, %13 : vector<256x128xf32>
      %15 = arith.truncf %14 : vector<256x128xf32> to vector<256x128xbf16>
      %c0_13 = arith.constant 0 : index
      %c0_14 = arith.constant 0 : index
      %16 = vector.load %arg5[%c0_13, %c0_14] : memref<256x128xbf16, #tpu.memory_space<vmem>>, vector<256x128xbf16>
      tpu.vector_store %arg5[%c0_13, %c0_14], %15 {strides = array<i32>} : memref<256x128xbf16, #tpu.memory_space<vmem>>, vector<256x128xbf16>,
    } else {
    }
    return
  }
  func.func @transform_0(%arg0: i32, %arg1: i32, %arg2: i32) -> (i32, i32) {
    %c0_i32 = arith.constant 0 : i32
    return %arg0, %arg2 : i32, i32
  }
  func.func @transform_1(%arg0: i32, %arg1: i32, %arg2: i32) -> (i32, i32) {
    %c0_i32 = arith.constant 0 : i32
    return %arg2, %arg1 : i32, i32
  }
  func.func @transform_2(%arg0: i32, %arg1: i32, %arg2: i32) -> (i32, i32) {
    %c0_i32 = arith.constant 0 : i32
    return %arg0, %arg1 : i32, i32
  }
}

module attributes {stable_mosaic.version = 11 : i64} {
  func.func @kernel(%arg0: i32, %arg1: i32, %arg2: i32, %arg3: memref<128x72xbf16, #tpu.memory_space<vmem>>, %arg4: memref<72x128xbf16, #tpu.memory_space<vmem>>, %arg5: memref<128x128xbf16, #tpu.memory_space<vmem>>, %arg6: memref<128x128xf32, #tpu.memory_space<vmem>>) attributes {dimension_semantics = [#tpu.dimension_semantics<parallel>, #tpu.dimension_semantics<parallel>, #tpu.dimension_semantics<arbitrary>], iteration_bounds = array<i64: 1, 1, 1>, scalar_prefetch = 0 : i64, scratch_operands = 1 : i64, tpu.core_type = #tpu.core_type<tc>, window_params = [{transform_indices = @transform_0, window_bounds = array<i64: 128, 72>}, {transform_indices = @transform_1, window_bounds = array<i64: 72, 128>}, {transform_indices = @transform_2, window_bounds = array<i64: 128, 128>}]} {
    %c0_i32 = arith.constant 0 : i32
    %0 = arith.cmpi eq, %arg2, %c0_i32 : i32
    %1 = arith.extui %0 : i1 to i32
    %c0_i32_0 = arith.constant 0 : i32
    %2 = arith.cmpi ne, %1, %c0_i32_0 : i32
    scf.if %2 {
      %cst_10 = arith.constant 0.000000e+00 : f32
      %12 = vector.broadcast %cst_10 : f32 to vector<128x128xf32>
      %c0_11 = arith.constant 0 : index
      %c0_12 = arith.constant 0 : index
      %13 = vector.load %arg6[%c0_11, %c0_12] : memref<128x128xf32, #tpu.memory_space<vmem>>, vector<128x128xf32>
      tpu.vector_store %arg6[%c0_11, %c0_12], %12 {strides = array<i32>} : memref<128x128xf32, #tpu.memory_space<vmem>>, vector<128x128xf32>,
    } else {
    }
    %c0 = arith.constant 0 : index
    %c0_1 = arith.constant 0 : index
    %3 = vector.load %arg6[%c0, %c0_1] : memref<128x128xf32, #tpu.memory_space<vmem>>, vector<128x128xf32>
    %c0_2 = arith.constant 0 : index
    %c0_3 = arith.constant 0 : index
    %4 = vector.load %arg3[%c0_2, %c0_3] : memref<128x72xbf16, #tpu.memory_space<vmem>>, vector<128x72xbf16>
    %c0_4 = arith.constant 0 : index
    %c0_5 = arith.constant 0 : index
    %5 = vector.load %arg4[%c0_4, %c0_5] : memref<72x128xbf16, #tpu.memory_space<vmem>>, vector<72x128xbf16>
    %cst = arith.constant dense<0.000000e+00> : vector<128x128xf32>
    %6 = tpu.matmul %4, %5, %cst {dimension_numbers = #tpu.dot_dimension_numbers<[1], [0], [0], [1], [0, 0, 1, 1], [], []>} : vector<128x72xbf16>, vector<72x128xbf16>, vector<128x128xf32> -> vector<128x128xf32>
    %7 = arith.addf %3, %6 : vector<128x128xf32>
    %c0_6 = arith.constant 0 : index
    %c0_7 = arith.constant 0 : index
    %8 = vector.load %arg6[%c0_6, %c0_7] : memref<128x128xf32, #tpu.memory_space<vmem>>, vector<128x128xf32>
    tpu.vector_store %arg6[%c0_6, %c0_7], %7 {strides = array<i32>} : memref<128x128xf32, #tpu.memory_space<vmem>>, vector<128x128xf32>,
    %c0_i32_8 = arith.constant 0 : i32
    %9 = arith.cmpi eq, %arg2, %c0_i32_8 : i32
    %10 = arith.extui %9 : i1 to i32
    %c0_i32_9 = arith.constant 0 : i32
    %11 = arith.cmpi ne, %10, %c0_i32_9 : i32
    scf.if %11 {
      %c0_10 = arith.constant 0 : index
      %c0_11 = arith.constant 0 : index
      %12 = vector.load %arg6[%c0_10, %c0_11] : memref<128x128xf32, #tpu.memory_space<vmem>>, vector<128x128xf32>
      %13 = arith.truncf %12 : vector<128x128xf32> to vector<128x128xbf16>
      %c0_12 = arith.constant 0 : index
      %c0_13 = arith.constant 0 : index
      %14 = vector.load %arg5[%c0_12, %c0_13] : memref<128x128xbf16, #tpu.memory_space<vmem>>, vector<128x128xbf16>
      tpu.vector_store %arg5[%c0_12, %c0_13], %13 {strides = array<i32>} : memref<128x128xbf16, #tpu.memory_space<vmem>>, vector<128x128xbf16>,
    } else {
    }
    return
  }
  func.func @transform_0(%arg0: i32, %arg1: i32, %arg2: i32) -> (i32, i32) {
    %c0_i32 = arith.constant 0 : i32
    return %arg0, %arg2 : i32, i32
  }
  func.func @transform_1(%arg0: i32, %arg1: i32, %arg2: i32) -> (i32, i32) {
    %c0_i32 = arith.constant 0 : i32
    return %arg2, %arg1 : i32, i32
  }
  func.func @transform_2(%arg0: i32, %arg1: i32, %arg2: i32) -> (i32, i32) {
    %c0_i32 = arith.constant 0 : i32
    return %arg0, %arg1 : i32, i32
  }
}

module attributes {stable_mosaic.version = 11 : i64} {
  func.func @_avgpool2x2_kernel(%arg0: i32, %arg1: memref<16x2x8x2x4xf32, #tpu.memory_space<vmem>>, %arg2: memref<16x8x4xbf16, #tpu.memory_space<vmem>>) attributes {dimension_semantics = [#tpu.dimension_semantics<parallel>], iteration_bounds = array<i64: 1>, scalar_prefetch = 0 : i64, scratch_operands = 0 : i64, tpu.core_type = #tpu.core_type<tc>, window_params = [{transform_indices = @transform_0, window_bounds = array<i64: 16, 2, 8, 2, 4>}, {transform_indices = @transform_1, window_bounds = array<i64: 16, 8, 4>}]} {
    %c0 = arith.constant 0 : index
    %c0_0 = arith.constant 0 : index
    %c0_1 = arith.constant 0 : index
    %c0_2 = arith.constant 0 : index
    %c0_3 = arith.constant 0 : index
    %0 = vector.load %arg1[%c0, %c0_0, %c0_1, %c0_2, %c0_3] : memref<16x2x8x2x4xf32, #tpu.memory_space<vmem>>, vector<16x2x8x2x4xf32>
    %1 = vector.extract_strided_slice %0 {offsets = [0, 0, 0, 0, 0], sizes = [16, 1, 8, 1, 4], strides = [1, 1, 1, 1, 1]} : vector<16x2x8x2x4xf32> to vector<16x1x8x1x4xf32>
    %2 = vector.shape_cast %1 : vector<16x1x8x1x4xf32> to vector<16x8x4xf32>
    %3 = vector.extract_strided_slice %0 {offsets = [0, 0, 0, 1, 0], sizes = [16, 1, 8, 1, 4], strides = [1, 1, 1, 1, 1]} : vector<16x2x8x2x4xf32> to vector<16x1x8x1x4xf32>
    %4 = vector.shape_cast %3 : vector<16x1x8x1x4xf32> to vector<16x8x4xf32>
    %5 = arith.addf %2, %4 : vector<16x8x4xf32>
    %6 = vector.extract_strided_slice %0 {offsets = [0, 1, 0, 0, 0], sizes = [16, 1, 8, 1, 4], strides = [1, 1, 1, 1, 1]} : vector<16x2x8x2x4xf32> to vector<16x1x8x1x4xf32>
    %7 = vector.shape_cast %6 : vector<16x1x8x1x4xf32> to vector<16x8x4xf32>
    %8 = arith.addf %5, %7 : vector<16x8x4xf32>
    %9 = vector.extract_strided_slice %0 {offsets = [0, 1, 0, 1, 0], sizes = [16, 1, 8, 1, 4], strides = [1, 1, 1, 1, 1]} : vector<16x2x8x2x4xf32> to vector<16x1x8x1x4xf32>
    %10 = vector.shape_cast %9 : vector<16x1x8x1x4xf32> to vector<16x8x4xf32>
    %11 = arith.addf %8, %10 : vector<16x8x4xf32>
    %cst = arith.constant 2.500000e-01 : f32
    %12 = vector.broadcast %cst : f32 to vector<16x8x4xf32>
    %13 = arith.mulf %11, %12 : vector<16x8x4xf32>
    %14 = arith.truncf %13 : vector<16x8x4xf32> to vector<16x8x4xbf16>
    %c0_4 = arith.constant 0 : index
    %c0_5 = arith.constant 0 : index
    %c0_6 = arith.constant 0 : index
    %15 = vector.load %arg2[%c0_4, %c0_5, %c0_6] : memref<16x8x4xbf16, #tpu.memory_space<vmem>>, vector<16x8x4xbf16>
    tpu.vector_store %arg2[%c0_4, %c0_5, %c0_6], %14 {strides = array<i32>} : memref<16x8x4xbf16, #tpu.memory_space<vmem>>, vector<16x8x4xbf16>,
    return
  }
  func.func @transform_0(%arg0: i32) -> (i32, i32, i32, i32, i32) {
    %c0_i32 = arith.constant 0 : i32
    %c0_i32_0 = arith.constant 0 : i32
    %c0_i32_1 = arith.constant 0 : i32
    %c0_i32_2 = arith.constant 0 : i32
    %c0_i32_3 = arith.constant 0 : i32
    return %arg0, %c0_i32, %c0_i32_0, %c0_i32_1, %c0_i32_2 : i32, i32, i32, i32, i32
  }
  func.func @transform_1(%arg0: i32) -> (i32, i32, i32) {
    %c0_i32 = arith.constant 0 : i32
    %c0_i32_0 = arith.constant 0 : i32
    %c0_i32_1 = arith.constant 0 : i32
    return %arg0, %c0_i32, %c0_i32_0 : i32, i32, i32
  }
}

module attributes {stable_mosaic.version = 11 : i64} {
  func.func @kernel(%arg0: i32, %arg1: i32, %arg2: i32, %arg3: memref<128x4xbf16, #tpu.memory_space<vmem>>, %arg4: memref<4x128xbf16, #tpu.memory_space<vmem>>, %arg5: memref<128x128xbf16, #tpu.memory_space<vmem>>, %arg6: memref<128x128xf32, #tpu.memory_space<vmem>>, %arg7: memref<128x128xf32, #tpu.memory_space<vmem>>) attributes {dimension_semantics = [#tpu.dimension_semantics<parallel>, #tpu.dimension_semantics<parallel>, #tpu.dimension_semantics<arbitrary>], iteration_bounds = array<i64: 1, 1, 1>, scalar_prefetch = 0 : i64, scratch_operands = 1 : i64, tpu.core_type = #tpu.core_type<tc>, window_params = [{transform_indices = @transform_0, window_bounds = array<i64: 128, 4>}, {transform_indices = @transform_1, window_bounds = array<i64: 4, 128>}, {transform_indices = @transform_2, window_bounds = array<i64: 128, 128>}, {transform_indices = @transform_3, window_bounds = array<i64: 128, 128>}]} {
    %c0_i32 = arith.constant 0 : i32
    %0 = arith.cmpi eq, %arg2, %c0_i32 : i32
    %1 = arith.extui %0 : i1 to i32
    %c0_i32_0 = arith.constant 0 : i32
    %2 = arith.cmpi ne, %1, %c0_i32_0 : i32
    scf.if %2 {
      %cst_10 = arith.constant 0.000000e+00 : f32
      %12 = vector.broadcast %cst_10 : f32 to vector<128x128xf32>
      %c0_11 = arith.constant 0 : index
      %c0_12 = arith.constant 0 : index
      %13 = vector.load %arg7[%c0_11, %c0_12] : memref<128x128xf32, #tpu.memory_space<vmem>>, vector<128x128xf32>
      tpu.vector_store %arg7[%c0_11, %c0_12], %12 {strides = array<i32>} : memref<128x128xf32, #tpu.memory_space<vmem>>, vector<128x128xf32>,
    } else {
    }
    %c0 = arith.constant 0 : index
    %c0_1 = arith.constant 0 : index
    %3 = vector.load %arg7[%c0, %c0_1] : memref<128x128xf32, #tpu.memory_space<vmem>>, vector<128x128xf32>
    %c0_2 = arith.constant 0 : index
    %c0_3 = arith.constant 0 : index
    %4 = vector.load %arg3[%c0_2, %c0_3] : memref<128x4xbf16, #tpu.memory_space<vmem>>, vector<128x4xbf16>
    %c0_4 = arith.constant 0 : index
    %c0_5 = arith.constant 0 : index
    %5 = vector.load %arg4[%c0_4, %c0_5] : memref<4x128xbf16, #tpu.memory_space<vmem>>, vector<4x128xbf16>
    %cst = arith.constant dense<0.000000e+00> : vector<128x128xf32>
    %6 = tpu.matmul %4, %5, %cst {dimension_numbers = #tpu.dot_dimension_numbers<[1], [0], [0], [1], [0, 0, 1, 1], [], []>} : vector<128x4xbf16>, vector<4x128xbf16>, vector<128x128xf32> -> vector<128x128xf32>
    %7 = arith.addf %3, %6 : vector<128x128xf32>
    %c0_6 = arith.constant 0 : index
    %c0_7 = arith.constant 0 : index
    %8 = vector.load %arg7[%c0_6, %c0_7] : memref<128x128xf32, #tpu.memory_space<vmem>>, vector<128x128xf32>
    tpu.vector_store %arg7[%c0_6, %c0_7], %7 {strides = array<i32>} : memref<128x128xf32, #tpu.memory_space<vmem>>, vector<128x128xf32>,
    %c0_i32_8 = arith.constant 0 : i32
    %9 = arith.cmpi eq, %arg2, %c0_i32_8 : i32
    %10 = arith.extui %9 : i1 to i32
    %c0_i32_9 = arith.constant 0 : i32
    %11 = arith.cmpi ne, %10, %c0_i32_9 : i32
    scf.if %11 {
      %c0_10 = arith.constant 0 : index
      %c0_11 = arith.constant 0 : index
      %12 = vector.load %arg7[%c0_10, %c0_11] : memref<128x128xf32, #tpu.memory_space<vmem>>, vector<128x128xf32>
      %c0_12 = arith.constant 0 : index
      %c0_13 = arith.constant 0 : index
      %13 = vector.load %arg5[%c0_12, %c0_13] : memref<128x128xbf16, #tpu.memory_space<vmem>>, vector<128x128xbf16>
      %14 = arith.extf %13 : vector<128x128xbf16> to vector<128x128xf32>
      %15 = arith.addf %12, %14 : vector<128x128xf32>
      %cst_14 = arith.constant 0.000000e+00 : f32
      %16 = vector.broadcast %cst_14 : f32 to vector<128x128xf32>
      %17 = arith.maximumf %15, %16 : vector<128x128xf32>
      %c0_15 = arith.constant 0 : index
      %c0_16 = arith.constant 0 : index
      %18 = vector.load %arg6[%c0_15, %c0_16] : memref<128x128xf32, #tpu.memory_space<vmem>>, vector<128x128xf32>
      tpu.vector_store %arg6[%c0_15, %c0_16], %17 {strides = array<i32>} : memref<128x128xf32, #tpu.memory_space<vmem>>, vector<128x128xf32>,
    } else {
    }
    return
  }
  func.func @transform_0(%arg0: i32, %arg1: i32, %arg2: i32) -> (i32, i32) {
    %c0_i32 = arith.constant 0 : i32
    return %arg0, %arg2 : i32, i32
  }
  func.func @transform_1(%arg0: i32, %arg1: i32, %arg2: i32) -> (i32, i32) {
    %c0_i32 = arith.constant 0 : i32
    return %arg2, %arg1 : i32, i32
  }
  func.func @transform_2(%arg0: i32, %arg1: i32, %arg2: i32) -> (i32, i32) {
    %c0_i32 = arith.constant 0 : i32
    return %arg0, %arg1 : i32, i32
  }
  func.func @transform_3(%arg0: i32, %arg1: i32, %arg2: i32) -> (i32, i32) {
    %c0_i32 = arith.constant 0 : i32
    return %arg0, %arg1 : i32, i32
  }
}

</mosaic_0001>

<llo_original>
// kernel: _lambda_.4
$region0: #{_lambda_.4}
  #allocation0 [shape = 'u32[]', space=smem, size = 0x4, offset = 0x4, fixed_abs, tag = 'smem constant byte address 0x4 - core index']
  #allocation1 [shape = 'u32[144,128]{1,0:T(1,128)}', space=vmem, size = 0x12000, scoped, tag = 'internal scratch']
  #allocation2 [shape = 'f32[256,128]{1,0:T(8,128)}', space=vmem, size = 0x20000, scoped, tag = 'scratch operand']
  %s0 = inlined_call_operand.vmem [shape: bf16[512,4], index: 0, kind: input, shape index: {}]
  %s1 = inlined_call_operand.vmem [shape: bf16[4,128], index: 1, kind: input, shape index: {}]
  %s2 = inlined_call_operand.vmem [shape: bf16[512,128], index: 2, kind: output, shape index: {}]
  %s3 = sld [smem:[#allocation0]]
  $region49: #{_lambda_.4} parent=0
    _
  %s5 = ssub.s32 1, %s3
  %s6 = scalar_select 0, %s5, %s3
  loop: start=0, step=1, limit=4
  $region2: #{_lambda_.4} parent=0 // loop_pre_header
    _
  $region3: #{_lambda_.4} parent=0 // loop_header
    %s8 = sphi 0, %s12
    %p9 = scmp.ge.s32.totalorder %s8, 4
    %s15 = sphi 0, %s34
    %s16 = sphi 0, %s30
    %s17 = sphi 0, %s26
    %s18 = sphi 0, %s15
    %s19 = sphi 0, %s16
    %s20 = sphi 0, %s17
    %s21 = sphi 0, %s18
    %s22 = sphi 0, %s19
    %s23 = sphi 0, %s20
    %s39 = sphi 0, %s41
    %s42 = sphi 0, %s39
    %s43 = sphi 0, %s42
    %s59 = sphi 0, %s43
    %s67 = sphi 0, %s69
    %s70 = sphi 0, %s67
    %s71 = sphi 0, %s70
    %s87 = sphi 0, %s71
    %s95 = sphi 0, %s97
    %s98 = sphi 0, %s95
    %s99 = sphi 0, %s98
    %s115 = sphi 0, %s99
  $region4: #{_lambda_.4} parent=0 // loop_header_branch
    %11 = sbr.rel (%p9) target = $region8
  $region5: #{_lambda_.4} parent=0 // loop_body
    %s13 = ssub.s32 %s8, 1
    %s14 = ssub.s32 %s8, 2
    %s24 = sadd.s32 1, %s17
    %p25 = scmp.ge.s32.totalorder %s24, 1
    %s26 = scalar_select %p25, 0, %s24
    %s27 = sadd.s32 1, %s16
    %s28 = scalar_select %p25, %s27, %s16
    %p29 = scmp.ge.s32.totalorder %s28, 1
    %s30 = scalar_select %p29, 0, %s28
    %s31 = sadd.s32 1, %s15
    %s32 = scalar_select %p29, %s31, %s15
    %p33 = scmp.ge.s32.totalorder %s32, 2
    %s34 = scalar_select %p33, 0, %s32
    %s35 = ssub.s32 %s15, %s34
    %s36 = ssub.s32 %s17, %s26
    %s37 = sor.u32 %s35, %s36
    %p38 = scmp.eq.s32.totalorder %s37, 0
    %s40 = sadd.s32 %s39, 1
    %s41 = scalar_select %p38, %s39, %s40
    %p44 = pneg %p38
    %p45 = scmp.eq.s32.totalorder %s8, 1
    %p46 = por %p44, %p45
    %p47 = scmp.ne.s32.totalorder %s39, %s42
    %p48 = scmp.eq.s32.totalorder %s8, 0
    %p49 = por %p47, %p48
    %p50 = scmp.ne.s32.totalorder %s39, %s42
    %p51 = scmp.eq.s32.totalorder %s13, 1
    %p52 = por %p50, %p51
    %p53 = scmp.ne.s32.totalorder %s42, %s43
    %p54 = scmp.eq.s32.totalorder %s13, 0
    %p55 = por %p53, %p54
    %p56 = scmp.ne.s32.totalorder %s42, %s43
    %p57 = scmp.eq.s32.totalorder %s14, 1
    %p58 = por %p56, %p57
    %p60 = scmp.ne.s32.totalorder %s43, %s59
    %p61 = scmp.eq.s32.totalorder %s14, 0
    %p62 = por %p60, %p61
    %s63 = ssub.s32 %s17, %s26
    %s64 = ssub.s32 %s16, %s30
    %s65 = sor.u32 %s63, %s64
    %p66 = scmp.eq.s32.totalorder %s65, 0
    %s68 = sadd.s32 %s67, 1
    %s69 = scalar_select %p66, %s67, %s68
    %p72 = pneg %p66
    %p73 = scmp.eq.s32.totalorder %s8, 1
    %p74 = por %p72, %p73
    %p75 = scmp.ne.s32.totalorder %s67, %s70
    %p76 = scmp.eq.s32.totalorder %s8, 0
    %p77 = por %p75, %p76
    %p78 = scmp.ne.s32.totalorder %s67, %s70
    %p79 = scmp.eq.s32.totalorder %s13, 1
    %p80 = por %p78, %p79
    %p81 = scmp.ne.s32.totalorder %s70, %s71
    %p82 = scmp.eq.s32.totalorder %s13, 0
    %p83 = por %p81, %p82
    %p84 = scmp.ne.s32.totalorder %s70, %s71
    %p85 = scmp.eq.s32.totalorder %s14, 1
    %p86 = por %p84, %p85
    %p88 = scmp.ne.s32.totalorder %s71, %s87
    %p89 = scmp.eq.s32.totalorder %s14, 0
    %p90 = por %p88, %p89
    %s91 = ssub.s32 %s15, %s34
    %s92 = ssub.s32 %s16, %s30
    %s93 = sor.u32 %s91, %s92
    %p94 = scmp.eq.s32.totalorder %s93, 0
    %s96 = sadd.s32 %s95, 1
    %s97 = scalar_select %p94, %s95, %s96
    %p100 = pneg %p94
    %p101 = scmp.eq.s32.totalorder %s8, 1
    %p102 = por %p100, %p101
    %p103 = scmp.ne.s32.totalorder %s95, %s98
    %p104 = scmp.eq.s32.totalorder %s8, 0
    %p105 = por %p103, %p104
    %p106 = scmp.ne.s32.totalorder %s95, %s98
    %p107 = scmp.eq.s32.totalorder %s13, 1
    %p108 = por %p106, %p107
    %p109 = scmp.ne.s32.totalorder %s98, %s99
    %p110 = scmp.eq.s32.totalorder %s13, 0
    %p111 = por %p109, %p110
    %p112 = scmp.ne.s32.totalorder %s98, %s99
    %p113 = scmp.eq.s32.totalorder %s14, 1
    %p114 = por %p112, %p113
    %p116 = scmp.ne.s32.totalorder %s99, %s115
    %p117 = scmp.eq.s32.totalorder %s14, 0
    %p118 = por %p116, %p117
    %p119 = scmp.le.s32.totalorder 1, %s8
    %p120 = scmp.lt.s32.totalorder %s8, 3
    %p121 = pnand %p119, %p120
    %p122 = pneg %p121
    // Predicated region
    $region9: #{_lambda_.4} parent=5 // pred_check
      _
    $region10: #{_lambda_.4} parent=5 // pred_check_branch
      %124 = sbr.rel (%p121) target = $region12
    $region11: #{_lambda_.4} parent=5 // pred_region
      %s125 = ssub.s32 %s8, 1
      // Predicated region
      $region13: #{_lambda_.4} parent=11 // pred_check
        %p126 = pneg %p83
      $region14: #{_lambda_.4} parent=11 // pred_check_branch
        %128 = sbr.rel (%p126) target = $region16
      $region15: #{_lambda_.4} parent=11 // pred_region
        %p129 = scmp.lt.s32.totalorder %s20, 0
        %s130 = scalar_select %p129, %s20, 0
        %p131 = scmp.lt.s32.totalorder %s19, 0
        %s132 = scalar_select %p131, %s19, 0
        %s133 = sadd.s32 %s132, %s130
        %s134 = smul.addr %s133, 2
        %s135 = scalar_lea.vmem %s1, %s134
      $region16: #{_lambda_.4} parent=11 // pred_fallthru
        _
    $region12: #{_lambda_.4} parent=5 // pred_fallthru
      _
    %p136 = scmp.lt.s32.totalorder %s8, 2
    // Predicated region
    $region17: #{_lambda_.4} parent=5 // pred_check
      %p137 = pneg %p136
    $region18: #{_lambda_.4} parent=5 // pred_check_branch
      %139 = sbr.rel (%p137) target = $region20
    $region19: #{_lambda_.4} parent=5 // pred_region
      // Predicated region
      $region21: #{_lambda_.4} parent=19 // pred_check
        %p140 = pneg %p49
      $region22: #{_lambda_.4} parent=19 // pred_check_branch
        %142 = sbr.rel (%p140) target = $region24
      $region23: #{_lambda_.4} parent=19 // pred_region
        %s143 = smul.u32 32, %s15
        %p144 = scmp.lt.s32.totalorder %s143, 63
        %s145 = scalar_select %p144, %s143, 63
        %p146 = scmp.lt.s32.totalorder %s17, 0
        %s147 = scalar_select %p146, %s17, 0
        %s148 = sadd.s32 %s147, %s145
        %s149 = smul.addr %s148, 4
        %s150 = scalar_lea.vmem %s0, %s149
        %s151 = smul.u32 32, %s15
      $region24: #{_lambda_.4} parent=19 // pred_fallthru
        _
    $region20: #{_lambda_.4} parent=5 // pred_fallthru
      _
    %p152 = scmp.le.s32.totalorder 1, %s8
    %p153 = scmp.lt.s32.totalorder %s8, 3
    %p154 = pnand %p152, %p153
    %p155 = pneg %p154
    // Predicated region
    $region25: #{_lambda_.4} parent=5 // pred_check
      _
    $region26: #{_lambda_.4} parent=5 // pred_check_branch
      %157 = sbr.rel (%p154) target = $region28
    $region27: #{_lambda_.4} parent=5 // pred_region
      %s158 = ssub.s32 %s8, 1
      %s159 = smul.u32 32, %s18
      %p160 = scmp.lt.s32.totalorder %s159, 63
      %s161 = scalar_select %p160, %s159, 63
      %p162 = scmp.lt.s32.totalorder %s20, 0
      %s163 = scalar_select %p162, %s20, 0
      %s164 = sadd.s32 %s163, %s161
      %s165 = smul.addr %s164, 4
      %s166 = scalar_lea.vmem %s0, %s165
      %p167 = pneg %p55
      %p168 = pneg %p52
      %p169 = scmp.lt.s32.totalorder %s20, 0
      %s170 = scalar_select %p169, %s20, 0
      %p171 = scmp.lt.s32.totalorder %s19, 0
      %s172 = scalar_select %p171, %s19, 0
      %s173 = sadd.s32 %s172, %s170
      %s174 = smul.addr %s173, 2
      %s175 = scalar_lea.vmem %s1, %s174
      %p176 = pneg %p83
      %p177 = pneg %p80
      %p178 = pneg %p111
      %p179 = pneg %p108
      %s180 = smul.u32 32, %s18
      %p181 = scmp.lt.s32.totalorder %s180, 63
      %s182 = scalar_select %p181, %s180, 63
      %p183 = scmp.lt.s32.totalorder %s19, 0
      %s184 = scalar_select %p183, %s19, 0
      %s185 = sadd.s32 %s184, %s182
      %s186 = smul.addr %s185, 4
      %s187 = scalar_lea.vmem %s2, %s186
      %s188 = smul.u32 32, %s18
      %p189 = scmp.lt.s32.totalorder %s188, 63
      %s190 = scalar_select %p189, %s188, 63
      %p191 = scmp.lt.s32.totalorder %s20, 0
      %s192 = scalar_select %p191, %s20, 0
      %s193 = sadd.s32 %s192, %s190
      %s194 = smul.addr %s193, 4
      %s195 = scalar_lea.vmem %s0, %s194
      %s196 = smul.u32 32, %s18
      %p197 = scmp.lt.s32.totalorder %s20, 0
      %s198 = scalar_select %p197, %s20, 0
      %p199 = scmp.lt.s32.totalorder %s19, 0
      %s200 = scalar_select %p199, %s19, 0
      %s201 = sadd.s32 %s200, %s198
      %s202 = smul.addr %s201, 2
      %s203 = scalar_lea.vmem %s1, %s202
      %s204 = smul.u32 32, %s18
      %p205 = scmp.lt.s32.totalorder %s204, 63
      %s206 = scalar_select %p205, %s204, 63
      %p207 = scmp.lt.s32.totalorder %s19, 0
      %s208 = scalar_select %p207, %s19, 0
      %s209 = sadd.s32 %s208, %s206
      %s210 = smul.addr %s209, 4
      %s211 = scalar_lea.vmem %s2, %s210
      %s212 = smul.u32 32, %s18
      %p214 = scmp.eq.s32.totalorder %s20, 0
      // Predicated region
      $region29: #{_lambda_.4} parent=27 // pred_check
        %p215 = pneg %p214
      $region30: #{_lambda_.4} parent=27 // pred_check_branch
        %217 = sbr.rel (%p215) target = $region32
      $region31: #{_lambda_.4} parent=27 // pred_region
        %218 = vst [vmem:[#allocation2] sm:$0xff] 0.0
        %219 = vst [vmem:[#allocation2 + $0x8] sm:$0xff] 0.0
        %220 = vst [vmem:[#allocation2 + $0x10] sm:$0xff] 0.0
        %221 = vst [vmem:[#allocation2 + $0x18] sm:$0xff] 0.0
        %222 = vst [vmem:[#allocation2 + $0x20] sm:$0xff] 0.0
        %223 = vst [vmem:[#allocation2 + $0x28] sm:$0xff] 0.0
        %224 = vst [vmem:[#allocation2 + $0x30] sm:$0xff] 0.0
        %225 = vst [vmem:[#allocation2 + $0x38] sm:$0xff] 0.0
        %226 = vst [vmem:[#allocation2 + $0x40] sm:$0xff] 0.0
        %227 = vst [vmem:[#allocation2 + $0x48] sm:$0xff] 0.0
        %228 = vst [vmem:[#allocation2 + $0x50] sm:$0xff] 0.0
        %229 = vst [vmem:[#allocation2 + $0x58] sm:$0xff] 0.0
        %230 = vst [vmem:[#allocation2 + $0x60] sm:$0xff] 0.0
        %231 = vst [vmem:[#allocation2 + $0x68] sm:$0xff] 0.0
        %232 = vst [vmem:[#allocation2 + $0x70] sm:$0xff] 0.0
        %233 = vst [vmem:[#allocation2 + $0x78] sm:$0xff] 0.0
        %234 = vst [vmem:[#allocation2 + $0x80] sm:$0xff] 0.0
        %235 = vst [vmem:[#allocation2 + $0x88] sm:$0xff] 0.0
        %236 = vst [vmem:[#allocation2 + $0x90] sm:$0xff] 0.0
        %237 = vst [vmem:[#allocation2 + $0x98] sm:$0xff] 0.0
        %238 = vst [vmem:[#allocation2 + $0xa0] sm:$0xff] 0.0
        %239 = vst [vmem:[#allocation2 + $0xa8] sm:$0xff] 0.0
        %240 = vst [vmem:[#allocation2 + $0xb0] sm:$0xff] 0.0
        %241 = vst [vmem:[#allocation2 + $0xb8] sm:$0xff] 0.0
        %242 = vst [vmem:[#allocation2 + $0xc0] sm:$0xff] 0.0
        %243 = vst [vmem:[#allocation2 + $0xc8] sm:$0xff] 0.0
        %244 = vst [vmem:[#allocation2 + $0xd0] sm:$0xff] 0.0
        %245 = vst [vmem:[#allocation2 + $0xd8] sm:$0xff] 0.0
        %246 = vst [vmem:[#allocation2 + $0xe0] sm:$0xff] 0.0
        %247 = vst [vmem:[#allocation2 + $0xe8] sm:$0xff] 0.0
        %248 = vst [vmem:[#allocation2 + $0xf0] sm:$0xff] 0.0
        %249 = vst [vmem:[#allocation2 + $0xf8] sm:$0xff] 0.0
      $region32: #{_lambda_.4} parent=27 // pred_fallthru
        _
      %v250 = vld [vmem:[#allocation2] sm:$0xff]
      %v251 = vld [vmem:[#allocation2 + $0x8] sm:$0xff]
      %v252 = vld [vmem:[#allocation2 + $0x10] sm:$0xff]
      %v253 = vld [vmem:[#allocation2 + $0x18] sm:$0xff]
      %v254 = vld [vmem:[#allocation2 + $0x20] sm:$0xff]
      %v255 = vld [vmem:[#allocation2 + $0x28] sm:$0xff]
      %v256 = vld [vmem:[#allocation2 + $0x30] sm:$0xff]
      %v257 = vld [vmem:[#allocation2 + $0x38] sm:$0xff]
      %v258 = vld [vmem:[#allocation2 + $0x40] sm:$0xff]
      %v259 = vld [vmem:[#allocation2 + $0x48] sm:$0xff]
      %v260 = vld [vmem:[#allocation2 + $0x50] sm:$0xff]
      %v261 = vld [vmem:[#allocation2 + $0x58] sm:$0xff]
      %v262 = vld [vmem:[#allocation2 + $0x60] sm:$0xff]
      %v263 = vld [vmem:[#allocation2 + $0x68] sm:$0xff]
      %v264 = vld [vmem:[#allocation2 + $0x70] sm:$0xff]
      %v265 = vld [vmem:[#allocation2 + $0x78] sm:$0xff]
      %v266 = vld [vmem:[#allocation2 + $0x80] sm:$0xff]
      %v267 = vld [vmem:[#allocation2 + $0x88] sm:$0xff]
      %v268 = vld [vmem:[#allocation2 + $0x90] sm:$0xff]
      %v269 = vld [vmem:[#allocation2 + $0x98] sm:$0xff]
      %v270 = vld [vmem:[#allocation2 + $0xa0] sm:$0xff]
      %v271 = vld [vmem:[#allocation2 + $0xa8] sm:$0xff]
      %v272 = vld [vmem:[#allocation2 + $0xb0] sm:$0xff]
      %v273 = vld [vmem:[#allocation2 + $0xb8] sm:$0xff]
      %v274 = vld [vmem:[#allocation2 + $0xc0] sm:$0xff]
      %v275 = vld [vmem:[#allocation2 + $0xc8] sm:$0xff]
      %v276 = vld [vmem:[#allocation2 + $0xd0] sm:$0xff]
      %v277 = vld [vmem:[#allocation2 + $0xd8] sm:$0xff]
      %v278 = vld [vmem:[#allocation2 + $0xe0] sm:$0xff]
      %v279 = vld [vmem:[#allocation2 + $0xe8] sm:$0xff]
      %v280 = vld [vmem:[#allocation2 + $0xf0] sm:$0xff]
      %v281 = vld [vmem:[#allocation2 + $0xf8] sm:$0xff]
      %v282 = vld [vmem:[%s195] sm:$0xf]
      %v283 = vld [vmem:[%s195 + $0x4] sm:$0xf]
      %v284 = vld [vmem:[%s195 + $0x8] sm:$0xf]
      %v285 = vld [vmem:[%s195 + $0xc] sm:$0xf]
      %v286 = vld [vmem:[%s195 + $0x10] sm:$0xf]
      %v287 = vld [vmem:[%s195 + $0x14] sm:$0xf]
      %v288 = vld [vmem:[%s195 + $0x18] sm:$0xf]
      %v289 = vld [vmem:[%s195 + $0x1c] sm:$0xf]
      %v290 = vld [vmem:[%s195 + $0x20] sm:$0xf]
      %v291 = vld [vmem:[%s195 + $0x24] sm:$0xf]
      %v292 = vld [vmem:[%s195 + $0x28] sm:$0xf]
      %v293 = vld [vmem:[%s195 + $0x2c] sm:$0xf]
      %v294 = vld [vmem:[%s195 + $0x30] sm:$0xf]
      %v295 = vld [vmem:[%s195 + $0x34] sm:$0xf]
      %v296 = vld [vmem:[%s195 + $0x38] sm:$0xf]
      %v297 = vld [vmem:[%s195 + $0x3c] sm:$0xf]
      %v298 = vld [vmem:[%s195 + $0x40] sm:$0xf]
      %v299 = vld [vmem:[%s195 + $0x44] sm:$0xf]
      %v300 = vld [vmem:[%s195 + $0x48] sm:$0xf]
      %v301 = vld [vmem:[%s195 + $0x4c] sm:$0xf]
      %v302 = vld [vmem:[%s195 + $0x50] sm:$0xf]
      %v303 = vld [vmem:[%s195 + $0x54] sm:$0xf]
      %v304 = vld [vmem:[%s195 + $0x58] sm:$0xf]
      %v305 = vld [vmem:[%s195 + $0x5c] sm:$0xf]
      %v306 = vld [vmem:[%s195 + $0x60] sm:$0xf]
      %v307 = vld [vmem:[%s195 + $0x64] sm:$0xf]
      %v308 = vld [vmem:[%s195 + $0x68] sm:$0xf]
      %v309 = vld [vmem:[%s195 + $0x6c] sm:$0xf]
      %v310 = vld [vmem:[%s195 + $0x70] sm:$0xf]
      %v311 = vld [vmem:[%s195 + $0x74] sm:$0xf]
      %v312 = vld [vmem:[%s195 + $0x78] sm:$0xf]
      %v313 = vld [vmem:[%s195 + $0x7c] sm:$0xf]
      %v314 = vld [vmem:[%s203] sm:$0x3]
      %v347 = vunpack.c.l.b16 %v282
      %v348 = vunpack.c.l.b16 %v283
      %v349 = vunpack.c.l.b16 %v284
      %v350 = vunpack.c.l.b16 %v285
      %v351 = vunpack.c.l.b16 %v286
      %v352 = vunpack.c.l.b16 %v287
      %v353 = vunpack.c.l.b16 %v288
      %v354 = vunpack.c.l.b16 %v289
      %v355 = vunpack.c.l.b16 %v290
      %v356 = vunpack.c.l.b16 %v291
      %v357 = vunpack.c.l.b16 %v292
      %v358 = vunpack.c.l.b16 %v293
      %v359 = vunpack.c.l.b16 %v294
      %v360 = vunpack.c.l.b16 %v295
      %v361 = vunpack.c.l.b16 %v296
      %v362 = vunpack.c.l.b16 %v297
      %v363 = vunpack.c.l.b16 %v298
      %v364 = vunpack.c.l.b16 %v299
      %v365 = vunpack.c.l.b16 %v300
      %v366 = vunpack.c.l.b16 %v301
      %v367 = vunpack.c.l.b16 %v302
      %v368 = vunpack.c.l.b16 %v303
      %v369 = vunpack.c.l.b16 %v304
      %v370 = vunpack.c.l.b16 %v305
      %v371 = vunpack.c.l.b16 %v306
      %v372 = vunpack.c.l.b16 %v307
      %v373 = vunpack.c.l.b16 %v308
      %v374 = vunpack.c.l.b16 %v309
      %v375 = vunpack.c.l.b16 %v310
      %v376 = vunpack.c.l.b16 %v311
      %v377 = vunpack.c.l.b16 %v312
      %v378 = vunpack.c.l.b16 %v313
      %v379 = vpack.c.b16 %v348, %v347
      %v380 = vpack.c.b16 %v350, %v349
      %v381 = vpack.c.b16 %v352, %v351
      %v382 = vpack.c.b16 %v354, %v353
      %v383 = vpack.c.b16 %v356, %v355
      %v384 = vpack.c.b16 %v358, %v357
      %v385 = vpack.c.b16 %v360, %v359
      %v386 = vpack.c.b16 %v362, %v361
      %v387 = vpack.c.b16 %v364, %v363
      %v388 = vpack.c.b16 %v366, %v365
      %v389 = vpack.c.b16 %v368, %v367
      %v390 = vpack.c.b16 %v370, %v369
      %v391 = vpack.c.b16 %v372, %v371
      %v392 = vpack.c.b16 %v374, %v373
      %v393 = vpack.c.b16 %v376, %v375
      %v394 = vpack.c.b16 %v378, %v377
      %vm395 = vcmask 31744
      %v397 = vsel %vm395, %v379, 0
      %v400 = vsel %vm395, %v380, 0
      %v403 = vsel %vm395, %v381, 0
      %v406 = vsel %vm395, %v382, 0
      %v409 = vsel %vm395, %v383, 0
      %v412 = vsel %vm395, %v384, 0
      %v415 = vsel %vm395, %v385, 0
      %v418 = vsel %vm395, %v386, 0
      %v421 = vsel %vm395, %v387, 0
      %v424 = vsel %vm395, %v388, 0
      %v427 = vsel %vm395, %v389, 0
      %v430 = vsel %vm395, %v390, 0
      %v433 = vsel %vm395, %v391, 0
      %v436 = vsel %vm395, %v392, 0
      %v439 = vsel %vm395, %v393, 0
      %v442 = vsel %vm395, %v394, 0
      %vm444 = vcmask 1041408
      %v446 = vsel %vm444, %v314, 0
      %448 = vmatprep.subr.bf16.mxu0 0
      %449 = vmatpush1.bf16.msra.mxu0 0
      %450 = vmatprep.subr.bf16.mxu0 0
      %451 = vmatpush1.bf16.msra.mxu0 0
      %452 = vmatprep.subr.bf16.mxu0 0
      %453 = vmatpush1.bf16.msra.mxu0 0
      %454 = vmatprep.subr.bf16.mxu0 0
      %455 = vmatpush1.bf16.msra.mxu0 0
      %456 = vmatprep.subr.bf16.mxu0 0
      %457 = vmatpush1.bf16.msra.mxu0 0
      %458 = vmatprep.subr.bf16.mxu0 0
      %459 = vmatpush1.bf16.msra.mxu0 0
      %460 = vmatprep.subr.bf16.mxu0 0
      %461 = vmatpush1.bf16.msra.mxu0 0
      %462 = vmatprep.subr.bf16.mxu0 0
      %463 = vmatpush1.bf16.msra.mxu0 %v446
      %464 = vmatprep.subr.bf16.mxu0 0
      %465 = vmatpush2.bf16.msra.mxu0 0
      %466 = vmatprep.subr.bf16.mxu0 0
      %467 = vmatpush2.bf16.msra.mxu0 0
      %468 = vmatprep.subr.bf16.mxu0 0
      %469 = vmatpush2.bf16.msra.mxu0 0
      %470 = vmatprep.subr.bf16.mxu0 0
      %471 = vmatpush2.bf16.msra.mxu0 0
      %472 = vmatprep.subr.bf16.mxu0 0
      %473 = vmatpush2.bf16.msra.mxu0 0
      %474 = vmatprep.subr.bf16.mxu0 0
      %475 = vmatpush2.bf16.msra.mxu0 0
      %476 = vmatprep.subr.bf16.mxu0 0
      %477 = vmatpush2.bf16.msra.mxu0 0
      %478 = vmatprep.subr.bf16.mxu0 0
      %479 = vmatpush2.bf16.msra.mxu0 0
      %480 = vmatprep.mubr.bf16.mxu0 0
      %481 = vmatmul.mubr.bf16.gmra.mxu0 %v397
      %v482 = vpop.f32.mrf.mxu0
      %v483 = vadd.f32 0.0, %v482
      %v484 = vpop.f32.mrf.mxu0
      %v485 = vpop.f32.mrf.mxu0
      %v486 = vadd.f32 0.0, %v485
      %v487 = vpop.f32.mrf.mxu0
      %488 = vmatprep.mubr.bf16.mxu0 0
      %489 = vmatmul.mubr.bf16.gmra.mxu0 %v400
      %v490 = vpop.f32.mrf.mxu0
      %v491 = vadd.f32 0.0, %v490
      %v492 = vpop.f32.mrf.mxu0
      %v493 = vpop.f32.mrf.mxu0
      %v494 = vadd.f32 0.0, %v493
      %v495 = vpop.f32.mrf.mxu0
      %496 = vmatprep.mubr.bf16.mxu0 0
      %497 = vmatmul.mubr.bf16.gmra.mxu0 %v403
      %v498 = vpop.f32.mrf.mxu0
      %v499 = vadd.f32 0.0, %v498
      %v500 = vpop.f32.mrf.mxu0
      %v501 = vpop.f32.mrf.mxu0
      %v502 = vadd.f32 0.0, %v501
      %v503 = vpop.f32.mrf.mxu0
      %504 = vmatprep.mubr.bf16.mxu0 0
      %505 = vmatmul.mubr.bf16.gmra.mxu0 %v406
      %v506 = vpop.f32.mrf.mxu0
      %v507 = vadd.f32 0.0, %v506
      %v508 = vpop.f32.mrf.mxu0
      %v509 = vpop.f32.mrf.mxu0
      %v510 = vadd.f32 0.0, %v509
      %v511 = vpop.f32.mrf.mxu0
      %512 = vmatprep.mubr.bf16.mxu0 0
      %513 = vmatmul.mubr.bf16.gmra.mxu0 %v409
      %v514 = vpop.f32.mrf.mxu0
      %v515 = vadd.f32 0.0, %v514
      %v516 = vpop.f32.mrf.mxu0
      %v517 = vpop.f32.mrf.mxu0
      %v518 = vadd.f32 0.0, %v517
      %v519 = vpop.f32.mrf.mxu0
      %520 = vmatprep.mubr.bf16.mxu0 0
      %521 = vmatmul.mubr.bf16.gmra.mxu0 %v412
      %v522 = vpop.f32.mrf.mxu0
      %v523 = vadd.f32 0.0, %v522
      %v524 = vpop.f32.mrf.mxu0
      %v525 = vpop.f32.mrf.mxu0
      %v526 = vadd.f32 0.0, %v525
      %v527 = vpop.f32.mrf.mxu0
      %528 = vmatprep.mubr.bf16.mxu0 0
      %529 = vmatmul.mubr.bf16.gmra.mxu0 %v415
      %v530 = vpop.f32.mrf.mxu0
      %v531 = vadd.f32 0.0, %v530
      %v532 = vpop.f32.mrf.mxu0
      %v533 = vpop.f32.mrf.mxu0
      %v534 = vadd.f32 0.0, %v533
      %v535 = vpop.f32.mrf.mxu0
      %536 = vmatprep.mubr.bf16.mxu0 0
      %537 = vmatmul.mubr.bf16.gmra.mxu0 %v418
      %v538 = vpop.f32.mrf.mxu0
      %v539 = vadd.f32 0.0, %v538
      %v540 = vpop.f32.mrf.mxu0
      %v541 = vpop.f32.mrf.mxu0
      %v542 = vadd.f32 0.0, %v541
      %v543 = vpop.f32.mrf.mxu0
      %544 = vmatprep.mubr.bf16.mxu0 0
      %545 = vmatmul.mubr.bf16.gmra.mxu0 %v421
      %v546 = vpop.f32.mrf.mxu0
      %v547 = vadd.f32 0.0, %v546
      %v548 = vpop.f32.mrf.mxu0
      %v549 = vpop.f32.mrf.mxu0
      %v550 = vadd.f32 0.0, %v549
      %v551 = vpop.f32.mrf.mxu0
      %552 = vmatprep.mubr.bf16.mxu0 0
      %553 = vmatmul.mubr.bf16.gmra.mxu0 %v424
      %v554 = vpop.f32.mrf.mxu0
      %v555 = vadd.f32 0.0, %v554
      %v556 = vpop.f32.mrf.mxu0
      %v557 = vpop.f32.mrf.mxu0
      %v558 = vadd.f32 0.0, %v557
      %v559 = vpop.f32.mrf.mxu0
      %560 = vmatprep.mubr.bf16.mxu0 0
      %561 = vmatmul.mubr.bf16.gmra.mxu0 %v427
      %v562 = vpop.f32.mrf.mxu0
      %v563 = vadd.f32 0.0, %v562
      %v564 = vpop.f32.mrf.mxu0
      %v565 = vpop.f32.mrf.mxu0
      %v566 = vadd.f32 0.0, %v565
      %v567 = vpop.f32.mrf.mxu0
      %568 = vmatprep.mubr.bf16.mxu0 0
      %569 = vmatmul.mubr.bf16.gmra.mxu0 %v430
      %v570 = vpop.f32.mrf.mxu0
      %v571 = vadd.f32 0.0, %v570
      %v572 = vpop.f32.mrf.mxu0
      %v573 = vpop.f32.mrf.mxu0
      %v574 = vadd.f32 0.0, %v573
      %v575 = vpop.f32.mrf.mxu0
      %576 = vmatprep.mubr.bf16.mxu0 0
      %577 = vmatmul.mubr.bf16.gmra.mxu0 %v433
      %v578 = vpop.f32.mrf.mxu0
      %v579 = vadd.f32 0.0, %v578
      %v580 = vpop.f32.mrf.mxu0
      %v581 = vpop.f32.mrf.mxu0
      %v582 = vadd.f32 0.0, %v581
      %v583 = vpop.f32.mrf.mxu0
      %584 = vmatprep.mubr.bf16.mxu0 0
      %585 = vmatmul.mubr.bf16.gmra.mxu0 %v436
      %v586 = vpop.f32.mrf.mxu0
      %v587 = vadd.f32 0.0, %v586
      %v588 = vpop.f32.mrf.mxu0
      %v589 = vpop.f32.mrf.mxu0
      %v590 = vadd.f32 0.0, %v589
      %v591 = vpop.f32.mrf.mxu0
      %592 = vmatprep.mubr.bf16.mxu0 0
      %593 = vmatmul.mubr.bf16.gmra.mxu0 %v439
      %v594 = vpop.f32.mrf.mxu0
      %v595 = vadd.f32 0.0, %v594
      %v596 = vpop.f32.mrf.mxu0
      %v597 = vpop.f32.mrf.mxu0
      %v598 = vadd.f32 0.0, %v597
      %v599 = vpop.f32.mrf.mxu0
      %600 = vmatprep.mubr.bf16.mxu0 0
      %601 = vmatmul.mubr.bf16.gmra.mxu0 %v442
      %v602 = vpop.f32.mrf.mxu0
      %v603 = vadd.f32 0.0, %v602
      %v604 = vpop.f32.mrf.mxu0
      %v605 = vpop.f32.mrf.mxu0
      %v606 = vadd.f32 0.0, %v605
      %v607 = vpop.f32.mrf.mxu0
      %608 = vdwg.mxu0
      %v609 = vadd.f32 %v250, %v483
      %v610 = vadd.f32 %v251, %v486
      %v611 = vadd.f32 %v252, %v491
      %v612 = vadd.f32 %v253, %v494
      %v613 = vadd.f32 %v254, %v499
      %v614 = vadd.f32 %v255, %v502
      %v615 = vadd.f32 %v256, %v507
      %v616 = vadd.f32 %v257, %v510
      %v617 = vadd.f32 %v258, %v515
      %v618 = vadd.f32 %v259, %v518
      %v619 = vadd.f32 %v260, %v523
      %v620 = vadd.f32 %v261, %v526
      %v621 = vadd.f32 %v262, %v531
      %v622 = vadd.f32 %v263, %v534
      %v623 = vadd.f32 %v264, %v539
      %v624 = vadd.f32 %v265, %v542
      %v625 = vadd.f32 %v266, %v547
      %v626 = vadd.f32 %v267, %v550
      %v627 = vadd.f32 %v268, %v555
      %v628 = vadd.f32 %v269, %v558
      %v629 = vadd.f32 %v270, %v563
      %v630 = vadd.f32 %v271, %v566
      %v631 = vadd.f32 %v272, %v571
      %v632 = vadd.f32 %v273, %v574
      %v633 = vadd.f32 %v274, %v579
      %v634 = vadd.f32 %v275, %v582
      %v635 = vadd.f32 %v276, %v587
      %v636 = vadd.f32 %v277, %v590
      %v637 = vadd.f32 %v278, %v595
      %v638 = vadd.f32 %v279, %v598
      %v639 = vadd.f32 %v280, %v603
      %v640 = vadd.f32 %v281, %v606
      %641 = vst [vmem:[#allocation2] sm:$0xff] %v609
      %642 = vst [vmem:[#allocation2 + $0x8] sm:$0xff] %v610
      %643 = vst [vmem:[#allocation2 + $0x10] sm:$0xff] %v611
      %644 = vst [vmem:[#allocation2 + $0x18] sm:$0xff] %v612
      %645 = vst [vmem:[#allocation2 + $0x20] sm:$0xff] %v613
      %646 = vst [vmem:[#allocation2 + $0x28] sm:$0xff] %v614
      %647 = vst [vmem:[#allocation2 + $0x30] sm:$0xff] %v615
      %648 = vst [vmem:[#allocation2 + $0x38] sm:$0xff] %v616
      %649 = vst [vmem:[#allocation2 + $0x40] sm:$0xff] %v617
      %650 = vst [vmem:[#allocation2 + $0x48] sm:$0xff] %v618
      %651 = vst [vmem:[#allocation2 + $0x50] sm:$0xff] %v619
      %652 = vst [vmem:[#allocation2 + $0x58] sm:$0xff] %v620
      %653 = vst [vmem:[#allocation2 + $0x60] sm:$0xff] %v621
      %654 = vst [vmem:[#allocation2 + $0x68] sm:$0xff] %v622
      %655 = vst [vmem:[#allocation2 + $0x70] sm:$0xff] %v623
      %656 = vst [vmem:[#allocation2 + $0x78] sm:$0xff] %v624
      %657 = vst [vmem:[#allocation2 + $0x80] sm:$0xff] %v625
      %658 = vst [vmem:[#allocation2 + $0x88] sm:$0xff] %v626
      %659 = vst [vmem:[#allocation2 + $0x90] sm:$0xff] %v627
      %660 = vst [vmem:[#allocation2 + $0x98] sm:$0xff] %v628
      %661 = vst [vmem:[#allocation2 + $0xa0] sm:$0xff] %v629
      %662 = vst [vmem:[#allocation2 + $0xa8] sm:$0xff] %v630
      %663 = vst [vmem:[#allocation2 + $0xb0] sm:$0xff] %v631
      %664 = vst [vmem:[#allocation2 + $0xb8] sm:$0xff] %v632
      %665 = vst [vmem:[#allocation2 + $0xc0] sm:$0xff] %v633
      %666 = vst [vmem:[#allocation2 + $0xc8] sm:$0xff] %v634
      %667 = vst [vmem:[#allocation2 + $0xd0] sm:$0xff] %v635
      %668 = vst [vmem:[#allocation2 + $0xd8] sm:$0xff] %v636
      %669 = vst [vmem:[#allocation2 + $0xe0] sm:$0xff] %v637
      %670 = vst [vmem:[#allocation2 + $0xe8] sm:$0xff] %v638
      %671 = vst [vmem:[#allocation2 + $0xf0] sm:$0xff] %v639
      %672 = vst [vmem:[#allocation2 + $0xf8] sm:$0xff] %v640
      // Predicated region
      $region33: #{_lambda_.4} parent=27 // pred_check
        %p673 = pneg %p214
      $region34: #{_lambda_.4} parent=27 // pred_check_branch
        %675 = sbr.rel (%p673) target = $region36
      $region35: #{_lambda_.4} parent=27 // pred_region
        %v676 = vld [vmem:[#allocation2] sm:$0xff]
        %v677 = vld [vmem:[#allocation2 + $0x8] sm:$0xff]
        %v678 = vld [vmem:[#allocation2 + $0x10] sm:$0xff]
        %v679 = vld [vmem:[#allocation2 + $0x18] sm:$0xff]
        %v680 = vld [vmem:[#allocation2 + $0x20] sm:$0xff]
        %v681 = vld [vmem:[#allocation2 + $0x28] sm:$0xff]
        %v682 = vld [vmem:[#allocation2 + $0x30] sm:$0xff]
        %v683 = vld [vmem:[#allocation2 + $0x38] sm:$0xff]
        %v684 = vld [vmem:[#allocation2 + $0x40] sm:$0xff]
        %v685 = vld [vmem:[#allocation2 + $0x48] sm:$0xff]
        %v686 = vld [vmem:[#allocation2 + $0x50] sm:$0xff]
        %v687 = vld [vmem:[#allocation2 + $0x58] sm:$0xff]
        %v688 = vld [vmem:[#allocation2 + $0x60] sm:$0xff]
        %v689 = vld [vmem:[#allocation2 + $0x68] sm:$0xff]
        %v690 = vld [vmem:[#allocation2 + $0x70] sm:$0xff]
        %v691 = vld [vmem:[#allocation2 + $0x78] sm:$0xff]
        %v692 = vld [vmem:[#allocation2 + $0x80] sm:$0xff]
        %v693 = vld [vmem:[#allocation2 + $0x88] sm:$0xff]
        %v694 = vld [vmem:[#allocation2 + $0x90] sm:$0xff]
        %v695 = vld [vmem:[#allocation2 + $0x98] sm:$0xff]
        %v696 = vld [vmem:[#allocation2 + $0xa0] sm:$0xff]
        %v697 = vld [vmem:[#allocation2 + $0xa8] sm:$0xff]
        %v698 = vld [vmem:[#allocation2 + $0xb0] sm:$0xff]
        %v699 = vld [vmem:[#allocation2 + $0xb8] sm:$0xff]
        %v700 = vld [vmem:[#allocation2 + $0xc0] sm:$0xff]
        %v701 = vld [vmem:[#allocation2 + $0xc8] sm:$0xff]
        %v702 = vld [vmem:[#allocation2 + $0xd0] sm:$0xff]
        %v703 = vld [vmem:[#allocation2 + $0xd8] sm:$0xff]
        %v704 = vld [vmem:[#allocation2 + $0xe0] sm:$0xff]
        %v705 = vld [vmem:[#allocation2 + $0xe8] sm:$0xff]
        %v706 = vld [vmem:[#allocation2 + $0xf0] sm:$0xff]
        %v707 = vld [vmem:[#allocation2 + $0xf8] sm:$0xff]
        %v708 = vmax.f32 %v676, 0.0
        %v709 = vmax.f32 %v677, 0.0
        %v710 = vmax.f32 %v678, 0.0
        %v711 = vmax.f32 %v679, 0.0
        %v712 = vmax.f32 %v680, 0.0
        %v713 = vmax.f32 %v681, 0.0
        %v714 = vmax.f32 %v682, 0.0
        %v715 = vmax.f32 %v683, 0.0
        %v716 = vmax.f32 %v684, 0.0
        %v717 = vmax.f32 %v685, 0.0
        %v718 = vmax.f32 %v686, 0.0
        %v719 = vmax.f32 %v687, 0.0
        %v720 = vmax.f32 %v688, 0.0
        %v721 = vmax.f32 %v689, 0.0
        %v722 = vmax.f32 %v690, 0.0
        %v723 = vmax.f32 %v691, 0.0
        %v724 = vmax.f32 %v692, 0.0
        %v725 = vmax.f32 %v693, 0.0
        %v726 = vmax.f32 %v694, 0.0
        %v727 = vmax.f32 %v695, 0.0
        %v728 = vmax.f32 %v696, 0.0
        %v729 = vmax.f32 %v697, 0.0
        %v730 = vmax.f32 %v698, 0.0
        %v731 = vmax.f32 %v699, 0.0
        %v732 = vmax.f32 %v700, 0.0
        %v733 = vmax.f32 %v701, 0.0
        %v734 = vmax.f32 %v702, 0.0
        %v735 = vmax.f32 %v703, 0.0
        %v736 = vmax.f32 %v704, 0.0
        %v737 = vmax.f32 %v705, 0.0
        %v738 = vmax.f32 %v706, 0.0
        %v739 = vmax.f32 %v707, 0.0
        %v740 = vpack.c.bf16 %v709, %v708
        %v741 = vpack.c.bf16 %v711, %v710
        %v742 = vpack.c.bf16 %v713, %v712
        %v743 = vpack.c.bf16 %v715, %v714
        %v744 = vpack.c.bf16 %v717, %v716
        %v745 = vpack.c.bf16 %v719, %v718
        %v746 = vpack.c.bf16 %v721, %v720
        %v747 = vpack.c.bf16 %v723, %v722
        %v748 = vpack.c.bf16 %v725, %v724
        %v749 = vpack.c.bf16 %v727, %v726
        %v750 = vpack.c.bf16 %v729, %v728
        %v751 = vpack.c.bf16 %v731, %v730
        %v752 = vpack.c.bf16 %v733, %v732
        %v753 = vpack.c.bf16 %v735, %v734
        %v754 = vpack.c.bf16 %v737, %v736
        %v755 = vpack.c.bf16 %v739, %v738
        %v772 = vunpack.c.l.b16 %v740
        %v773 = vunpack.c.h.b16 %v740
        %v774 = vunpack.c.l.b16 %v741
        %v775 = vunpack.c.h.b16 %v741
        %v776 = vunpack.c.l.b16 %v742
        %v777 = vunpack.c.h.b16 %v742
        %v778 = vunpack.c.l.b16 %v743
        %v779 = vunpack.c.h.b16 %v743
        %v780 = vunpack.c.l.b16 %v744
        %v781 = vunpack.c.h.b16 %v744
        %v782 = vunpack.c.l.b16 %v745
        %v783 = vunpack.c.h.b16 %v745
        %v784 = vunpack.c.l.b16 %v746
        %v785 = vunpack.c.h.b16 %v746
        %v786 = vunpack.c.l.b16 %v747
        %v787 = vunpack.c.h.b16 %v747
        %v788 = vunpack.c.l.b16 %v748
        %v789 = vunpack.c.h.b16 %v748
        %v790 = vunpack.c.l.b16 %v749
        %v791 = vunpack.c.h.b16 %v749
        %v792 = vunpack.c.l.b16 %v750
        %v793 = vunpack.c.h.b16 %v750
        %v794 = vunpack.c.l.b16 %v751
        %v795 = vunpack.c.h.b16 %v751
        %v796 = vunpack.c.l.b16 %v752
        %v797 = vunpack.c.h.b16 %v752
        %v798 = vunpack.c.l.b16 %v753
        %v799 = vunpack.c.h.b16 %v753
        %v800 = vunpack.c.l.b16 %v754
        %v801 = vunpack.c.h.b16 %v754
        %v802 = vunpack.c.l.b16 %v755
        %v803 = vunpack.c.h.b16 %v755
        %v804 = vpack.c.b16 %v772, %v772
        %v805 = vpack.c.b16 %v773, %v773
        %v806 = vpack.c.b16 %v774, %v774
        %v807 = vpack.c.b16 %v775, %v775
        %v808 = vpack.c.b16 %v776, %v776
        %v809 = vpack.c.b16 %v777, %v777
        %v810 = vpack.c.b16 %v778, %v778
        %v811 = vpack.c.b16 %v779, %v779
        %v812 = vpack.c.b16 %v780, %v780
        %v813 = vpack.c.b16 %v781, %v781
        %v814 = vpack.c.b16 %v782, %v782
        %v815 = vpack.c.b16 %v783, %v783
        %v816 = vpack.c.b16 %v784, %v784
        %v817 = vpack.c.b16 %v785, %v785
        %v818 = vpack.c.b16 %v786, %v786
        %v819 = vpack.c.b16 %v787, %v787
        %v820 = vpack.c.b16 %v788, %v788
        %v821 = vpack.c.b16 %v789, %v789
        %v822 = vpack.c.b16 %v790, %v790
        %v823 = vpack.c.b16 %v791, %v791
        %v824 = vpack.c.b16 %v792, %v792
        %v825 = vpack.c.b16 %v793, %v793
        %v826 = vpack.c.b16 %v794, %v794
        %v827 = vpack.c.b16 %v795, %v795
        %v828 = vpack.c.b16 %v796, %v796
        %v829 = vpack.c.b16 %v797, %v797
        %v830 = vpack.c.b16 %v798, %v798
        %v831 = vpack.c.b16 %v799, %v799
        %v832 = vpack.c.b16 %v800, %v800
        %v833 = vpack.c.b16 %v801, %v801
        %v834 = vpack.c.b16 %v802, %v802
        %v835 = vpack.c.b16 %v803, %v803
        %868 = vst [vmem:[%s211] sm:$0xf] %v804
        %869 = vst [vmem:[%s211 + $0x4] sm:$0xf] %v805
        %870 = vst [vmem:[%s211 + $0x8] sm:$0xf] %v806
        %871 = vst [vmem:[%s211 + $0xc] sm:$0xf] %v807
        %872 = vst [vmem:[%s211 + $0x10] sm:$0xf] %v808
        %873 = vst [vmem:[%s211 + $0x14] sm:$0xf] %v809
        %874 = vst [vmem:[%s211 + $0x18] sm:$0xf] %v810
        %875 = vst [vmem:[%s211 + $0x1c] sm:$0xf] %v811
        %876 = vst [vmem:[%s211 + $0x20] sm:$0xf] %v812
        %877 = vst [vmem:[%s211 + $0x24] sm:$0xf] %v813
        %878 = vst [vmem:[%s211 + $0x28] sm:$0xf] %v814
        %879 = vst [vmem:[%s211 + $0x2c] sm:$0xf] %v815
        %880 = vst [vmem:[%s211 + $0x30] sm:$0xf] %v816
        %881 = vst [vmem:[%s211 + $0x34] sm:$0xf] %v817
        %882 = vst [vmem:[%s211 + $0x38] sm:$0xf] %v818
        %883 = vst [vmem:[%s211 + $0x3c] sm:$0xf] %v819
        %884 = vst [vmem:[%s211 + $0x40] sm:$0xf] %v820
        %885 = vst [vmem:[%s211 + $0x44] sm:$0xf] %v821
        %886 = vst [vmem:[%s211 + $0x48] sm:$0xf] %v822
        %887 = vst [vmem:[%s211 + $0x4c] sm:$0xf] %v823
        %888 = vst [vmem:[%s211 + $0x50] sm:$0xf] %v824
        %889 = vst [vmem:[%s211 + $0x54] sm:$0xf] %v825
        %890 = vst [vmem:[%s211 + $0x58] sm:$0xf] %v826
        %891 = vst [vmem:[%s211 + $0x5c] sm:$0xf] %v827
        %892 = vst [vmem:[%s211 + $0x60] sm:$0xf] %v828
        %893 = vst [vmem:[%s211 + $0x64] sm:$0xf] %v829
        %894 = vst [vmem:[%s211 + $0x68] sm:$0xf] %v830
        %895 = vst [vmem:[%s211 + $0x6c] sm:$0xf] %v831
        %896 = vst [vmem:[%s211 + $0x70] sm:$0xf] %v832
        %897 = vst [vmem:[%s211 + $0x74] sm:$0xf] %v833
        %898 = vst [vmem:[%s211 + $0x78] sm:$0xf] %v834
        %899 = vst [vmem:[%s211 + $0x7c] sm:$0xf] %v835
      $region36: #{_lambda_.4} parent=27 // pred_fallthru
        _
      %s900 = smul.u32 32, %s18
      %p901 = scmp.lt.s32.totalorder %s900, 63
      %s902 = scalar_select %p901, %s900, 63
      %p903 = scmp.lt.s32.totalorder %s19, 0
      %s904 = scalar_select %p903, %s19, 0
      %s905 = sadd.s32 %s904, %s902
      %s906 = smul.addr %s905, 4
      %s907 = scalar_lea.vmem %s2, %s906
      // Predicated region
      $region37: #{_lambda_.4} parent=27 // pred_check
        %p908 = pneg %p108
      $region38: #{_lambda_.4} parent=27 // pred_check_branch
        %910 = sbr.rel (%p908) target = $region40
      $region39: #{_lambda_.4} parent=27 // pred_region
        %s911 = smul.u32 32, %s18
      $region40: #{_lambda_.4} parent=27 // pred_fallthru
        _
    $region28: #{_lambda_.4} parent=5 // pred_fallthru
      _
    %p912 = scmp.le.s32.totalorder 2, %s8
    // Predicated region
    $region41: #{_lambda_.4} parent=5 // pred_check
      %p913 = pneg %p912
    $region42: #{_lambda_.4} parent=5 // pred_check_branch
      %915 = sbr.rel (%p913) target = $region44
    $region43: #{_lambda_.4} parent=5 // pred_region
      %s916 = ssub.s32 %s8, 2
      // Predicated region
      $region45: #{_lambda_.4} parent=43 // pred_check
        %p917 = pneg %p114
      $region46: #{_lambda_.4} parent=43 // pred_check_branch
        %919 = sbr.rel (%p917) target = $region48
      $region47: #{_lambda_.4} parent=43 // pred_region
        %s920 = smul.u32 32, %s21
        %p921 = scmp.lt.s32.totalorder %s920, 63
        %s922 = scalar_select %p921, %s920, 63
        %p923 = scmp.lt.s32.totalorder %s22, 0
        %s924 = scalar_select %p923, %s22, 0
        %s925 = sadd.s32 %s924, %s922
        %s926 = smul.addr %s925, 4
        %s927 = scalar_lea.vmem %s2, %s926
      $region48: #{_lambda_.4} parent=43 // pred_fallthru
        _
    $region44: #{_lambda_.4} parent=5 // pred_fallthru
      _
  $region6: #{_lambda_.4} parent=0 // loop_footer
    %s12 = sadd.s32 1, %s8
  $region7: #{_lambda_.4} parent=0 // loop_footer_branch
    %7 = sbr.rel target = $region3
  $region8: #{_lambda_.4} parent=0 // loop_exit
    _

// kernel: _lambda_.6
$region0: #{_lambda_.6}
  #allocation0 [shape = 'u32[]', space=smem, size = 0x4, offset = 0x4, fixed_abs, tag = 'smem constant byte address 0x4 - core index']
  #allocation1 [shape = 'u32[144,128]{1,0:T(1,128)}', space=vmem, size = 0x12000, scoped, tag = 'internal scratch']
  #allocation2 [shape = 'f32[128,128]{1,0:T(8,128)}', space=vmem, size = 0x10000, scoped, tag = 'scratch operand']
  %s0 = inlined_call_operand.vmem [shape: bf16[128,72], index: 0, kind: input, shape index: {}]
  %s1 = inlined_call_operand.vmem [shape: bf16[72,128], index: 1, kind: input, shape index: {}]
  %s2 = inlined_call_operand.vmem [shape: bf16[128,128], index: 2, kind: output, shape index: {}]
  %s3 = sld [smem:[#allocation0]]
  $region26: #{_lambda_.6} parent=0
    _
  %s5 = ssub.s32 1, %s3
  %s6 = scalar_select 0, %s5, %s3
  // Predicated region
  $region2: #{_lambda_.6} parent=0 // pred_check
    _
  $region3: #{_lambda_.6} parent=0 // pred_check_branch
    %8 = sbr.rel (0) target = $region5
  $region4: #{_lambda_.6} parent=0 // pred_region
    _
  $region5: #{_lambda_.6} parent=0 // pred_fallthru
    _
  // Predicated region
  $region6: #{_lambda_.6} parent=0 // pred_check
    _
  $region7: #{_lambda_.6} parent=0 // pred_check_branch
    %10 = sbr.rel (0) target = $region9
  $region8: #{_lambda_.6} parent=0 // pred_region
    _
  $region9: #{_lambda_.6} parent=0 // pred_fallthru
    _
  %p12 = scmp.eq.s32.totalorder 0, 0
  // Predicated region
  $region10: #{_lambda_.6} parent=0 // pred_check
    %p13 = pneg %p12
  $region11: #{_lambda_.6} parent=0 // pred_check_branch
    %15 = sbr.rel (%p13) target = $region13
  $region12: #{_lambda_.6} parent=0 // pred_region
    %16 = vst [vmem:[#allocation2] sm:$0xff] 0.0
    %17 = vst [vmem:[#allocation2 + $0x8] sm:$0xff] 0.0
    %18 = vst [vmem:[#allocation2 + $0x10] sm:$0xff] 0.0
    %19 = vst [vmem:[#allocation2 + $0x18] sm:$0xff] 0.0
    %20 = vst [vmem:[#allocation2 + $0x20] sm:$0xff] 0.0
    %21 = vst [vmem:[#allocation2 + $0x28] sm:$0xff] 0.0
    %22 = vst [vmem:[#allocation2 + $0x30] sm:$0xff] 0.0
    %23 = vst [vmem:[#allocation2 + $0x38] sm:$0xff] 0.0
    %24 = vst [vmem:[#allocation2 + $0x40] sm:$0xff] 0.0
    %25 = vst [vmem:[#allocation2 + $0x48] sm:$0xff] 0.0
    %26 = vst [vmem:[#allocation2 + $0x50] sm:$0xff] 0.0
    %27 = vst [vmem:[#allocation2 + $0x58] sm:$0xff] 0.0
    %28 = vst [vmem:[#allocation2 + $0x60] sm:$0xff] 0.0
    %29 = vst [vmem:[#allocation2 + $0x68] sm:$0xff] 0.0
    %30 = vst [vmem:[#allocation2 + $0x70] sm:$0xff] 0.0
    %31 = vst [vmem:[#allocation2 + $0x78] sm:$0xff] 0.0
  $region13: #{_lambda_.6} parent=0 // pred_fallthru
    _
  %v32 = vld [vmem:[#allocation2] sm:$0xff]
  %v33 = vld [vmem:[#allocation2 + $0x8] sm:$0xff]
  %v34 = vld [vmem:[#allocation2 + $0x10] sm:$0xff]
  %v35 = vld [vmem:[#allocation2 + $0x18] sm:$0xff]
  %v36 = vld [vmem:[#allocation2 + $0x20] sm:$0xff]
  %v37 = vld [vmem:[#allocation2 + $0x28] sm:$0xff]
  %v38 = vld [vmem:[#allocation2 + $0x30] sm:$0xff]
  %v39 = vld [vmem:[#allocation2 + $0x38] sm:$0xff]
  %v40 = vld [vmem:[#allocation2 + $0x40] sm:$0xff]
  %v41 = vld [vmem:[#allocation2 + $0x48] sm:$0xff]
  %v42 = vld [vmem:[#allocation2 + $0x50] sm:$0xff]
  %v43 = vld [vmem:[#allocation2 + $0x58] sm:$0xff]
  %v44 = vld [vmem:[#allocation2 + $0x60] sm:$0xff]
  %v45 = vld [vmem:[#allocation2 + $0x68] sm:$0xff]
  %v46 = vld [vmem:[#allocation2 + $0x70] sm:$0xff]
  %v47 = vld [vmem:[#allocation2 + $0x78] sm:$0xff]
  %v48 = vld [vmem:[%s0] sm:$0xf]
  %v49 = vld [vmem:[%s0 + $0x4] sm:$0xf]
  %v50 = vld [vmem:[%s0 + $0x8] sm:$0xf]
  %v51 = vld [vmem:[%s0 + $0xc] sm:$0xf]
  %v52 = vld [vmem:[%s0 + $0x10] sm:$0xf]
  %v53 = vld [vmem:[%s0 + $0x14] sm:$0xf]
  %v54 = vld [vmem:[%s0 + $0x18] sm:$0xf]
  %v55 = vld [vmem:[%s0 + $0x1c] sm:$0xf]
  %v56 = vld [vmem:[%s0 + $0x20] sm:$0xf]
  %v57 = vld [vmem:[%s0 + $0x24] sm:$0xf]
  %v58 = vld [vmem:[%s0 + $0x28] sm:$0xf]
  %v59 = vld [vmem:[%s0 + $0x2c] sm:$0xf]
  %v60 = vld [vmem:[%s0 + $0x30] sm:$0xf]
  %v61 = vld [vmem:[%s0 + $0x34] sm:$0xf]
  %v62 = vld [vmem:[%s0 + $0x38] sm:$0xf]
  %v63 = vld [vmem:[%s0 + $0x3c] sm:$0xf]
  %v64 = vld [vmem:[%s1] sm:$0xf]
  %v65 = vld [vmem:[%s1 + $0x4] sm:$0xf]
  %v66 = vld [vmem:[%s1 + $0x8] sm:$0xf]
  %v67 = vld [vmem:[%s1 + $0xc] sm:$0xf]
  %v68 = vld [vmem:[%s1 + $0x10] sm:$0xf]
  %v69 = vld [vmem:[%s1 + $0x14] sm:$0xf]
  %v70 = vld [vmem:[%s1 + $0x18] sm:$0xf]
  %v71 = vld [vmem:[%s1 + $0x1c] sm:$0xf]
  %v72 = vld [vmem:[%s1 + $0x20] sm:$0xf]
  %v89 = vunpack.c.l.b16 %v48
  %v90 = vunpack.c.l.b16 %v49
  %v91 = vunpack.c.l.b16 %v50
  %v92 = vunpack.c.l.b16 %v51
  %v93 = vunpack.c.l.b16 %v52
  %v94 = vunpack.c.l.b16 %v53
  %v95 = vunpack.c.l.b16 %v54
  %v96 = vunpack.c.l.b16 %v55
  %v97 = vunpack.c.l.b16 %v56
  %v98 = vunpack.c.l.b16 %v57
  %v99 = vunpack.c.l.b16 %v58
  %v100 = vunpack.c.l.b16 %v59
  %v101 = vunpack.c.l.b16 %v60
  %v102 = vunpack.c.l.b16 %v61
  %v103 = vunpack.c.l.b16 %v62
  %v104 = vunpack.c.l.b16 %v63
  %v105 = vpack.c.b16 %v90, %v89
  %v106 = vpack.c.b16 %v92, %v91
  %v107 = vpack.c.b16 %v94, %v93
  %v108 = vpack.c.b16 %v96, %v95
  %v109 = vpack.c.b16 %v98, %v97
  %v110 = vpack.c.b16 %v100, %v99
  %v111 = vpack.c.b16 %v102, %v101
  %v112 = vpack.c.b16 %v104, %v103
  %v122 = vunpack.c.l.b16 %v64
  %v123 = vunpack.c.l.b16 %v65
  %v124 = vunpack.c.l.b16 %v66
  %v125 = vunpack.c.l.b16 %v67
  %v126 = vunpack.c.l.b16 %v68
  %v127 = vunpack.c.l.b16 %v69
  %v128 = vunpack.c.l.b16 %v70
  %v129 = vunpack.c.l.b16 %v71
  %v130 = vunpack.c.l.b16 %v72
  %v131 = vpack.c.b16 %v123, %v122
  %v132 = vpack.c.b16 %v125, %v124
  %v133 = vpack.c.b16 %v127, %v126
  %v134 = vpack.c.b16 %v129, %v128
  %v135 = vpack.c.b16 %v130, %v130
  %vm140 = vcmask 588800
  %v142 = vsel %vm140, %v105, 0
  %v145 = vsel %vm140, %v106, 0
  %v148 = vsel %vm140, %v107, 0
  %v151 = vsel %vm140, %v108, 0
  %v154 = vsel %vm140, %v109, 0
  %v157 = vsel %vm140, %v110, 0
  %v160 = vsel %vm140, %v111, 0
  %v163 = vsel %vm140, %v112, 0
  %vm165 = vcmask 1043456
  %v167 = vsel %vm165, %v135, 0
  %169 = vmatprep.subr.bf16.mxu0 0
  %170 = vmatpush1.bf16.msra.mxu0 0
  %171 = vmatprep.subr.bf16.mxu0 0
  %172 = vmatpush1.bf16.msra.mxu0 0
  %173 = vmatprep.subr.bf16.mxu0 0
  %174 = vmatpush1.bf16.msra.mxu0 0
  %175 = vmatprep.subr.bf16.mxu0 0
  %176 = vmatpush1.bf16.msra.mxu0 %v167
  %177 = vmatprep.subr.bf16.mxu0 0
  %178 = vmatpush1.bf16.msra.mxu0 %v134
  %179 = vmatprep.subr.bf16.mxu0 0
  %180 = vmatpush1.bf16.msra.mxu0 %v133
  %181 = vmatprep.subr.bf16.mxu0 0
  %182 = vmatpush1.bf16.msra.mxu0 %v132
  %183 = vmatprep.subr.bf16.mxu0 0
  %184 = vmatpush1.bf16.msra.mxu0 %v131
  %185 = vmatprep.subr.bf16.mxu0 0
  %186 = vmatpush2.bf16.msra.mxu0 0
  %187 = vmatprep.subr.bf16.mxu0 0
  %188 = vmatpush2.bf16.msra.mxu0 0
  %189 = vmatprep.subr.bf16.mxu0 0
  %190 = vmatpush2.bf16.msra.mxu0 0
  %191 = vmatprep.subr.bf16.mxu0 0
  %192 = vmatpush2.bf16.msra.mxu0 0
  %193 = vmatprep.subr.bf16.mxu0 0
  %194 = vmatpush2.bf16.msra.mxu0 0
  %195 = vmatprep.subr.bf16.mxu0 0
  %196 = vmatpush2.bf16.msra.mxu0 0
  %197 = vmatprep.subr.bf16.mxu0 0
  %198 = vmatpush2.bf16.msra.mxu0 0
  %199 = vmatprep.subr.bf16.mxu0 0
  %200 = vmatpush2.bf16.msra.mxu0 0
  %201 = vmatprep.mubr.bf16.mxu0 0
  %202 = vmatmul.mubr.bf16.gmra.mxu0 %v142
  %v203 = vpop.f32.mrf.mxu0
  %v204 = vadd.f32 0.0, %v203
  %v205 = vpop.f32.mrf.mxu0
  %v206 = vpop.f32.mrf.mxu0
  %v207 = vadd.f32 0.0, %v206
  %v208 = vpop.f32.mrf.mxu0
  %209 = vmatprep.mubr.bf16.mxu0 0
  %210 = vmatmul.mubr.bf16.gmra.mxu0 %v145
  %v211 = vpop.f32.mrf.mxu0
  %v212 = vadd.f32 0.0, %v211
  %v213 = vpop.f32.mrf.mxu0
  %v214 = vpop.f32.mrf.mxu0
  %v215 = vadd.f32 0.0, %v214
  %v216 = vpop.f32.mrf.mxu0
  %217 = vmatprep.mubr.bf16.mxu0 0
  %218 = vmatmul.mubr.bf16.gmra.mxu0 %v148
  %v219 = vpop.f32.mrf.mxu0
  %v220 = vadd.f32 0.0, %v219
  %v221 = vpop.f32.mrf.mxu0
  %v222 = vpop.f32.mrf.mxu0
  %v223 = vadd.f32 0.0, %v222
  %v224 = vpop.f32.mrf.mxu0
  %225 = vmatprep.mubr.bf16.mxu0 0
  %226 = vmatmul.mubr.bf16.gmra.mxu0 %v151
  %v227 = vpop.f32.mrf.mxu0
  %v228 = vadd.f32 0.0, %v227
  %v229 = vpop.f32.mrf.mxu0
  %v230 = vpop.f32.mrf.mxu0
  %v231 = vadd.f32 0.0, %v230
  %v232 = vpop.f32.mrf.mxu0
  %233 = vmatprep.mubr.bf16.mxu0 0
  %234 = vmatmul.mubr.bf16.gmra.mxu0 %v154
  %v235 = vpop.f32.mrf.mxu0
  %v236 = vadd.f32 0.0, %v235
  %v237 = vpop.f32.mrf.mxu0
  %v238 = vpop.f32.mrf.mxu0
  %v239 = vadd.f32 0.0, %v238
  %v240 = vpop.f32.mrf.mxu0
  %241 = vmatprep.mubr.bf16.mxu0 0
  %242 = vmatmul.mubr.bf16.gmra.mxu0 %v157
  %v243 = vpop.f32.mrf.mxu0
  %v244 = vadd.f32 0.0, %v243
  %v245 = vpop.f32.mrf.mxu0
  %v246 = vpop.f32.mrf.mxu0
  %v247 = vadd.f32 0.0, %v246
  %v248 = vpop.f32.mrf.mxu0
  %249 = vmatprep.mubr.bf16.mxu0 0
  %250 = vmatmul.mubr.bf16.gmra.mxu0 %v160
  %v251 = vpop.f32.mrf.mxu0
  %v252 = vadd.f32 0.0, %v251
  %v253 = vpop.f32.mrf.mxu0
  %v254 = vpop.f32.mrf.mxu0
  %v255 = vadd.f32 0.0, %v254
  %v256 = vpop.f32.mrf.mxu0
  %257 = vmatprep.mubr.bf16.mxu0 0
  %258 = vmatmul.mubr.bf16.gmra.mxu0 %v163
  %v259 = vpop.f32.mrf.mxu0
  %v260 = vadd.f32 0.0, %v259
  %v261 = vpop.f32.mrf.mxu0
  %v262 = vpop.f32.mrf.mxu0
  %v263 = vadd.f32 0.0, %v262
  %v264 = vpop.f32.mrf.mxu0
  %265 = vdwg.mxu0
  %v266 = vadd.f32 %v32, %v204
  %v267 = vadd.f32 %v33, %v207
  %v268 = vadd.f32 %v34, %v212
  %v269 = vadd.f32 %v35, %v215
  %v270 = vadd.f32 %v36, %v220
  %v271 = vadd.f32 %v37, %v223
  %v272 = vadd.f32 %v38, %v228
  %v273 = vadd.f32 %v39, %v231
  %v274 = vadd.f32 %v40, %v236
  %v275 = vadd.f32 %v41, %v239
  %v276 = vadd.f32 %v42, %v244
  %v277 = vadd.f32 %v43, %v247
  %v278 = vadd.f32 %v44, %v252
  %v279 = vadd.f32 %v45, %v255
  %v280 = vadd.f32 %v46, %v260
  %v281 = vadd.f32 %v47, %v263
  %282 = vst [vmem:[#allocation2] sm:$0xff] %v266
  %283 = vst [vmem:[#allocation2 + $0x8] sm:$0xff] %v267
  %284 = vst [vmem:[#allocation2 + $0x10] sm:$0xff] %v268
  %285 = vst [vmem:[#allocation2 + $0x18] sm:$0xff] %v269
  %286 = vst [vmem:[#allocation2 + $0x20] sm:$0xff] %v270
  %287 = vst [vmem:[#allocation2 + $0x28] sm:$0xff] %v271
  %288 = vst [vmem:[#allocation2 + $0x30] sm:$0xff] %v272
  %289 = vst [vmem:[#allocation2 + $0x38] sm:$0xff] %v273
  %290 = vst [vmem:[#allocation2 + $0x40] sm:$0xff] %v274
  %291 = vst [vmem:[#allocation2 + $0x48] sm:$0xff] %v275
  %292 = vst [vmem:[#allocation2 + $0x50] sm:$0xff] %v276
  %293 = vst [vmem:[#allocation2 + $0x58] sm:$0xff] %v277
  %294 = vst [vmem:[#allocation2 + $0x60] sm:$0xff] %v278
  %295 = vst [vmem:[#allocation2 + $0x68] sm:$0xff] %v279
  %296 = vst [vmem:[#allocation2 + $0x70] sm:$0xff] %v280
  %297 = vst [vmem:[#allocation2 + $0x78] sm:$0xff] %v281
  // Predicated region
  $region14: #{_lambda_.6} parent=0 // pred_check
    %p298 = pneg %p12
  $region15: #{_lambda_.6} parent=0 // pred_check_branch
    %300 = sbr.rel (%p298) target = $region17
  $region16: #{_lambda_.6} parent=0 // pred_region
    %v301 = vld [vmem:[#allocation2] sm:$0xff]
    %v302 = vld [vmem:[#allocation2 + $0x8] sm:$0xff]
    %v303 = vld [vmem:[#allocation2 + $0x10] sm:$0xff]
    %v304 = vld [vmem:[#allocation2 + $0x18] sm:$0xff]
    %v305 = vld [vmem:[#allocation2 + $0x20] sm:$0xff]
    %v306 = vld [vmem:[#allocation2 + $0x28] sm:$0xff]
    %v307 = vld [vmem:[#allocation2 + $0x30] sm:$0xff]
    %v308 = vld [vmem:[#allocation2 + $0x38] sm:$0xff]
    %v309 = vld [vmem:[#allocation2 + $0x40] sm:$0xff]
    %v310 = vld [vmem:[#allocation2 + $0x48] sm:$0xff]
    %v311 = vld [vmem:[#allocation2 + $0x50] sm:$0xff]
    %v312 = vld [vmem:[#allocation2 + $0x58] sm:$0xff]
    %v313 = vld [vmem:[#allocation2 + $0x60] sm:$0xff]
    %v314 = vld [vmem:[#allocation2 + $0x68] sm:$0xff]
    %v315 = vld [vmem:[#allocation2 + $0x70] sm:$0xff]
    %v316 = vld [vmem:[#allocation2 + $0x78] sm:$0xff]
    %v317 = vpack.c.bf16 %v302, %v301
    %v318 = vpack.c.bf16 %v304, %v303
    %v319 = vpack.c.bf16 %v306, %v305
    %v320 = vpack.c.bf16 %v308, %v307
    %v321 = vpack.c.bf16 %v310, %v309
    %v322 = vpack.c.bf16 %v312, %v311
    %v323 = vpack.c.bf16 %v314, %v313
    %v324 = vpack.c.bf16 %v316, %v315
    %v333 = vunpack.c.l.b16 %v317
    %v334 = vunpack.c.h.b16 %v317
    %v335 = vunpack.c.l.b16 %v318
    %v336 = vunpack.c.h.b16 %v318
    %v337 = vunpack.c.l.b16 %v319
    %v338 = vunpack.c.h.b16 %v319
    %v339 = vunpack.c.l.b16 %v320
    %v340 = vunpack.c.h.b16 %v320
    %v341 = vunpack.c.l.b16 %v321
    %v342 = vunpack.c.h.b16 %v321
    %v343 = vunpack.c.l.b16 %v322
    %v344 = vunpack.c.h.b16 %v322
    %v345 = vunpack.c.l.b16 %v323
    %v346 = vunpack.c.h.b16 %v323
    %v347 = vunpack.c.l.b16 %v324
    %v348 = vunpack.c.h.b16 %v324
    %v349 = vpack.c.b16 %v333, %v333
    %v350 = vpack.c.b16 %v334, %v334
    %v351 = vpack.c.b16 %v335, %v335
    %v352 = vpack.c.b16 %v336, %v336
    %v353 = vpack.c.b16 %v337, %v337
    %v354 = vpack.c.b16 %v338, %v338
    %v355 = vpack.c.b16 %v339, %v339
    %v356 = vpack.c.b16 %v340, %v340
    %v357 = vpack.c.b16 %v341, %v341
    %v358 = vpack.c.b16 %v342, %v342
    %v359 = vpack.c.b16 %v343, %v343
    %v360 = vpack.c.b16 %v344, %v344
    %v361 = vpack.c.b16 %v345, %v345
    %v362 = vpack.c.b16 %v346, %v346
    %v363 = vpack.c.b16 %v347, %v347
    %v364 = vpack.c.b16 %v348, %v348
    %381 = vst [vmem:[%s2] sm:$0xf] %v349
    %382 = vst [vmem:[%s2 + $0x4] sm:$0xf] %v350
    %383 = vst [vmem:[%s2 + $0x8] sm:$0xf] %v351
    %384 = vst [vmem:[%s2 + $0xc] sm:$0xf] %v352
    %385 = vst [vmem:[%s2 + $0x10] sm:$0xf] %v353
    %386 = vst [vmem:[%s2 + $0x14] sm:$0xf] %v354
    %387 = vst [vmem:[%s2 + $0x18] sm:$0xf] %v355
    %388 = vst [vmem:[%s2 + $0x1c] sm:$0xf] %v356
    %389 = vst [vmem:[%s2 + $0x20] sm:$0xf] %v357
    %390 = vst [vmem:[%s2 + $0x24] sm:$0xf] %v358
    %391 = vst [vmem:[%s2 + $0x28] sm:$0xf] %v359
    %392 = vst [vmem:[%s2 + $0x2c] sm:$0xf] %v360
    %393 = vst [vmem:[%s2 + $0x30] sm:$0xf] %v361
    %394 = vst [vmem:[%s2 + $0x34] sm:$0xf] %v362
    %395 = vst [vmem:[%s2 + $0x38] sm:$0xf] %v363
    %396 = vst [vmem:[%s2 + $0x3c] sm:$0xf] %v364
  $region17: #{_lambda_.6} parent=0 // pred_fallthru
    _
  // Predicated region
  $region18: #{_lambda_.6} parent=0 // pred_check
    _
  $region19: #{_lambda_.6} parent=0 // pred_check_branch
    %398 = sbr.rel (0) target = $region21
  $region20: #{_lambda_.6} parent=0 // pred_region
    _
  $region21: #{_lambda_.6} parent=0 // pred_fallthru
    _
  // Predicated region
  $region22: #{_lambda_.6} parent=0 // pred_check
    _
  $region23: #{_lambda_.6} parent=0 // pred_check_branch
    %400 = sbr.rel (0) target = $region25
  $region24: #{_lambda_.6} parent=0 // pred_region
    _
  $region25: #{_lambda_.6} parent=0 // pred_fallthru
    _

// kernel: _lambda_.7
$region0: #{_lambda_.7}
  #allocation0 [shape = 'u32[]', space=smem, size = 0x4, offset = 0x4, fixed_abs, tag = 'smem constant byte address 0x4 - core index']
  #allocation1 [shape = 'u32[144,128]{1,0:T(1,128)}', space=vmem, size = 0x12000, scoped, tag = 'internal scratch']
  #allocation2 [shape = 'f32[128,128]{1,0:T(8,128)}', space=vmem, size = 0x10000, scoped, tag = 'scratch operand']
  %s0 = inlined_call_operand.vmem [shape: bf16[128,4], index: 0, kind: input, shape index: {}]
  %s1 = inlined_call_operand.vmem [shape: bf16[4,128], index: 1, kind: input, shape index: {}]
  %s2 = inlined_call_operand.vmem [shape: bf16[128,128], index: 2, kind: input, shape index: {}]
  %s3 = inlined_call_operand.vmem [shape: f32[128,128], index: 3, kind: output, shape index: {}]
  %s4 = sld [smem:[#allocation0]]
  $region30: #{_lambda_.7} parent=0
    _
  %s6 = ssub.s32 1, %s4
  %s7 = scalar_select 0, %s6, %s4
  // Predicated region
  $region2: #{_lambda_.7} parent=0 // pred_check
    _
  $region3: #{_lambda_.7} parent=0 // pred_check_branch
    %9 = sbr.rel (0) target = $region5
  $region4: #{_lambda_.7} parent=0 // pred_region
    _
  $region5: #{_lambda_.7} parent=0 // pred_fallthru
    _
  // Predicated region
  $region6: #{_lambda_.7} parent=0 // pred_check
    _
  $region7: #{_lambda_.7} parent=0 // pred_check_branch
    %11 = sbr.rel (0) target = $region9
  $region8: #{_lambda_.7} parent=0 // pred_region
    _
  $region9: #{_lambda_.7} parent=0 // pred_fallthru
    _
  // Predicated region
  $region10: #{_lambda_.7} parent=0 // pred_check
    _
  $region11: #{_lambda_.7} parent=0 // pred_check_branch
    %13 = sbr.rel (0) target = $region13
  $region12: #{_lambda_.7} parent=0 // pred_region
    _
  $region13: #{_lambda_.7} parent=0 // pred_fallthru
    _
  %p15 = scmp.eq.s32.totalorder 0, 0
  // Predicated region
  $region14: #{_lambda_.7} parent=0 // pred_check
    %p16 = pneg %p15
  $region15: #{_lambda_.7} parent=0 // pred_check_branch
    %18 = sbr.rel (%p16) target = $region17
  $region16: #{_lambda_.7} parent=0 // pred_region
    %19 = vst [vmem:[#allocation2] sm:$0xff] 0.0
    %20 = vst [vmem:[#allocation2 + $0x8] sm:$0xff] 0.0
    %21 = vst [vmem:[#allocation2 + $0x10] sm:$0xff] 0.0
    %22 = vst [vmem:[#allocation2 + $0x18] sm:$0xff] 0.0
    %23 = vst [vmem:[#allocation2 + $0x20] sm:$0xff] 0.0
    %24 = vst [vmem:[#allocation2 + $0x28] sm:$0xff] 0.0
    %25 = vst [vmem:[#allocation2 + $0x30] sm:$0xff] 0.0
    %26 = vst [vmem:[#allocation2 + $0x38] sm:$0xff] 0.0
    %27 = vst [vmem:[#allocation2 + $0x40] sm:$0xff] 0.0
    %28 = vst [vmem:[#allocation2 + $0x48] sm:$0xff] 0.0
    %29 = vst [vmem:[#allocation2 + $0x50] sm:$0xff] 0.0
    %30 = vst [vmem:[#allocation2 + $0x58] sm:$0xff] 0.0
    %31 = vst [vmem:[#allocation2 + $0x60] sm:$0xff] 0.0
    %32 = vst [vmem:[#allocation2 + $0x68] sm:$0xff] 0.0
    %33 = vst [vmem:[#allocation2 + $0x70] sm:$0xff] 0.0
    %34 = vst [vmem:[#allocation2 + $0x78] sm:$0xff] 0.0
  $region17: #{_lambda_.7} parent=0 // pred_fallthru
    _
  %v35 = vld [vmem:[#allocation2] sm:$0xff]
  %v36 = vld [vmem:[#allocation2 + $0x8] sm:$0xff]
  %v37 = vld [vmem:[#allocation2 + $0x10] sm:$0xff]
  %v38 = vld [vmem:[#allocation2 + $0x18] sm:$0xff]
  %v39 = vld [vmem:[#allocation2 + $0x20] sm:$0xff]
  %v40 = vld [vmem:[#allocation2 + $0x28] sm:$0xff]
  %v41 = vld [vmem:[#allocation2 + $0x30] sm:$0xff]
  %v42 = vld [vmem:[#allocation2 + $0x38] sm:$0xff]
  %v43 = vld [vmem:[#allocation2 + $0x40] sm:$0xff]
  %v44 = vld [vmem:[#allocation2 + $0x48] sm:$0xff]
  %v45 = vld [vmem:[#allocation2 + $0x50] sm:$0xff]
  %v46 = vld [vmem:[#allocation2 + $0x58] sm:$0xff]
  %v47 = vld [vmem:[#allocation2 + $0x60] sm:$0xff]
  %v48 = vld [vmem:[#allocation2 + $0x68] sm:$0xff]
  %v49 = vld [vmem:[#allocation2 + $0x70] sm:$0xff]
  %v50 = vld [vmem:[#allocation2 + $0x78] sm:$0xff]
  %v51 = vld [vmem:[%s0] sm:$0xf]
  %v52 = vld [vmem:[%s0 + $0x4] sm:$0xf]
  %v53 = vld [vmem:[%s0 + $0x8] sm:$0xf]
  %v54 = vld [vmem:[%s0 + $0xc] sm:$0xf]
  %v55 = vld [vmem:[%s0 + $0x10] sm:$0xf]
  %v56 = vld [vmem:[%s0 + $0x14] sm:$0xf]
  %v57 = vld [vmem:[%s0 + $0x18] sm:$0xf]
  %v58 = vld [vmem:[%s0 + $0x1c] sm:$0xf]
  %v59 = vld [vmem:[%s0 + $0x20] sm:$0xf]
  %v60 = vld [vmem:[%s0 + $0x24] sm:$0xf]
  %v61 = vld [vmem:[%s0 + $0x28] sm:$0xf]
  %v62 = vld [vmem:[%s0 + $0x2c] sm:$0xf]
  %v63 = vld [vmem:[%s0 + $0x30] sm:$0xf]
  %v64 = vld [vmem:[%s0 + $0x34] sm:$0xf]
  %v65 = vld [vmem:[%s0 + $0x38] sm:$0xf]
  %v66 = vld [vmem:[%s0 + $0x3c] sm:$0xf]
  %v67 = vld [vmem:[%s1] sm:$0x3]
  %v84 = vunpack.c.l.b16 %v51
  %v85 = vunpack.c.l.b16 %v52
  %v86 = vunpack.c.l.b16 %v53
  %v87 = vunpack.c.l.b16 %v54
  %v88 = vunpack.c.l.b16 %v55
  %v89 = vunpack.c.l.b16 %v56
  %v90 = vunpack.c.l.b16 %v57
  %v91 = vunpack.c.l.b16 %v58
  %v92 = vunpack.c.l.b16 %v59
  %v93 = vunpack.c.l.b16 %v60
  %v94 = vunpack.c.l.b16 %v61
  %v95 = vunpack.c.l.b16 %v62
  %v96 = vunpack.c.l.b16 %v63
  %v97 = vunpack.c.l.b16 %v64
  %v98 = vunpack.c.l.b16 %v65
  %v99 = vunpack.c.l.b16 %v66
  %v100 = vpack.c.b16 %v85, %v84
  %v101 = vpack.c.b16 %v87, %v86
  %v102 = vpack.c.b16 %v89, %v88
  %v103 = vpack.c.b16 %v91, %v90
  %v104 = vpack.c.b16 %v93, %v92
  %v105 = vpack.c.b16 %v95, %v94
  %v106 = vpack.c.b16 %v97, %v96
  %v107 = vpack.c.b16 %v99, %v98
  %vm108 = vcmask 31744
  %v110 = vsel %vm108, %v100, 0
  %v113 = vsel %vm108, %v101, 0
  %v116 = vsel %vm108, %v102, 0
  %v119 = vsel %vm108, %v103, 0
  %v122 = vsel %vm108, %v104, 0
  %v125 = vsel %vm108, %v105, 0
  %v128 = vsel %vm108, %v106, 0
  %v131 = vsel %vm108, %v107, 0
  %vm133 = vcmask 1041408
  %v135 = vsel %vm133, %v67, 0
  %137 = vmatprep.subr.bf16.mxu0 0
  %138 = vmatpush1.bf16.msra.mxu0 0
  %139 = vmatprep.subr.bf16.mxu0 0
  %140 = vmatpush1.bf16.msra.mxu0 0
  %141 = vmatprep.subr.bf16.mxu0 0
  %142 = vmatpush1.bf16.msra.mxu0 0
  %143 = vmatprep.subr.bf16.mxu0 0
  %144 = vmatpush1.bf16.msra.mxu0 0
  %145 = vmatprep.subr.bf16.mxu0 0
  %146 = vmatpush1.bf16.msra.mxu0 0
  %147 = vmatprep.subr.bf16.mxu0 0
  %148 = vmatpush1.bf16.msra.mxu0 0
  %149 = vmatprep.subr.bf16.mxu0 0
  %150 = vmatpush1.bf16.msra.mxu0 0
  %151 = vmatprep.subr.bf16.mxu0 0
  %152 = vmatpush1.bf16.msra.mxu0 %v135
  %153 = vmatprep.subr.bf16.mxu0 0
  %154 = vmatpush2.bf16.msra.mxu0 0
  %155 = vmatprep.subr.bf16.mxu0 0
  %156 = vmatpush2.bf16.msra.mxu0 0
  %157 = vmatprep.subr.bf16.mxu0 0
  %158 = vmatpush2.bf16.msra.mxu0 0
  %159 = vmatprep.subr.bf16.mxu0 0
  %160 = vmatpush2.bf16.msra.mxu0 0
  %161 = vmatprep.subr.bf16.mxu0 0
  %162 = vmatpush2.bf16.msra.mxu0 0
  %163 = vmatprep.subr.bf16.mxu0 0
  %164 = vmatpush2.bf16.msra.mxu0 0
  %165 = vmatprep.subr.bf16.mxu0 0
  %166 = vmatpush2.bf16.msra.mxu0 0
  %167 = vmatprep.subr.bf16.mxu0 0
  %168 = vmatpush2.bf16.msra.mxu0 0
  %169 = vmatprep.mubr.bf16.mxu0 0
  %170 = vmatmul.mubr.bf16.gmra.mxu0 %v110
  %v171 = vpop.f32.mrf.mxu0
  %v172 = vadd.f32 0.0, %v171
  %v173 = vpop.f32.mrf.mxu0
  %v174 = vpop.f32.mrf.mxu0
  %v175 = vadd.f32 0.0, %v174
  %v176 = vpop.f32.mrf.mxu0
  %177 = vmatprep.mubr.bf16.mxu0 0
  %178 = vmatmul.mubr.bf16.gmra.mxu0 %v113
  %v179 = vpop.f32.mrf.mxu0
  %v180 = vadd.f32 0.0, %v179
  %v181 = vpop.f32.mrf.mxu0
  %v182 = vpop.f32.mrf.mxu0
  %v183 = vadd.f32 0.0, %v182
  %v184 = vpop.f32.mrf.mxu0
  %185 = vmatprep.mubr.bf16.mxu0 0
  %186 = vmatmul.mubr.bf16.gmra.mxu0 %v116
  %v187 = vpop.f32.mrf.mxu0
  %v188 = vadd.f32 0.0, %v187
  %v189 = vpop.f32.mrf.mxu0
  %v190 = vpop.f32.mrf.mxu0
  %v191 = vadd.f32 0.0, %v190
  %v192 = vpop.f32.mrf.mxu0
  %193 = vmatprep.mubr.bf16.mxu0 0
  %194 = vmatmul.mubr.bf16.gmra.mxu0 %v119
  %v195 = vpop.f32.mrf.mxu0
  %v196 = vadd.f32 0.0, %v195
  %v197 = vpop.f32.mrf.mxu0
  %v198 = vpop.f32.mrf.mxu0
  %v199 = vadd.f32 0.0, %v198
  %v200 = vpop.f32.mrf.mxu0
  %201 = vmatprep.mubr.bf16.mxu0 0
  %202 = vmatmul.mubr.bf16.gmra.mxu0 %v122
  %v203 = vpop.f32.mrf.mxu0
  %v204 = vadd.f32 0.0, %v203
  %v205 = vpop.f32.mrf.mxu0
  %v206 = vpop.f32.mrf.mxu0
  %v207 = vadd.f32 0.0, %v206
  %v208 = vpop.f32.mrf.mxu0
  %209 = vmatprep.mubr.bf16.mxu0 0
  %210 = vmatmul.mubr.bf16.gmra.mxu0 %v125
  %v211 = vpop.f32.mrf.mxu0
  %v212 = vadd.f32 0.0, %v211
  %v213 = vpop.f32.mrf.mxu0
  %v214 = vpop.f32.mrf.mxu0
  %v215 = vadd.f32 0.0, %v214
  %v216 = vpop.f32.mrf.mxu0
  %217 = vmatprep.mubr.bf16.mxu0 0
  %218 = vmatmul.mubr.bf16.gmra.mxu0 %v128
  %v219 = vpop.f32.mrf.mxu0
  %v220 = vadd.f32 0.0, %v219
  %v221 = vpop.f32.mrf.mxu0
  %v222 = vpop.f32.mrf.mxu0
  %v223 = vadd.f32 0.0, %v222
  %v224 = vpop.f32.mrf.mxu0
  %225 = vmatprep.mubr.bf16.mxu0 0
  %226 = vmatmul.mubr.bf16.gmra.mxu0 %v131
  %v227 = vpop.f32.mrf.mxu0
  %v228 = vadd.f32 0.0, %v227
  %v229 = vpop.f32.mrf.mxu0
  %v230 = vpop.f32.mrf.mxu0
  %v231 = vadd.f32 0.0, %v230
  %v232 = vpop.f32.mrf.mxu0
  %233 = vdwg.mxu0
  %v234 = vadd.f32 %v35, %v172
  %v235 = vadd.f32 %v36, %v175
  %v236 = vadd.f32 %v37, %v180
  %v237 = vadd.f32 %v38, %v183
  %v238 = vadd.f32 %v39, %v188
  %v239 = vadd.f32 %v40, %v191
  %v240 = vadd.f32 %v41, %v196
  %v241 = vadd.f32 %v42, %v199
  %v242 = vadd.f32 %v43, %v204
  %v243 = vadd.f32 %v44, %v207
  %v244 = vadd.f32 %v45, %v212
  %v245 = vadd.f32 %v46, %v215
  %v246 = vadd.f32 %v47, %v220
  %v247 = vadd.f32 %v48, %v223
  %v248 = vadd.f32 %v49, %v228
  %v249 = vadd.f32 %v50, %v231
  %250 = vst [vmem:[#allocation2] sm:$0xff] %v234
  %251 = vst [vmem:[#allocation2 + $0x8] sm:$0xff] %v235
  %252 = vst [vmem:[#allocation2 + $0x10] sm:$0xff] %v236
  %253 = vst [vmem:[#allocation2 + $0x18] sm:$0xff] %v237
  %254 = vst [vmem:[#allocation2 + $0x20] sm:$0xff] %v238
  %255 = vst [vmem:[#allocation2 + $0x28] sm:$0xff] %v239
  %256 = vst [vmem:[#allocation2 + $0x30] sm:$0xff] %v240
  %257 = vst [vmem:[#allocation2 + $0x38] sm:$0xff] %v241
  %258 = vst [vmem:[#allocation2 + $0x40] sm:$0xff] %v242
  %259 = vst [vmem:[#allocation2 + $0x48] sm:$0xff] %v243
  %260 = vst [vmem:[#allocation2 + $0x50] sm:$0xff] %v244
  %261 = vst [vmem:[#allocation2 + $0x58] sm:$0xff] %v245
  %262 = vst [vmem:[#allocation2 + $0x60] sm:$0xff] %v246
  %263 = vst [vmem:[#allocation2 + $0x68] sm:$0xff] %v247
  %264 = vst [vmem:[#allocation2 + $0x70] sm:$0xff] %v248
  %265 = vst [vmem:[#allocation2 + $0x78] sm:$0xff] %v249
  // Predicated region
  $region18: #{_lambda_.7} parent=0 // pred_check
    %p266 = pneg %p15
  $region19: #{_lambda_.7} parent=0 // pred_check_branch
    %268 = sbr.rel (%p266) target = $region21
  $region20: #{_lambda_.7} parent=0 // pred_region
    %v269 = vld [vmem:[#allocation2] sm:$0xff]
    %v270 = vld [vmem:[#allocation2 + $0x8] sm:$0xff]
    %v271 = vld [vmem:[#allocation2 + $0x10] sm:$0xff]
    %v272 = vld [vmem:[#allocation2 + $0x18] sm:$0xff]
    %v273 = vld [vmem:[#allocation2 + $0x20] sm:$0xff]
    %v274 = vld [vmem:[#allocation2 + $0x28] sm:$0xff]
    %v275 = vld [vmem:[#allocation2 + $0x30] sm:$0xff]
    %v276 = vld [vmem:[#allocation2 + $0x38] sm:$0xff]
    %v277 = vld [vmem:[#allocation2 + $0x40] sm:$0xff]
    %v278 = vld [vmem:[#allocation2 + $0x48] sm:$0xff]
    %v279 = vld [vmem:[#allocation2 + $0x50] sm:$0xff]
    %v280 = vld [vmem:[#allocation2 + $0x58] sm:$0xff]
    %v281 = vld [vmem:[#allocation2 + $0x60] sm:$0xff]
    %v282 = vld [vmem:[#allocation2 + $0x68] sm:$0xff]
    %v283 = vld [vmem:[#allocation2 + $0x70] sm:$0xff]
    %v284 = vld [vmem:[#allocation2 + $0x78] sm:$0xff]
    %v285 = vld [vmem:[%s2] sm:$0xf]
    %v286 = vld [vmem:[%s2 + $0x4] sm:$0xf]
    %v287 = vld [vmem:[%s2 + $0x8] sm:$0xf]
    %v288 = vld [vmem:[%s2 + $0xc] sm:$0xf]
    %v289 = vld [vmem:[%s2 + $0x10] sm:$0xf]
    %v290 = vld [vmem:[%s2 + $0x14] sm:$0xf]
    %v291 = vld [vmem:[%s2 + $0x18] sm:$0xf]
    %v292 = vld [vmem:[%s2 + $0x1c] sm:$0xf]
    %v293 = vld [vmem:[%s2 + $0x20] sm:$0xf]
    %v294 = vld [vmem:[%s2 + $0x24] sm:$0xf]
    %v295 = vld [vmem:[%s2 + $0x28] sm:$0xf]
    %v296 = vld [vmem:[%s2 + $0x2c] sm:$0xf]
    %v297 = vld [vmem:[%s2 + $0x30] sm:$0xf]
    %v298 = vld [vmem:[%s2 + $0x34] sm:$0xf]
    %v299 = vld [vmem:[%s2 + $0x38] sm:$0xf]
    %v300 = vld [vmem:[%s2 + $0x3c] sm:$0xf]
    %v301 = vunpack.c.l.bf16 %v285
    %v302 = vunpack.c.l.bf16 %v286
    %v303 = vunpack.c.l.bf16 %v287
    %v304 = vunpack.c.l.bf16 %v288
    %v305 = vunpack.c.l.bf16 %v289
    %v306 = vunpack.c.l.bf16 %v290
    %v307 = vunpack.c.l.bf16 %v291
    %v308 = vunpack.c.l.bf16 %v292
    %v309 = vunpack.c.l.bf16 %v293
    %v310 = vunpack.c.l.bf16 %v294
    %v311 = vunpack.c.l.bf16 %v295
    %v312 = vunpack.c.l.bf16 %v296
    %v313 = vunpack.c.l.bf16 %v297
    %v314 = vunpack.c.l.bf16 %v298
    %v315 = vunpack.c.l.bf16 %v299
    %v316 = vunpack.c.l.bf16 %v300
    %v317 = vadd.f32 %v269, %v301
    %v318 = vadd.f32 %v270, %v302
    %v319 = vadd.f32 %v271, %v303
    %v320 = vadd.f32 %v272, %v304
    %v321 = vadd.f32 %v273, %v305
    %v322 = vadd.f32 %v274, %v306
    %v323 = vadd.f32 %v275, %v307
    %v324 = vadd.f32 %v276, %v308
    %v325 = vadd.f32 %v277, %v309
    %v326 = vadd.f32 %v278, %v310
    %v327 = vadd.f32 %v279, %v311
    %v328 = vadd.f32 %v280, %v312
    %v329 = vadd.f32 %v281, %v313
    %v330 = vadd.f32 %v282, %v314
    %v331 = vadd.f32 %v283, %v315
    %v332 = vadd.f32 %v284, %v316
    %v333 = vmax.f32 %v317, 0.0
    %v334 = vmax.f32 %v318, 0.0
    %v335 = vmax.f32 %v319, 0.0
    %v336 = vmax.f32 %v320, 0.0
    %v337 = vmax.f32 %v321, 0.0
    %v338 = vmax.f32 %v322, 0.0
    %v339 = vmax.f32 %v323, 0.0
    %v340 = vmax.f32 %v324, 0.0
    %v341 = vmax.f32 %v325, 0.0
    %v342 = vmax.f32 %v326, 0.0
    %v343 = vmax.f32 %v327, 0.0
    %v344 = vmax.f32 %v328, 0.0
    %v345 = vmax.f32 %v329, 0.0
    %v346 = vmax.f32 %v330, 0.0
    %v347 = vmax.f32 %v331, 0.0
    %v348 = vmax.f32 %v332, 0.0
    %349 = vst [vmem:[%s3] sm:$0xff] %v333
    %350 = vst [vmem:[%s3 + $0x8] sm:$0xff] %v334
    %351 = vst [vmem:[%s3 + $0x10] sm:$0xff] %v335
    %352 = vst [vmem:[%s3 + $0x18] sm:$0xff] %v336
    %353 = vst [vmem:[%s3 + $0x20] sm:$0xff] %v337
    %354 = vst [vmem:[%s3 + $0x28] sm:$0xff] %v338
    %355 = vst [vmem:[%s3 + $0x30] sm:$0xff] %v339
    %356 = vst [vmem:[%s3 + $0x38] sm:$0xff] %v340
    %357 = vst [vmem:[%s3 + $0x40] sm:$0xff] %v341
    %358 = vst [vmem:[%s3 + $0x48] sm:$0xff] %v342
    %359 = vst [vmem:[%s3 + $0x50] sm:$0xff] %v343
    %360 = vst [vmem:[%s3 + $0x58] sm:$0xff] %v344
    %361 = vst [vmem:[%s3 + $0x60] sm:$0xff] %v345
    %362 = vst [vmem:[%s3 + $0x68] sm:$0xff] %v346
    %363 = vst [vmem:[%s3 + $0x70] sm:$0xff] %v347
    %364 = vst [vmem:[%s3 + $0x78] sm:$0xff] %v348
  $region21: #{_lambda_.7} parent=0 // pred_fallthru
    _
  // Predicated region
  $region22: #{_lambda_.7} parent=0 // pred_check
    _
  $region23: #{_lambda_.7} parent=0 // pred_check_branch
    %366 = sbr.rel (0) target = $region25
  $region24: #{_lambda_.7} parent=0 // pred_region
    _
  $region25: #{_lambda_.7} parent=0 // pred_fallthru
    _
  // Predicated region
  $region26: #{_lambda_.7} parent=0 // pred_check
    _
  $region27: #{_lambda_.7} parent=0 // pred_check_branch
    %368 = sbr.rel (0) target = $region29
  $region28: #{_lambda_.7} parent=0 // pred_region
    _
  $region29: #{_lambda_.7} parent=0 // pred_fallthru
    _

// kernel: _lambda_.5
$region0: #{_lambda_.5}
  #allocation0 [shape = 'u32[]', space=smem, size = 0x4, offset = 0x4, fixed_abs, tag = 'smem constant byte address 0x4 - core index']
  #allocation1 [shape = 'u32[144,128]{1,0:T(1,128)}', space=vmem, size = 0x12000, scoped, tag = 'internal scratch']
  %s0 = inlined_call_operand.vmem [shape: f32[16,2,8,2,4], index: 0, kind: input, shape index: {}]
  %s1 = inlined_call_operand.vmem [shape: bf16[16,8,4], index: 1, kind: output, shape index: {}]
  %s2 = sld [smem:[#allocation0]]
  $region14: #{_lambda_.5} parent=0
    _
  %s4 = ssub.s32 1, %s2
  %s5 = scalar_select 0, %s4, %s2
  // Predicated region
  $region2: #{_lambda_.5} parent=0 // pred_check
    _
  $region3: #{_lambda_.5} parent=0 // pred_check_branch
    %7 = sbr.rel (0) target = $region5
  $region4: #{_lambda_.5} parent=0 // pred_region
    _
  $region5: #{_lambda_.5} parent=0 // pred_fallthru
    _
  %v8 = vld [vmem:[%s0] sm:$0x3]
  %v9 = vld [vmem:[%s0 + $0x2] sm:$0x3]
  %v10 = vld [vmem:[%s0 + $0x4] sm:$0x3]
  %v11 = vld [vmem:[%s0 + $0x6] sm:$0x3]
  %v12 = vld [vmem:[%s0 + $0x8] sm:$0x3]
  %v13 = vld [vmem:[%s0 + $0xa] sm:$0x3]
  %v14 = vld [vmem:[%s0 + $0xc] sm:$0x3]
  %v15 = vld [vmem:[%s0 + $0xe] sm:$0x3]
  %v16 = vld [vmem:[%s0 + $0x10] sm:$0x3]
  %v17 = vld [vmem:[%s0 + $0x12] sm:$0x3]
  %v18 = vld [vmem:[%s0 + $0x14] sm:$0x3]
  %v19 = vld [vmem:[%s0 + $0x16] sm:$0x3]
  %v20 = vld [vmem:[%s0 + $0x18] sm:$0x3]
  %v21 = vld [vmem:[%s0 + $0x1a] sm:$0x3]
  %v22 = vld [vmem:[%s0 + $0x1c] sm:$0x3]
  %v23 = vld [vmem:[%s0 + $0x1e] sm:$0x3]
  %v24 = vld [vmem:[%s0 + $0x20] sm:$0x3]
  %v25 = vld [vmem:[%s0 + $0x22] sm:$0x3]
  %v26 = vld [vmem:[%s0 + $0x24] sm:$0x3]
  %v27 = vld [vmem:[%s0 + $0x26] sm:$0x3]
  %v28 = vld [vmem:[%s0 + $0x28] sm:$0x3]
  %v29 = vld [vmem:[%s0 + $0x2a] sm:$0x3]
  %v30 = vld [vmem:[%s0 + $0x2c] sm:$0x3]
  %v31 = vld [vmem:[%s0 + $0x2e] sm:$0x3]
  %v32 = vld [vmem:[%s0 + $0x30] sm:$0x3]
  %v33 = vld [vmem:[%s0 + $0x32] sm:$0x3]
  %v34 = vld [vmem:[%s0 + $0x34] sm:$0x3]
  %v35 = vld [vmem:[%s0 + $0x36] sm:$0x3]
  %v36 = vld [vmem:[%s0 + $0x38] sm:$0x3]
  %v37 = vld [vmem:[%s0 + $0x3a] sm:$0x3]
  %v38 = vld [vmem:[%s0 + $0x3c] sm:$0x3]
  %v39 = vld [vmem:[%s0 + $0x3e] sm:$0x3]
  %v40 = vld [vmem:[%s0 + $0x40] sm:$0x3]
  %v41 = vld [vmem:[%s0 + $0x42] sm:$0x3]
  %v42 = vld [vmem:[%s0 + $0x44] sm:$0x3]
  %v43 = vld [vmem:[%s0 + $0x46] sm:$0x3]
  %v44 = vld [vmem:[%s0 + $0x48] sm:$0x3]
  %v45 = vld [vmem:[%s0 + $0x4a] sm:$0x3]
  %v46 = vld [vmem:[%s0 + $0x4c] sm:$0x3]
  %v47 = vld [vmem:[%s0 + $0x4e] sm:$0x3]
  %v48 = vld [vmem:[%s0 + $0x50] sm:$0x3]
  %v49 = vld [vmem:[%s0 + $0x52] sm:$0x3]
  %v50 = vld [vmem:[%s0 + $0x54] sm:$0x3]
  %v51 = vld [vmem:[%s0 + $0x56] sm:$0x3]
  %v52 = vld [vmem:[%s0 + $0x58] sm:$0x3]
  %v53 = vld [vmem:[%s0 + $0x5a] sm:$0x3]
  %v54 = vld [vmem:[%s0 + $0x5c] sm:$0x3]
  %v55 = vld [vmem:[%s0 + $0x5e] sm:$0x3]
  %v56 = vld [vmem:[%s0 + $0x60] sm:$0x3]
  %v57 = vld [vmem:[%s0 + $0x62] sm:$0x3]
  %v58 = vld [vmem:[%s0 + $0x64] sm:$0x3]
  %v59 = vld [vmem:[%s0 + $0x66] sm:$0x3]
  %v60 = vld [vmem:[%s0 + $0x68] sm:$0x3]
  %v61 = vld [vmem:[%s0 + $0x6a] sm:$0x3]
  %v62 = vld [vmem:[%s0 + $0x6c] sm:$0x3]
  %v63 = vld [vmem:[%s0 + $0x6e] sm:$0x3]
  %v64 = vld [vmem:[%s0 + $0x70] sm:$0x3]
  %v65 = vld [vmem:[%s0 + $0x72] sm:$0x3]
  %v66 = vld [vmem:[%s0 + $0x74] sm:$0x3]
  %v67 = vld [vmem:[%s0 + $0x76] sm:$0x3]
  %v68 = vld [vmem:[%s0 + $0x78] sm:$0x3]
  %v69 = vld [vmem:[%s0 + $0x7a] sm:$0x3]
  %v70 = vld [vmem:[%s0 + $0x7c] sm:$0x3]
  %v71 = vld [vmem:[%s0 + $0x7e] sm:$0x3]
  %v72 = vld [vmem:[%s0 + $0x80] sm:$0x3]
  %v73 = vld [vmem:[%s0 + $0x82] sm:$0x3]
  %v74 = vld [vmem:[%s0 + $0x84] sm:$0x3]
  %v75 = vld [vmem:[%s0 + $0x86] sm:$0x3]
  %v76 = vld [vmem:[%s0 + $0x88] sm:$0x3]
  %v77 = vld [vmem:[%s0 + $0x8a] sm:$0x3]
  %v78 = vld [vmem:[%s0 + $0x8c] sm:$0x3]
  %v79 = vld [vmem:[%s0 + $0x8e] sm:$0x3]
  %v80 = vld [vmem:[%s0 + $0x90] sm:$0x3]
  %v81 = vld [vmem:[%s0 + $0x92] sm:$0x3]
  %v82 = vld [vmem:[%s0 + $0x94] sm:$0x3]
  %v83 = vld [vmem:[%s0 + $0x96] sm:$0x3]
  %v84 = vld [vmem:[%s0 + $0x98] sm:$0x3]
  %v85 = vld [vmem:[%s0 + $0x9a] sm:$0x3]
  %v86 = vld [vmem:[%s0 + $0x9c] sm:$0x3]
  %v87 = vld [vmem:[%s0 + $0x9e] sm:$0x3]
  %v88 = vld [vmem:[%s0 + $0xa0] sm:$0x3]
  %v89 = vld [vmem:[%s0 + $0xa2] sm:$0x3]
  %v90 = vld [vmem:[%s0 + $0xa4] sm:$0x3]
  %v91 = vld [vmem:[%s0 + $0xa6] sm:$0x3]
  %v92 = vld [vmem:[%s0 + $0xa8] sm:$0x3]
  %v93 = vld [vmem:[%s0 + $0xaa] sm:$0x3]
  %v94 = vld [vmem:[%s0 + $0xac] sm:$0x3]
  %v95 = vld [vmem:[%s0 + $0xae] sm:$0x3]
  %v96 = vld [vmem:[%s0 + $0xb0] sm:$0x3]
  %v97 = vld [vmem:[%s0 + $0xb2] sm:$0x3]
  %v98 = vld [vmem:[%s0 + $0xb4] sm:$0x3]
  %v99 = vld [vmem:[%s0 + $0xb6] sm:$0x3]
  %v100 = vld [vmem:[%s0 + $0xb8] sm:$0x3]
  %v101 = vld [vmem:[%s0 + $0xba] sm:$0x3]
  %v102 = vld [vmem:[%s0 + $0xbc] sm:$0x3]
  %v103 = vld [vmem:[%s0 + $0xbe] sm:$0x3]
  %v104 = vld [vmem:[%s0 + $0xc0] sm:$0x3]
  %v105 = vld [vmem:[%s0 + $0xc2] sm:$0x3]
  %v106 = vld [vmem:[%s0 + $0xc4] sm:$0x3]
  %v107 = vld [vmem:[%s0 + $0xc6] sm:$0x3]
  %v108 = vld [vmem:[%s0 + $0xc8] sm:$0x3]
  %v109 = vld [vmem:[%s0 + $0xca] sm:$0x3]
  %v110 = vld [vmem:[%s0 + $0xcc] sm:$0x3]
  %v111 = vld [vmem:[%s0 + $0xce] sm:$0x3]
  %v112 = vld [vmem:[%s0 + $0xd0] sm:$0x3]
  %v113 = vld [vmem:[%s0 + $0xd2] sm:$0x3]
  %v114 = vld [vmem:[%s0 + $0xd4] sm:$0x3]
  %v115 = vld [vmem:[%s0 + $0xd6] sm:$0x3]
  %v116 = vld [vmem:[%s0 + $0xd8] sm:$0x3]
  %v117 = vld [vmem:[%s0 + $0xda] sm:$0x3]
  %v118 = vld [vmem:[%s0 + $0xdc] sm:$0x3]
  %v119 = vld [vmem:[%s0 + $0xde] sm:$0x3]
  %v120 = vld [vmem:[%s0 + $0xe0] sm:$0x3]
  %v121 = vld [vmem:[%s0 + $0xe2] sm:$0x3]
  %v122 = vld [vmem:[%s0 + $0xe4] sm:$0x3]
  %v123 = vld [vmem:[%s0 + $0xe6] sm:$0x3]
  %v124 = vld [vmem:[%s0 + $0xe8] sm:$0x3]
  %v125 = vld [vmem:[%s0 + $0xea] sm:$0x3]
  %v126 = vld [vmem:[%s0 + $0xec] sm:$0x3]
  %v127 = vld [vmem:[%s0 + $0xee] sm:$0x3]
  %v128 = vld [vmem:[%s0 + $0xf0] sm:$0x3]
  %v129 = vld [vmem:[%s0 + $0xf2] sm:$0x3]
  %v130 = vld [vmem:[%s0 + $0xf4] sm:$0x3]
  %v131 = vld [vmem:[%s0 + $0xf6] sm:$0x3]
  %v132 = vld [vmem:[%s0 + $0xf8] sm:$0x3]
  %v133 = vld [vmem:[%s0 + $0xfa] sm:$0x3]
  %v134 = vld [vmem:[%s0 + $0xfc] sm:$0x3]
  %v135 = vld [vmem:[%s0 + $0xfe] sm:$0x3]
  %v136 = vld [vmem:[%s0 + $0x100] sm:$0x3]
  %v137 = vld [vmem:[%s0 + $0x102] sm:$0x3]
  %v138 = vld [vmem:[%s0 + $0x104] sm:$0x3]
  %v139 = vld [vmem:[%s0 + $0x106] sm:$0x3]
  %v140 = vld [vmem:[%s0 + $0x108] sm:$0x3]
  %v141 = vld [vmem:[%s0 + $0x10a] sm:$0x3]
  %v142 = vld [vmem:[%s0 + $0x10c] sm:$0x3]
  %v143 = vld [vmem:[%s0 + $0x10e] sm:$0x3]
  %v144 = vld [vmem:[%s0 + $0x110] sm:$0x3]
  %v145 = vld [vmem:[%s0 + $0x112] sm:$0x3]
  %v146 = vld [vmem:[%s0 + $0x114] sm:$0x3]
  %v147 = vld [vmem:[%s0 + $0x116] sm:$0x3]
  %v148 = vld [vmem:[%s0 + $0x118] sm:$0x3]
  %v149 = vld [vmem:[%s0 + $0x11a] sm:$0x3]
  %v150 = vld [vmem:[%s0 + $0x11c] sm:$0x3]
  %v151 = vld [vmem:[%s0 + $0x11e] sm:$0x3]
  %v152 = vld [vmem:[%s0 + $0x120] sm:$0x3]
  %v153 = vld [vmem:[%s0 + $0x122] sm:$0x3]
  %v154 = vld [vmem:[%s0 + $0x124] sm:$0x3]
  %v155 = vld [vmem:[%s0 + $0x126] sm:$0x3]
  %v156 = vld [vmem:[%s0 + $0x128] sm:$0x3]
  %v157 = vld [vmem:[%s0 + $0x12a] sm:$0x3]
  %v158 = vld [vmem:[%s0 + $0x12c] sm:$0x3]
  %v159 = vld [vmem:[%s0 + $0x12e] sm:$0x3]
  %v160 = vld [vmem:[%s0 + $0x130] sm:$0x3]
  %v161 = vld [vmem:[%s0 + $0x132] sm:$0x3]
  %v162 = vld [vmem:[%s0 + $0x134] sm:$0x3]
  %v163 = vld [vmem:[%s0 + $0x136] sm:$0x3]
  %v164 = vld [vmem:[%s0 + $0x138] sm:$0x3]
  %v165 = vld [vmem:[%s0 + $0x13a] sm:$0x3]
  %v166 = vld [vmem:[%s0 + $0x13c] sm:$0x3]
  %v167 = vld [vmem:[%s0 + $0x13e] sm:$0x3]
  %v168 = vld [vmem:[%s0 + $0x140] sm:$0x3]
  %v169 = vld [vmem:[%s0 + $0x142] sm:$0x3]
  %v170 = vld [vmem:[%s0 + $0x144] sm:$0x3]
  %v171 = vld [vmem:[%s0 + $0x146] sm:$0x3]
  %v172 = vld [vmem:[%s0 + $0x148] sm:$0x3]
  %v173 = vld [vmem:[%s0 + $0x14a] sm:$0x3]
  %v174 = vld [vmem:[%s0 + $0x14c] sm:$0x3]
  %v175 = vld [vmem:[%s0 + $0x14e] sm:$0x3]
  %v176 = vld [vmem:[%s0 + $0x150] sm:$0x3]
  %v177 = vld [vmem:[%s0 + $0x152] sm:$0x3]
  %v178 = vld [vmem:[%s0 + $0x154] sm:$0x3]
  %v179 = vld [vmem:[%s0 + $0x156] sm:$0x3]
  %v180 = vld [vmem:[%s0 + $0x158] sm:$0x3]
  %v181 = vld [vmem:[%s0 + $0x15a] sm:$0x3]
  %v182 = vld [vmem:[%s0 + $0x15c] sm:$0x3]
  %v183 = vld [vmem:[%s0 + $0x15e] sm:$0x3]
  %v184 = vld [vmem:[%s0 + $0x160] sm:$0x3]
  %v185 = vld [vmem:[%s0 + $0x162] sm:$0x3]
  %v186 = vld [vmem:[%s0 + $0x164] sm:$0x3]
  %v187 = vld [vmem:[%s0 + $0x166] sm:$0x3]
  %v188 = vld [vmem:[%s0 + $0x168] sm:$0x3]
  %v189 = vld [vmem:[%s0 + $0x16a] sm:$0x3]
  %v190 = vld [vmem:[%s0 + $0x16c] sm:$0x3]
  %v191 = vld [vmem:[%s0 + $0x16e] sm:$0x3]
  %v192 = vld [vmem:[%s0 + $0x170] sm:$0x3]
  %v193 = vld [vmem:[%s0 + $0x172] sm:$0x3]
  %v194 = vld [vmem:[%s0 + $0x174] sm:$0x3]
  %v195 = vld [vmem:[%s0 + $0x176] sm:$0x3]
  %v196 = vld [vmem:[%s0 + $0x178] sm:$0x3]
  %v197 = vld [vmem:[%s0 + $0x17a] sm:$0x3]
  %v198 = vld [vmem:[%s0 + $0x17c] sm:$0x3]
  %v199 = vld [vmem:[%s0 + $0x17e] sm:$0x3]
  %v200 = vld [vmem:[%s0 + $0x180] sm:$0x3]
  %v201 = vld [vmem:[%s0 + $0x182] sm:$0x3]
  %v202 = vld [vmem:[%s0 + $0x184] sm:$0x3]
  %v203 = vld [vmem:[%s0 + $0x186] sm:$0x3]
  %v204 = vld [vmem:[%s0 + $0x188] sm:$0x3]
  %v205 = vld [vmem:[%s0 + $0x18a] sm:$0x3]
  %v206 = vld [vmem:[%s0 + $0x18c] sm:$0x3]
  %v207 = vld [vmem:[%s0 + $0x18e] sm:$0x3]
  %v208 = vld [vmem:[%s0 + $0x190] sm:$0x3]
  %v209 = vld [vmem:[%s0 + $0x192] sm:$0x3]
  %v210 = vld [vmem:[%s0 + $0x194] sm:$0x3]
  %v211 = vld [vmem:[%s0 + $0x196] sm:$0x3]
  %v212 = vld [vmem:[%s0 + $0x198] sm:$0x3]
  %v213 = vld [vmem:[%s0 + $0x19a] sm:$0x3]
  %v214 = vld [vmem:[%s0 + $0x19c] sm:$0x3]
  %v215 = vld [vmem:[%s0 + $0x19e] sm:$0x3]
  %v216 = vld [vmem:[%s0 + $0x1a0] sm:$0x3]
  %v217 = vld [vmem:[%s0 + $0x1a2] sm:$0x3]
  %v218 = vld [vmem:[%s0 + $0x1a4] sm:$0x3]
  %v219 = vld [vmem:[%s0 + $0x1a6] sm:$0x3]
  %v220 = vld [vmem:[%s0 + $0x1a8] sm:$0x3]
  %v221 = vld [vmem:[%s0 + $0x1aa] sm:$0x3]
  %v222 = vld [vmem:[%s0 + $0x1ac] sm:$0x3]
  %v223 = vld [vmem:[%s0 + $0x1ae] sm:$0x3]
  %v224 = vld [vmem:[%s0 + $0x1b0] sm:$0x3]
  %v225 = vld [vmem:[%s0 + $0x1b2] sm:$0x3]
  %v226 = vld [vmem:[%s0 + $0x1b4] sm:$0x3]
  %v227 = vld [vmem:[%s0 + $0x1b6] sm:$0x3]
  %v228 = vld [vmem:[%s0 + $0x1b8] sm:$0x3]
  %v229 = vld [vmem:[%s0 + $0x1ba] sm:$0x3]
  %v230 = vld [vmem:[%s0 + $0x1bc] sm:$0x3]
  %v231 = vld [vmem:[%s0 + $0x1be] sm:$0x3]
  %v232 = vld [vmem:[%s0 + $0x1c0] sm:$0x3]
  %v233 = vld [vmem:[%s0 + $0x1c2] sm:$0x3]
  %v234 = vld [vmem:[%s0 + $0x1c4] sm:$0x3]
  %v235 = vld [vmem:[%s0 + $0x1c6] sm:$0x3]
  %v236 = vld [vmem:[%s0 + $0x1c8] sm:$0x3]
  %v237 = vld [vmem:[%s0 + $0x1ca] sm:$0x3]
  %v238 = vld [vmem:[%s0 + $0x1cc] sm:$0x3]
  %v239 = vld [vmem:[%s0 + $0x1ce] sm:$0x3]
  %v240 = vld [vmem:[%s0 + $0x1d0] sm:$0x3]
  %v241 = vld [vmem:[%s0 + $0x1d2] sm:$0x3]
  %v242 = vld [vmem:[%s0 + $0x1d4] sm:$0x3]
  %v243 = vld [vmem:[%s0 + $0x1d6] sm:$0x3]
  %v244 = vld [vmem:[%s0 + $0x1d8] sm:$0x3]
  %v245 = vld [vmem:[%s0 + $0x1da] sm:$0x3]
  %v246 = vld [vmem:[%s0 + $0x1dc] sm:$0x3]
  %v247 = vld [vmem:[%s0 + $0x1de] sm:$0x3]
  %v248 = vld [vmem:[%s0 + $0x1e0] sm:$0x3]
  %v249 = vld [vmem:[%s0 + $0x1e2] sm:$0x3]
  %v250 = vld [vmem:[%s0 + $0x1e4] sm:$0x3]
  %v251 = vld [vmem:[%s0 + $0x1e6] sm:$0x3]
  %v252 = vld [vmem:[%s0 + $0x1e8] sm:$0x3]
  %v253 = vld [vmem:[%s0 + $0x1ea] sm:$0x3]
  %v254 = vld [vmem:[%s0 + $0x1ec] sm:$0x3]
  %v255 = vld [vmem:[%s0 + $0x1ee] sm:$0x3]
  %v256 = vld [vmem:[%s0 + $0x1f0] sm:$0x3]
  %v257 = vld [vmem:[%s0 + $0x1f2] sm:$0x3]
  %v258 = vld [vmem:[%s0 + $0x1f4] sm:$0x3]
  %v259 = vld [vmem:[%s0 + $0x1f6] sm:$0x3]
  %v260 = vld [vmem:[%s0 + $0x1f8] sm:$0x3]
  %v261 = vld [vmem:[%s0 + $0x1fa] sm:$0x3]
  %v262 = vld [vmem:[%s0 + $0x1fc] sm:$0x3]
  %v263 = vld [vmem:[%s0 + $0x1fe] sm:$0x3]
  %v392 = vrot.slane %v8, 1
  %v393 = vrot.slane %v9, 1
  %v394 = vrot.slane %v10, 1
  %v395 = vrot.slane %v11, 1
  %v396 = vrot.slane %v12, 1
  %v397 = vrot.slane %v13, 1
  %v398 = vrot.slane %v14, 1
  %v399 = vrot.slane %v15, 1
  %v400 = vrot.slane %v24, 1
  %v401 = vrot.slane %v25, 1
  %v402 = vrot.slane %v26, 1
  %v403 = vrot.slane %v27, 1
  %v404 = vrot.slane %v28, 1
  %v405 = vrot.slane %v29, 1
  %v406 = vrot.slane %v30, 1
  %v407 = vrot.slane %v31, 1
  %v408 = vrot.slane %v40, 1
  %v409 = vrot.slane %v41, 1
  %v410 = vrot.slane %v42, 1
  %v411 = vrot.slane %v43, 1
  %v412 = vrot.slane %v44, 1
  %v413 = vrot.slane %v45, 1
  %v414 = vrot.slane %v46, 1
  %v415 = vrot.slane %v47, 1
  %v416 = vrot.slane %v56, 1
  %v417 = vrot.slane %v57, 1
  %v418 = vrot.slane %v58, 1
  %v419 = vrot.slane %v59, 1
  %v420 = vrot.slane %v60, 1
  %v421 = vrot.slane %v61, 1
  %v422 = vrot.slane %v62, 1
  %v423 = vrot.slane %v63, 1
  %v424 = vrot.slane %v72, 1
  %v425 = vrot.slane %v73, 1
  %v426 = vrot.slane %v74, 1
  %v427 = vrot.slane %v75, 1
  %v428 = vrot.slane %v76, 1
  %v429 = vrot.slane %v77, 1
  %v430 = vrot.slane %v78, 1
  %v431 = vrot.slane %v79, 1
  %v432 = vrot.slane %v88, 1
  %v433 = vrot.slane %v89, 1
  %v434 = vrot.slane %v90, 1
  %v435 = vrot.slane %v91, 1
  %v436 = vrot.slane %v92, 1
  %v437 = vrot.slane %v93, 1
  %v438 = vrot.slane %v94, 1
  %v439 = vrot.slane %v95, 1
  %v440 = vrot.slane %v104, 1
  %v441 = vrot.slane %v105, 1
  %v442 = vrot.slane %v106, 1
  %v443 = vrot.slane %v107, 1
  %v444 = vrot.slane %v108, 1
  %v445 = vrot.slane %v109, 1
  %v446 = vrot.slane %v110, 1
  %v447 = vrot.slane %v111, 1
  %v448 = vrot.slane %v120, 1
  %v449 = vrot.slane %v121, 1
  %v450 = vrot.slane %v122, 1
  %v451 = vrot.slane %v123, 1
  %v452 = vrot.slane %v124, 1
  %v453 = vrot.slane %v125, 1
  %v454 = vrot.slane %v126, 1
  %v455 = vrot.slane %v127, 1
  %v456 = vrot.slane %v136, 1
  %v457 = vrot.slane %v137, 1
  %v458 = vrot.slane %v138, 1
  %v459 = vrot.slane %v139, 1
  %v460 = vrot.slane %v140, 1
  %v461 = vrot.slane %v141, 1
  %v462 = vrot.slane %v142, 1
  %v463 = vrot.slane %v143, 1
  %v464 = vrot.slane %v152, 1
  %v465 = vrot.slane %v153, 1
  %v466 = vrot.slane %v154, 1
  %v467 = vrot.slane %v155, 1
  %v468 = vrot.slane %v156, 1
  %v469 = vrot.slane %v157, 1
  %v470 = vrot.slane %v158, 1
  %v471 = vrot.slane %v159, 1
  %v472 = vrot.slane %v168, 1
  %v473 = vrot.slane %v169, 1
  %v474 = vrot.slane %v170, 1
  %v475 = vrot.slane %v171, 1
  %v476 = vrot.slane %v172, 1
  %v477 = vrot.slane %v173, 1
  %v478 = vrot.slane %v174, 1
  %v479 = vrot.slane %v175, 1
  %v480 = vrot.slane %v184, 1
  %v481 = vrot.slane %v185, 1
  %v482 = vrot.slane %v186, 1
  %v483 = vrot.slane %v187, 1
  %v484 = vrot.slane %v188, 1
  %v485 = vrot.slane %v189, 1
  %v486 = vrot.slane %v190, 1
  %v487 = vrot.slane %v191, 1
  %v488 = vrot.slane %v200, 1
  %v489 = vrot.slane %v201, 1
  %v490 = vrot.slane %v202, 1
  %v491 = vrot.slane %v203, 1
  %v492 = vrot.slane %v204, 1
  %v493 = vrot.slane %v205, 1
  %v494 = vrot.slane %v206, 1
  %v495 = vrot.slane %v207, 1
  %v496 = vrot.slane %v216, 1
  %v497 = vrot.slane %v217, 1
  %v498 = vrot.slane %v218, 1
  %v499 = vrot.slane %v219, 1
  %v500 = vrot.slane %v220, 1
  %v501 = vrot.slane %v221, 1
  %v502 = vrot.slane %v222, 1
  %v503 = vrot.slane %v223, 1
  %v504 = vrot.slane %v232, 1
  %v505 = vrot.slane %v233, 1
  %v506 = vrot.slane %v234, 1
  %v507 = vrot.slane %v235, 1
  %v508 = vrot.slane %v236, 1
  %v509 = vrot.slane %v237, 1
  %v510 = vrot.slane %v238, 1
  %v511 = vrot.slane %v239, 1
  %v512 = vrot.slane %v248, 1
  %v513 = vrot.slane %v249, 1
  %v514 = vrot.slane %v250, 1
  %v515 = vrot.slane %v251, 1
  %v516 = vrot.slane %v252, 1
  %v517 = vrot.slane %v253, 1
  %v518 = vrot.slane %v254, 1
  %v519 = vrot.slane %v255, 1
  %v648 = vadd.f32 %v8, %v392
  %v649 = vadd.f32 %v9, %v393
  %v650 = vadd.f32 %v10, %v394
  %v651 = vadd.f32 %v11, %v395
  %v652 = vadd.f32 %v12, %v396
  %v653 = vadd.f32 %v13, %v397
  %v654 = vadd.f32 %v14, %v398
  %v655 = vadd.f32 %v15, %v399
  %v656 = vadd.f32 %v24, %v400
  %v657 = vadd.f32 %v25, %v401
  %v658 = vadd.f32 %v26, %v402
  %v659 = vadd.f32 %v27, %v403
  %v660 = vadd.f32 %v28, %v404
  %v661 = vadd.f32 %v29, %v405
  %v662 = vadd.f32 %v30, %v406
  %v663 = vadd.f32 %v31, %v407
  %v664 = vadd.f32 %v40, %v408
  %v665 = vadd.f32 %v41, %v409
  %v666 = vadd.f32 %v42, %v410
  %v667 = vadd.f32 %v43, %v411
  %v668 = vadd.f32 %v44, %v412
  %v669 = vadd.f32 %v45, %v413
  %v670 = vadd.f32 %v46, %v414
  %v671 = vadd.f32 %v47, %v415
  %v672 = vadd.f32 %v56, %v416
  %v673 = vadd.f32 %v57, %v417
  %v674 = vadd.f32 %v58, %v418
  %v675 = vadd.f32 %v59, %v419
  %v676 = vadd.f32 %v60, %v420
  %v677 = vadd.f32 %v61, %v421
  %v678 = vadd.f32 %v62, %v422
  %v679 = vadd.f32 %v63, %v423
  %v680 = vadd.f32 %v72, %v424
  %v681 = vadd.f32 %v73, %v425
  %v682 = vadd.f32 %v74, %v426
  %v683 = vadd.f32 %v75, %v427
  %v684 = vadd.f32 %v76, %v428
  %v685 = vadd.f32 %v77, %v429
  %v686 = vadd.f32 %v78, %v430
  %v687 = vadd.f32 %v79, %v431
  %v688 = vadd.f32 %v88, %v432
  %v689 = vadd.f32 %v89, %v433
  %v690 = vadd.f32 %v90, %v434
  %v691 = vadd.f32 %v91, %v435
  %v692 = vadd.f32 %v92, %v436
  %v693 = vadd.f32 %v93, %v437
  %v694 = vadd.f32 %v94, %v438
  %v695 = vadd.f32 %v95, %v439
  %v696 = vadd.f32 %v104, %v440
  %v697 = vadd.f32 %v105, %v441
  %v698 = vadd.f32 %v106, %v442
  %v699 = vadd.f32 %v107, %v443
  %v700 = vadd.f32 %v108, %v444
  %v701 = vadd.f32 %v109, %v445
  %v702 = vadd.f32 %v110, %v446
  %v703 = vadd.f32 %v111, %v447
  %v704 = vadd.f32 %v120, %v448
  %v705 = vadd.f32 %v121, %v449
  %v706 = vadd.f32 %v122, %v450
  %v707 = vadd.f32 %v123, %v451
  %v708 = vadd.f32 %v124, %v452
  %v709 = vadd.f32 %v125, %v453
  %v710 = vadd.f32 %v126, %v454
  %v711 = vadd.f32 %v127, %v455
  %v712 = vadd.f32 %v136, %v456
  %v713 = vadd.f32 %v137, %v457
  %v714 = vadd.f32 %v138, %v458
  %v715 = vadd.f32 %v139, %v459
  %v716 = vadd.f32 %v140, %v460
  %v717 = vadd.f32 %v141, %v461
  %v718 = vadd.f32 %v142, %v462
  %v719 = vadd.f32 %v143, %v463
  %v720 = vadd.f32 %v152, %v464
  %v721 = vadd.f32 %v153, %v465
  %v722 = vadd.f32 %v154, %v466
  %v723 = vadd.f32 %v155, %v467
  %v724 = vadd.f32 %v156, %v468
  %v725 = vadd.f32 %v157, %v469
  %v726 = vadd.f32 %v158, %v470
  %v727 = vadd.f32 %v159, %v471
  %v728 = vadd.f32 %v168, %v472
  %v729 = vadd.f32 %v169, %v473
  %v730 = vadd.f32 %v170, %v474
  %v731 = vadd.f32 %v171, %v475
  %v732 = vadd.f32 %v172, %v476
  %v733 = vadd.f32 %v173, %v477
  %v734 = vadd.f32 %v174, %v478
  %v735 = vadd.f32 %v175, %v479
  %v736 = vadd.f32 %v184, %v480
  %v737 = vadd.f32 %v185, %v481
  %v738 = vadd.f32 %v186, %v482
  %v739 = vadd.f32 %v187, %v483
  %v740 = vadd.f32 %v188, %v484
  %v741 = vadd.f32 %v189, %v485
  %v742 = vadd.f32 %v190, %v486
  %v743 = vadd.f32 %v191, %v487
  %v744 = vadd.f32 %v200, %v488
  %v745 = vadd.f32 %v201, %v489
  %v746 = vadd.f32 %v202, %v490
  %v747 = vadd.f32 %v203, %v491
  %v748 = vadd.f32 %v204, %v492
  %v749 = vadd.f32 %v205, %v493
  %v750 = vadd.f32 %v206, %v494
  %v751 = vadd.f32 %v207, %v495
  %v752 = vadd.f32 %v216, %v496
  %v753 = vadd.f32 %v217, %v497
  %v754 = vadd.f32 %v218, %v498
  %v755 = vadd.f32 %v219, %v499
  %v756 = vadd.f32 %v220, %v500
  %v757 = vadd.f32 %v221, %v501
  %v758 = vadd.f32 %v222, %v502
  %v759 = vadd.f32 %v223, %v503
  %v760 = vadd.f32 %v232, %v504
  %v761 = vadd.f32 %v233, %v505
  %v762 = vadd.f32 %v234, %v506
  %v763 = vadd.f32 %v235, %v507
  %v764 = vadd.f32 %v236, %v508
  %v765 = vadd.f32 %v237, %v509
  %v766 = vadd.f32 %v238, %v510
  %v767 = vadd.f32 %v239, %v511
  %v768 = vadd.f32 %v248, %v512
  %v769 = vadd.f32 %v249, %v513
  %v770 = vadd.f32 %v250, %v514
  %v771 = vadd.f32 %v251, %v515
  %v772 = vadd.f32 %v252, %v516
  %v773 = vadd.f32 %v253, %v517
  %v774 = vadd.f32 %v254, %v518
  %v775 = vadd.f32 %v255, %v519
  %v776 = vadd.f32 %v648, %v16
  %v777 = vadd.f32 %v649, %v17
  %v778 = vadd.f32 %v650, %v18
  %v779 = vadd.f32 %v651, %v19
  %v780 = vadd.f32 %v652, %v20
  %v781 = vadd.f32 %v653, %v21
  %v782 = vadd.f32 %v654, %v22
  %v783 = vadd.f32 %v655, %v23
  %v784 = vadd.f32 %v656, %v32
  %v785 = vadd.f32 %v657, %v33
  %v786 = vadd.f32 %v658, %v34
  %v787 = vadd.f32 %v659, %v35
  %v788 = vadd.f32 %v660, %v36
  %v789 = vadd.f32 %v661, %v37
  %v790 = vadd.f32 %v662, %v38
  %v791 = vadd.f32 %v663, %v39
  %v792 = vadd.f32 %v664, %v48
  %v793 = vadd.f32 %v665, %v49
  %v794 = vadd.f32 %v666, %v50
  %v795 = vadd.f32 %v667, %v51
  %v796 = vadd.f32 %v668, %v52
  %v797 = vadd.f32 %v669, %v53
  %v798 = vadd.f32 %v670, %v54
  %v799 = vadd.f32 %v671, %v55
  %v800 = vadd.f32 %v672, %v64
  %v801 = vadd.f32 %v673, %v65
  %v802 = vadd.f32 %v674, %v66
  %v803 = vadd.f32 %v675, %v67
  %v804 = vadd.f32 %v676, %v68
  %v805 = vadd.f32 %v677, %v69
  %v806 = vadd.f32 %v678, %v70
  %v807 = vadd.f32 %v679, %v71
  %v808 = vadd.f32 %v680, %v80
  %v809 = vadd.f32 %v681, %v81
  %v810 = vadd.f32 %v682, %v82
  %v811 = vadd.f32 %v683, %v83
  %v812 = vadd.f32 %v684, %v84
  %v813 = vadd.f32 %v685, %v85
  %v814 = vadd.f32 %v686, %v86
  %v815 = vadd.f32 %v687, %v87
  %v816 = vadd.f32 %v688, %v96
  %v817 = vadd.f32 %v689, %v97
  %v818 = vadd.f32 %v690, %v98
  %v819 = vadd.f32 %v691, %v99
  %v820 = vadd.f32 %v692, %v100
  %v821 = vadd.f32 %v693, %v101
  %v822 = vadd.f32 %v694, %v102
  %v823 = vadd.f32 %v695, %v103
  %v824 = vadd.f32 %v696, %v112
  %v825 = vadd.f32 %v697, %v113
  %v826 = vadd.f32 %v698, %v114
  %v827 = vadd.f32 %v699, %v115
  %v828 = vadd.f32 %v700, %v116
  %v829 = vadd.f32 %v701, %v117
  %v830 = vadd.f32 %v702, %v118
  %v831 = vadd.f32 %v703, %v119
  %v832 = vadd.f32 %v704, %v128
  %v833 = vadd.f32 %v705, %v129
  %v834 = vadd.f32 %v706, %v130
  %v835 = vadd.f32 %v707, %v131
  %v836 = vadd.f32 %v708, %v132
  %v837 = vadd.f32 %v709, %v133
  %v838 = vadd.f32 %v710, %v134
  %v839 = vadd.f32 %v711, %v135
  %v840 = vadd.f32 %v712, %v144
  %v841 = vadd.f32 %v713, %v145
  %v842 = vadd.f32 %v714, %v146
  %v843 = vadd.f32 %v715, %v147
  %v844 = vadd.f32 %v716, %v148
  %v845 = vadd.f32 %v717, %v149
  %v846 = vadd.f32 %v718, %v150
  %v847 = vadd.f32 %v719, %v151
  %v848 = vadd.f32 %v720, %v160
  %v849 = vadd.f32 %v721, %v161
  %v850 = vadd.f32 %v722, %v162
  %v851 = vadd.f32 %v723, %v163
  %v852 = vadd.f32 %v724, %v164
  %v853 = vadd.f32 %v725, %v165
  %v854 = vadd.f32 %v726, %v166
  %v855 = vadd.f32 %v727, %v167
  %v856 = vadd.f32 %v728, %v176
  %v857 = vadd.f32 %v729, %v177
  %v858 = vadd.f32 %v730, %v178
  %v859 = vadd.f32 %v731, %v179
  %v860 = vadd.f32 %v732, %v180
  %v861 = vadd.f32 %v733, %v181
  %v862 = vadd.f32 %v734, %v182
  %v863 = vadd.f32 %v735, %v183
  %v864 = vadd.f32 %v736, %v192
  %v865 = vadd.f32 %v737, %v193
  %v866 = vadd.f32 %v738, %v194
  %v867 = vadd.f32 %v739, %v195
  %v868 = vadd.f32 %v740, %v196
  %v869 = vadd.f32 %v741, %v197
  %v870 = vadd.f32 %v742, %v198
  %v871 = vadd.f32 %v743, %v199
  %v872 = vadd.f32 %v744, %v208
  %v873 = vadd.f32 %v745, %v209
  %v874 = vadd.f32 %v746, %v210
  %v875 = vadd.f32 %v747, %v211
  %v876 = vadd.f32 %v748, %v212
  %v877 = vadd.f32 %v749, %v213
  %v878 = vadd.f32 %v750, %v214
  %v879 = vadd.f32 %v751, %v215
  %v880 = vadd.f32 %v752, %v224
  %v881 = vadd.f32 %v753, %v225
  %v882 = vadd.f32 %v754, %v226
  %v883 = vadd.f32 %v755, %v227
  %v884 = vadd.f32 %v756, %v228
  %v885 = vadd.f32 %v757, %v229
  %v886 = vadd.f32 %v758, %v230
  %v887 = vadd.f32 %v759, %v231
  %v888 = vadd.f32 %v760, %v240
  %v889 = vadd.f32 %v761, %v241
  %v890 = vadd.f32 %v762, %v242
  %v891 = vadd.f32 %v763, %v243
  %v892 = vadd.f32 %v764, %v244
  %v893 = vadd.f32 %v765, %v245
  %v894 = vadd.f32 %v766, %v246
  %v895 = vadd.f32 %v767, %v247
  %v896 = vadd.f32 %v768, %v256
  %v897 = vadd.f32 %v769, %v257
  %v898 = vadd.f32 %v770, %v258
  %v899 = vadd.f32 %v771, %v259
  %v900 = vadd.f32 %v772, %v260
  %v901 = vadd.f32 %v773, %v261
  %v902 = vadd.f32 %v774, %v262
  %v903 = vadd.f32 %v775, %v263
  %v1032 = vrot.slane %v16, 1
  %v1033 = vrot.slane %v17, 1
  %v1034 = vrot.slane %v18, 1
  %v1035 = vrot.slane %v19, 1
  %v1036 = vrot.slane %v20, 1
  %v1037 = vrot.slane %v21, 1
  %v1038 = vrot.slane %v22, 1
  %v1039 = vrot.slane %v23, 1
  %v1040 = vrot.slane %v32, 1
  %v1041 = vrot.slane %v33, 1
  %v1042 = vrot.slane %v34, 1
  %v1043 = vrot.slane %v35, 1
  %v1044 = vrot.slane %v36, 1
  %v1045 = vrot.slane %v37, 1
  %v1046 = vrot.slane %v38, 1
  %v1047 = vrot.slane %v39, 1
  %v1048 = vrot.slane %v48, 1
  %v1049 = vrot.slane %v49, 1
  %v1050 = vrot.slane %v50, 1
  %v1051 = vrot.slane %v51, 1
  %v1052 = vrot.slane %v52, 1
  %v1053 = vrot.slane %v53, 1
  %v1054 = vrot.slane %v54, 1
  %v1055 = vrot.slane %v55, 1
  %v1056 = vrot.slane %v64, 1
  %v1057 = vrot.slane %v65, 1
  %v1058 = vrot.slane %v66, 1
  %v1059 = vrot.slane %v67, 1
  %v1060 = vrot.slane %v68, 1
  %v1061 = vrot.slane %v69, 1
  %v1062 = vrot.slane %v70, 1
  %v1063 = vrot.slane %v71, 1
  %v1064 = vrot.slane %v80, 1
  %v1065 = vrot.slane %v81, 1
  %v1066 = vrot.slane %v82, 1
  %v1067 = vrot.slane %v83, 1
  %v1068 = vrot.slane %v84, 1
  %v1069 = vrot.slane %v85, 1
  %v1070 = vrot.slane %v86, 1
  %v1071 = vrot.slane %v87, 1
  %v1072 = vrot.slane %v96, 1
  %v1073 = vrot.slane %v97, 1
  %v1074 = vrot.slane %v98, 1
  %v1075 = vrot.slane %v99, 1
  %v1076 = vrot.slane %v100, 1
  %v1077 = vrot.slane %v101, 1
  %v1078 = vrot.slane %v102, 1
  %v1079 = vrot.slane %v103, 1
  %v1080 = vrot.slane %v112, 1
  %v1081 = vrot.slane %v113, 1
  %v1082 = vrot.slane %v114, 1
  %v1083 = vrot.slane %v115, 1
  %v1084 = vrot.slane %v116, 1
  %v1085 = vrot.slane %v117, 1
  %v1086 = vrot.slane %v118, 1
  %v1087 = vrot.slane %v119, 1
  %v1088 = vrot.slane %v128, 1
  %v1089 = vrot.slane %v129, 1
  %v1090 = vrot.slane %v130, 1
  %v1091 = vrot.slane %v131, 1
  %v1092 = vrot.slane %v132, 1
  %v1093 = vrot.slane %v133, 1
  %v1094 = vrot.slane %v134, 1
  %v1095 = vrot.slane %v135, 1
  %v1096 = vrot.slane %v144, 1
  %v1097 = vrot.slane %v145, 1
  %v1098 = vrot.slane %v146, 1
  %v1099 = vrot.slane %v147, 1
  %v1100 = vrot.slane %v148, 1
  %v1101 = vrot.slane %v149, 1
  %v1102 = vrot.slane %v150, 1
  %v1103 = vrot.slane %v151, 1
  %v1104 = vrot.slane %v160, 1
  %v1105 = vrot.slane %v161, 1
  %v1106 = vrot.slane %v162, 1
  %v1107 = vrot.slane %v163, 1
  %v1108 = vrot.slane %v164, 1
  %v1109 = vrot.slane %v165, 1
  %v1110 = vrot.slane %v166, 1
  %v1111 = vrot.slane %v167, 1
  %v1112 = vrot.slane %v176, 1
  %v1113 = vrot.slane %v177, 1
  %v1114 = vrot.slane %v178, 1
  %v1115 = vrot.slane %v179, 1
  %v1116 = vrot.slane %v180, 1
  %v1117 = vrot.slane %v181, 1
  %v1118 = vrot.slane %v182, 1
  %v1119 = vrot.slane %v183, 1
  %v1120 = vrot.slane %v192, 1
  %v1121 = vrot.slane %v193, 1
  %v1122 = vrot.slane %v194, 1
  %v1123 = vrot.slane %v195, 1
  %v1124 = vrot.slane %v196, 1
  %v1125 = vrot.slane %v197, 1
  %v1126 = vrot.slane %v198, 1
  %v1127 = vrot.slane %v199, 1
  %v1128 = vrot.slane %v208, 1
  %v1129 = vrot.slane %v209, 1
  %v1130 = vrot.slane %v210, 1
  %v1131 = vrot.slane %v211, 1
  %v1132 = vrot.slane %v212, 1
  %v1133 = vrot.slane %v213, 1
  %v1134 = vrot.slane %v214, 1
  %v1135 = vrot.slane %v215, 1
  %v1136 = vrot.slane %v224, 1
  %v1137 = vrot.slane %v225, 1
  %v1138 = vrot.slane %v226, 1
  %v1139 = vrot.slane %v227, 1
  %v1140 = vrot.slane %v228, 1
  %v1141 = vrot.slane %v229, 1
  %v1142 = vrot.slane %v230, 1
  %v1143 = vrot.slane %v231, 1
  %v1144 = vrot.slane %v240, 1
  %v1145 = vrot.slane %v241, 1
  %v1146 = vrot.slane %v242, 1
  %v1147 = vrot.slane %v243, 1
  %v1148 = vrot.slane %v244, 1
  %v1149 = vrot.slane %v245, 1
  %v1150 = vrot.slane %v246, 1
  %v1151 = vrot.slane %v247, 1
  %v1152 = vrot.slane %v256, 1
  %v1153 = vrot.slane %v257, 1
  %v1154 = vrot.slane %v258, 1
  %v1155 = vrot.slane %v259, 1
  %v1156 = vrot.slane %v260, 1
  %v1157 = vrot.slane %v261, 1
  %v1158 = vrot.slane %v262, 1
  %v1159 = vrot.slane %v263, 1
  %v1288 = vadd.f32 %v776, %v1032
  %v1289 = vadd.f32 %v777, %v1033
  %v1290 = vadd.f32 %v778, %v1034
  %v1291 = vadd.f32 %v779, %v1035
  %v1292 = vadd.f32 %v780, %v1036
  %v1293 = vadd.f32 %v781, %v1037
  %v1294 = vadd.f32 %v782, %v1038
  %v1295 = vadd.f32 %v783, %v1039
  %v1296 = vadd.f32 %v784, %v1040
  %v1297 = vadd.f32 %v785, %v1041
  %v1298 = vadd.f32 %v786, %v1042
  %v1299 = vadd.f32 %v787, %v1043
  %v1300 = vadd.f32 %v788, %v1044
  %v1301 = vadd.f32 %v789, %v1045
  %v1302 = vadd.f32 %v790, %v1046
  %v1303 = vadd.f32 %v791, %v1047
  %v1304 = vadd.f32 %v792, %v1048
  %v1305 = vadd.f32 %v793, %v1049
  %v1306 = vadd.f32 %v794, %v1050
  %v1307 = vadd.f32 %v795, %v1051
  %v1308 = vadd.f32 %v796, %v1052
  %v1309 = vadd.f32 %v797, %v1053
  %v1310 = vadd.f32 %v798, %v1054
  %v1311 = vadd.f32 %v799, %v1055
  %v1312 = vadd.f32 %v800, %v1056
  %v1313 = vadd.f32 %v801, %v1057
  %v1314 = vadd.f32 %v802, %v1058
  %v1315 = vadd.f32 %v803, %v1059
  %v1316 = vadd.f32 %v804, %v1060
  %v1317 = vadd.f32 %v805, %v1061
  %v1318 = vadd.f32 %v806, %v1062
  %v1319 = vadd.f32 %v807, %v1063
  %v1320 = vadd.f32 %v808, %v1064
  %v1321 = vadd.f32 %v809, %v1065
  %v1322 = vadd.f32 %v810, %v1066
  %v1323 = vadd.f32 %v811, %v1067
  %v1324 = vadd.f32 %v812, %v1068
  %v1325 = vadd.f32 %v813, %v1069
  %v1326 = vadd.f32 %v814, %v1070
  %v1327 = vadd.f32 %v815, %v1071
  %v1328 = vadd.f32 %v816, %v1072
  %v1329 = vadd.f32 %v817, %v1073
  %v1330 = vadd.f32 %v818, %v1074
  %v1331 = vadd.f32 %v819, %v1075
  %v1332 = vadd.f32 %v820, %v1076
  %v1333 = vadd.f32 %v821, %v1077
  %v1334 = vadd.f32 %v822, %v1078
  %v1335 = vadd.f32 %v823, %v1079
  %v1336 = vadd.f32 %v824, %v1080
  %v1337 = vadd.f32 %v825, %v1081
  %v1338 = vadd.f32 %v826, %v1082
  %v1339 = vadd.f32 %v827, %v1083
  %v1340 = vadd.f32 %v828, %v1084
  %v1341 = vadd.f32 %v829, %v1085
  %v1342 = vadd.f32 %v830, %v1086
  %v1343 = vadd.f32 %v831, %v1087
  %v1344 = vadd.f32 %v832, %v1088
  %v1345 = vadd.f32 %v833, %v1089
  %v1346 = vadd.f32 %v834, %v1090
  %v1347 = vadd.f32 %v835, %v1091
  %v1348 = vadd.f32 %v836, %v1092
  %v1349 = vadd.f32 %v837, %v1093
  %v1350 = vadd.f32 %v838, %v1094
  %v1351 = vadd.f32 %v839, %v1095
  %v1352 = vadd.f32 %v840, %v1096
  %v1353 = vadd.f32 %v841, %v1097
  %v1354 = vadd.f32 %v842, %v1098
  %v1355 = vadd.f32 %v843, %v1099
  %v1356 = vadd.f32 %v844, %v1100
  %v1357 = vadd.f32 %v845, %v1101
  %v1358 = vadd.f32 %v846, %v1102
  %v1359 = vadd.f32 %v847, %v1103
  %v1360 = vadd.f32 %v848, %v1104
  %v1361 = vadd.f32 %v849, %v1105
  %v1362 = vadd.f32 %v850, %v1106
  %v1363 = vadd.f32 %v851, %v1107
  %v1364 = vadd.f32 %v852, %v1108
  %v1365 = vadd.f32 %v853, %v1109
  %v1366 = vadd.f32 %v854, %v1110
  %v1367 = vadd.f32 %v855, %v1111
  %v1368 = vadd.f32 %v856, %v1112
  %v1369 = vadd.f32 %v857, %v1113
  %v1370 = vadd.f32 %v858, %v1114
  %v1371 = vadd.f32 %v859, %v1115
  %v1372 = vadd.f32 %v860, %v1116
  %v1373 = vadd.f32 %v861, %v1117
  %v1374 = vadd.f32 %v862, %v1118
  %v1375 = vadd.f32 %v863, %v1119
  %v1376 = vadd.f32 %v864, %v1120
  %v1377 = vadd.f32 %v865, %v1121
  %v1378 = vadd.f32 %v866, %v1122
  %v1379 = vadd.f32 %v867, %v1123
  %v1380 = vadd.f32 %v868, %v1124
  %v1381 = vadd.f32 %v869, %v1125
  %v1382 = vadd.f32 %v870, %v1126
  %v1383 = vadd.f32 %v871, %v1127
  %v1384 = vadd.f32 %v872, %v1128
  %v1385 = vadd.f32 %v873, %v1129
  %v1386 = vadd.f32 %v874, %v1130
  %v1387 = vadd.f32 %v875, %v1131
  %v1388 = vadd.f32 %v876, %v1132
  %v1389 = vadd.f32 %v877, %v1133
  %v1390 = vadd.f32 %v878, %v1134
  %v1391 = vadd.f32 %v879, %v1135
  %v1392 = vadd.f32 %v880, %v1136
  %v1393 = vadd.f32 %v881, %v1137
  %v1394 = vadd.f32 %v882, %v1138
  %v1395 = vadd.f32 %v883, %v1139
  %v1396 = vadd.f32 %v884, %v1140
  %v1397 = vadd.f32 %v885, %v1141
  %v1398 = vadd.f32 %v886, %v1142
  %v1399 = vadd.f32 %v887, %v1143
  %v1400 = vadd.f32 %v888, %v1144
  %v1401 = vadd.f32 %v889, %v1145
  %v1402 = vadd.f32 %v890, %v1146
  %v1403 = vadd.f32 %v891, %v1147
  %v1404 = vadd.f32 %v892, %v1148
  %v1405 = vadd.f32 %v893, %v1149
  %v1406 = vadd.f32 %v894, %v1150
  %v1407 = vadd.f32 %v895, %v1151
  %v1408 = vadd.f32 %v896, %v1152
  %v1409 = vadd.f32 %v897, %v1153
  %v1410 = vadd.f32 %v898, %v1154
  %v1411 = vadd.f32 %v899, %v1155
  %v1412 = vadd.f32 %v900, %v1156
  %v1413 = vadd.f32 %v901, %v1157
  %v1414 = vadd.f32 %v902, %v1158
  %v1415 = vadd.f32 %v903, %v1159
  %v1416 = vmul.f32 %v1288, 0.25
  %v1417 = vmul.f32 %v1289, 0.25
  %v1418 = vmul.f32 %v1290, 0.25
  %v1419 = vmul.f32 %v1291, 0.25
  %v1420 = vmul.f32 %v1292, 0.25
  %v1421 = vmul.f32 %v1293, 0.25
  %v1422 = vmul.f32 %v1294, 0.25
  %v1423 = vmul.f32 %v1295, 0.25
  %v1424 = vmul.f32 %v1296, 0.25
  %v1425 = vmul.f32 %v1297, 0.25
  %v1426 = vmul.f32 %v1298, 0.25
  %v1427 = vmul.f32 %v1299, 0.25
  %v1428 = vmul.f32 %v1300, 0.25
  %v1429 = vmul.f32 %v1301, 0.25
  %v1430 = vmul.f32 %v1302, 0.25
  %v1431 = vmul.f32 %v1303, 0.25
  %v1432 = vmul.f32 %v1304, 0.25
  %v1433 = vmul.f32 %v1305, 0.25
  %v1434 = vmul.f32 %v1306, 0.25
  %v1435 = vmul.f32 %v1307, 0.25
  %v1436 = vmul.f32 %v1308, 0.25
  %v1437 = vmul.f32 %v1309, 0.25
  %v1438 = vmul.f32 %v1310, 0.25
  %v1439 = vmul.f32 %v1311, 0.25
  %v1440 = vmul.f32 %v1312, 0.25
  %v1441 = vmul.f32 %v1313, 0.25
  %v1442 = vmul.f32 %v1314, 0.25
  %v1443 = vmul.f32 %v1315, 0.25
  %v1444 = vmul.f32 %v1316, 0.25
  %v1445 = vmul.f32 %v1317, 0.25
  %v1446 = vmul.f32 %v1318, 0.25
  %v1447 = vmul.f32 %v1319, 0.25
  %v1448 = vmul.f32 %v1320, 0.25
  %v1449 = vmul.f32 %v1321, 0.25
  %v1450 = vmul.f32 %v1322, 0.25
  %v1451 = vmul.f32 %v1323, 0.25
  %v1452 = vmul.f32 %v1324, 0.25
  %v1453 = vmul.f32 %v1325, 0.25
  %v1454 = vmul.f32 %v1326, 0.25
  %v1455 = vmul.f32 %v1327, 0.25
  %v1456 = vmul.f32 %v1328, 0.25
  %v1457 = vmul.f32 %v1329, 0.25
  %v1458 = vmul.f32 %v1330, 0.25
  %v1459 = vmul.f32 %v1331, 0.25
  %v1460 = vmul.f32 %v1332, 0.25
  %v1461 = vmul.f32 %v1333, 0.25
  %v1462 = vmul.f32 %v1334, 0.25
  %v1463 = vmul.f32 %v1335, 0.25
  %v1464 = vmul.f32 %v1336, 0.25
  %v1465 = vmul.f32 %v1337, 0.25
  %v1466 = vmul.f32 %v1338, 0.25
  %v1467 = vmul.f32 %v1339, 0.25
  %v1468 = vmul.f32 %v1340, 0.25
  %v1469 = vmul.f32 %v1341, 0.25
  %v1470 = vmul.f32 %v1342, 0.25
  %v1471 = vmul.f32 %v1343, 0.25
  %v1472 = vmul.f32 %v1344, 0.25
  %v1473 = vmul.f32 %v1345, 0.25
  %v1474 = vmul.f32 %v1346, 0.25
  %v1475 = vmul.f32 %v1347, 0.25
  %v1476 = vmul.f32 %v1348, 0.25
  %v1477 = vmul.f32 %v1349, 0.25
  %v1478 = vmul.f32 %v1350, 0.25
  %v1479 = vmul.f32 %v1351, 0.25
  %v1480 = vmul.f32 %v1352, 0.25
  %v1481 = vmul.f32 %v1353, 0.25
  %v1482 = vmul.f32 %v1354, 0.25
  %v1483 = vmul.f32 %v1355, 0.25
  %v1484 = vmul.f32 %v1356, 0.25
  %v1485 = vmul.f32 %v1357, 0.25
  %v1486 = vmul.f32 %v1358, 0.25
  %v1487 = vmul.f32 %v1359, 0.25
  %v1488 = vmul.f32 %v1360, 0.25
  %v1489 = vmul.f32 %v1361, 0.25
  %v1490 = vmul.f32 %v1362, 0.25
  %v1491 = vmul.f32 %v1363, 0.25
  %v1492 = vmul.f32 %v1364, 0.25
  %v1493 = vmul.f32 %v1365, 0.25
  %v1494 = vmul.f32 %v1366, 0.25
  %v1495 = vmul.f32 %v1367, 0.25
  %v1496 = vmul.f32 %v1368, 0.25
  %v1497 = vmul.f32 %v1369, 0.25
  %v1498 = vmul.f32 %v1370, 0.25
  %v1499 = vmul.f32 %v1371, 0.25
  %v1500 = vmul.f32 %v1372, 0.25
  %v1501 = vmul.f32 %v1373, 0.25
  %v1502 = vmul.f32 %v1374, 0.25
  %v1503 = vmul.f32 %v1375, 0.25
  %v1504 = vmul.f32 %v1376, 0.25
  %v1505 = vmul.f32 %v1377, 0.25
  %v1506 = vmul.f32 %v1378, 0.25
  %v1507 = vmul.f32 %v1379, 0.25
  %v1508 = vmul.f32 %v1380, 0.25
  %v1509 = vmul.f32 %v1381, 0.25
  %v1510 = vmul.f32 %v1382, 0.25
  %v1511 = vmul.f32 %v1383, 0.25
  %v1512 = vmul.f32 %v1384, 0.25
  %v1513 = vmul.f32 %v1385, 0.25
  %v1514 = vmul.f32 %v1386, 0.25
  %v1515 = vmul.f32 %v1387, 0.25
  %v1516 = vmul.f32 %v1388, 0.25
  %v1517 = vmul.f32 %v1389, 0.25
  %v1518 = vmul.f32 %v1390, 0.25
  %v1519 = vmul.f32 %v1391, 0.25
  %v1520 = vmul.f32 %v1392, 0.25
  %v1521 = vmul.f32 %v1393, 0.25
  %v1522 = vmul.f32 %v1394, 0.25
  %v1523 = vmul.f32 %v1395, 0.25
  %v1524 = vmul.f32 %v1396, 0.25
  %v1525 = vmul.f32 %v1397, 0.25
  %v1526 = vmul.f32 %v1398, 0.25
  %v1527 = vmul.f32 %v1399, 0.25
  %v1528 = vmul.f32 %v1400, 0.25
  %v1529 = vmul.f32 %v1401, 0.25
  %v1530 = vmul.f32 %v1402, 0.25
  %v1531 = vmul.f32 %v1403, 0.25
  %v1532 = vmul.f32 %v1404, 0.25
  %v1533 = vmul.f32 %v1405, 0.25
  %v1534 = vmul.f32 %v1406, 0.25
  %v1535 = vmul.f32 %v1407, 0.25
  %v1536 = vmul.f32 %v1408, 0.25
  %v1537 = vmul.f32 %v1409, 0.25
  %v1538 = vmul.f32 %v1410, 0.25
  %v1539 = vmul.f32 %v1411, 0.25
  %v1540 = vmul.f32 %v1412, 0.25
  %v1541 = vmul.f32 %v1413, 0.25
  %v1542 = vmul.f32 %v1414, 0.25
  %v1543 = vmul.f32 %v1415, 0.25
  %v1544 = vpack.c.bf16 %v1416, %v1416
  %v1545 = vpack.c.bf16 %v1417, %v1417
  %v1546 = vpack.c.bf16 %v1418, %v1418
  %v1547 = vpack.c.bf16 %v1419, %v1419
  %v1548 = vpack.c.bf16 %v1420, %v1420
  %v1549 = vpack.c.bf16 %v1421, %v1421
  %v1550 = vpack.c.bf16 %v1422, %v1422
  %v1551 = vpack.c.bf16 %v1423, %v1423
  %v1552 = vpack.c.bf16 %v1424, %v1424
  %v1553 = vpack.c.bf16 %v1425, %v1425
  %v1554 = vpack.c.bf16 %v1426, %v1426
  %v1555 = vpack.c.bf16 %v1427, %v1427
  %v1556 = vpack.c.bf16 %v1428, %v1428
  %v1557 = vpack.c.bf16 %v1429, %v1429
  %v1558 = vpack.c.bf16 %v1430, %v1430
  %v1559 = vpack.c.bf16 %v1431, %v1431
  %v1560 = vpack.c.bf16 %v1432, %v1432
  %v1561 = vpack.c.bf16 %v1433, %v1433
  %v1562 = vpack.c.bf16 %v1434, %v1434
  %v1563 = vpack.c.bf16 %v1435, %v1435
  %v1564 = vpack.c.bf16 %v1436, %v1436
  %v1565 = vpack.c.bf16 %v1437, %v1437
  %v1566 = vpack.c.bf16 %v1438, %v1438
  %v1567 = vpack.c.bf16 %v1439, %v1439
  %v1568 = vpack.c.bf16 %v1440, %v1440
  %v1569 = vpack.c.bf16 %v1441, %v1441
  %v1570 = vpack.c.bf16 %v1442, %v1442
  %v1571 = vpack.c.bf16 %v1443, %v1443
  %v1572 = vpack.c.bf16 %v1444, %v1444
  %v1573 = vpack.c.bf16 %v1445, %v1445
  %v1574 = vpack.c.bf16 %v1446, %v1446
  %v1575 = vpack.c.bf16 %v1447, %v1447
  %v1576 = vpack.c.bf16 %v1448, %v1448
  %v1577 = vpack.c.bf16 %v1449, %v1449
  %v1578 = vpack.c.bf16 %v1450, %v1450
  %v1579 = vpack.c.bf16 %v1451, %v1451
  %v1580 = vpack.c.bf16 %v1452, %v1452
  %v1581 = vpack.c.bf16 %v1453, %v1453
  %v1582 = vpack.c.bf16 %v1454, %v1454
  %v1583 = vpack.c.bf16 %v1455, %v1455
  %v1584 = vpack.c.bf16 %v1456, %v1456
  %v1585 = vpack.c.bf16 %v1457, %v1457
  %v1586 = vpack.c.bf16 %v1458, %v1458
  %v1587 = vpack.c.bf16 %v1459, %v1459
  %v1588 = vpack.c.bf16 %v1460, %v1460
  %v1589 = vpack.c.bf16 %v1461, %v1461
  %v1590 = vpack.c.bf16 %v1462, %v1462
  %v1591 = vpack.c.bf16 %v1463, %v1463
  %v1592 = vpack.c.bf16 %v1464, %v1464
  %v1593 = vpack.c.bf16 %v1465, %v1465
  %v1594 = vpack.c.bf16 %v1466, %v1466
  %v1595 = vpack.c.bf16 %v1467, %v1467
  %v1596 = vpack.c.bf16 %v1468, %v1468
  %v1597 = vpack.c.bf16 %v1469, %v1469
  %v1598 = vpack.c.bf16 %v1470, %v1470
  %v1599 = vpack.c.bf16 %v1471, %v1471
  %v1600 = vpack.c.bf16 %v1472, %v1472
  %v1601 = vpack.c.bf16 %v1473, %v1473
  %v1602 = vpack.c.bf16 %v1474, %v1474
  %v1603 = vpack.c.bf16 %v1475, %v1475
  %v1604 = vpack.c.bf16 %v1476, %v1476
  %v1605 = vpack.c.bf16 %v1477, %v1477
  %v1606 = vpack.c.bf16 %v1478, %v1478
  %v1607 = vpack.c.bf16 %v1479, %v1479
  %v1608 = vpack.c.bf16 %v1480, %v1480
  %v1609 = vpack.c.bf16 %v1481, %v1481
  %v1610 = vpack.c.bf16 %v1482, %v1482
  %v1611 = vpack.c.bf16 %v1483, %v1483
  %v1612 = vpack.c.bf16 %v1484, %v1484
  %v1613 = vpack.c.bf16 %v1485, %v1485
  %v1614 = vpack.c.bf16 %v1486, %v1486
  %v1615 = vpack.c.bf16 %v1487, %v1487
  %v1616 = vpack.c.bf16 %v1488, %v1488
  %v1617 = vpack.c.bf16 %v1489, %v1489
  %v1618 = vpack.c.bf16 %v1490, %v1490
  %v1619 = vpack.c.bf16 %v1491, %v1491
  %v1620 = vpack.c.bf16 %v1492, %v1492
  %v1621 = vpack.c.bf16 %v1493, %v1493
  %v1622 = vpack.c.bf16 %v1494, %v1494
  %v1623 = vpack.c.bf16 %v1495, %v1495
  %v1624 = vpack.c.bf16 %v1496, %v1496
  %v1625 = vpack.c.bf16 %v1497, %v1497
  %v1626 = vpack.c.bf16 %v1498, %v1498
  %v1627 = vpack.c.bf16 %v1499, %v1499
  %v1628 = vpack.c.bf16 %v1500, %v1500
  %v1629 = vpack.c.bf16 %v1501, %v1501
  %v1630 = vpack.c.bf16 %v1502, %v1502
  %v1631 = vpack.c.bf16 %v1503, %v1503
  %v1632 = vpack.c.bf16 %v1504, %v1504
  %v1633 = vpack.c.bf16 %v1505, %v1505
  %v1634 = vpack.c.bf16 %v1506, %v1506
  %v1635 = vpack.c.bf16 %v1507, %v1507
  %v1636 = vpack.c.bf16 %v1508, %v1508
  %v1637 = vpack.c.bf16 %v1509, %v1509
  %v1638 = vpack.c.bf16 %v1510, %v1510
  %v1639 = vpack.c.bf16 %v1511, %v1511
  %v1640 = vpack.c.bf16 %v1512, %v1512
  %v1641 = vpack.c.bf16 %v1513, %v1513
  %v1642 = vpack.c.bf16 %v1514, %v1514
  %v1643 = vpack.c.bf16 %v1515, %v1515
  %v1644 = vpack.c.bf16 %v1516, %v1516
  %v1645 = vpack.c.bf16 %v1517, %v1517
  %v1646 = vpack.c.bf16 %v1518, %v1518
  %v1647 = vpack.c.bf16 %v1519, %v1519
  %v1648 = vpack.c.bf16 %v1520, %v1520
  %v1649 = vpack.c.bf16 %v1521, %v1521
  %v1650 = vpack.c.bf16 %v1522, %v1522
  %v1651 = vpack.c.bf16 %v1523, %v1523
  %v1652 = vpack.c.bf16 %v1524, %v1524
  %v1653 = vpack.c.bf16 %v1525, %v1525
  %v1654 = vpack.c.bf16 %v1526, %v1526
  %v1655 = vpack.c.bf16 %v1527, %v1527
  %v1656 = vpack.c.bf16 %v1528, %v1528
  %v1657 = vpack.c.bf16 %v1529, %v1529
  %v1658 = vpack.c.bf16 %v1530, %v1530
  %v1659 = vpack.c.bf16 %v1531, %v1531
  %v1660 = vpack.c.bf16 %v1532, %v1532
  %v1661 = vpack.c.bf16 %v1533, %v1533
  %v1662 = vpack.c.bf16 %v1534, %v1534
  %v1663 = vpack.c.bf16 %v1535, %v1535
  %v1664 = vpack.c.bf16 %v1536, %v1536
  %v1665 = vpack.c.bf16 %v1537, %v1537
  %v1666 = vpack.c.bf16 %v1538, %v1538
  %v1667 = vpack.c.bf16 %v1539, %v1539
  %v1668 = vpack.c.bf16 %v1540, %v1540
  %v1669 = vpack.c.bf16 %v1541, %v1541
  %v1670 = vpack.c.bf16 %v1542, %v1542
  %v1671 = vpack.c.bf16 %v1543, %v1543
  %v1800 = vunpack.c.l.b16 %v1544
  %v1801 = vunpack.c.l.b16 %v1545
  %v1802 = vunpack.c.l.b16 %v1546
  %v1803 = vunpack.c.l.b16 %v1547
  %v1804 = vunpack.c.l.b16 %v1548
  %v1805 = vunpack.c.l.b16 %v1549
  %v1806 = vunpack.c.l.b16 %v1550
  %v1807 = vunpack.c.l.b16 %v1551
  %v1808 = vunpack.c.l.b16 %v1552
  %v1809 = vunpack.c.l.b16 %v1553
  %v1810 = vunpack.c.l.b16 %v1554
  %v1811 = vunpack.c.l.b16 %v1555
  %v1812 = vunpack.c.l.b16 %v1556
  %v1813 = vunpack.c.l.b16 %v1557
  %v1814 = vunpack.c.l.b16 %v1558
  %v1815 = vunpack.c.l.b16 %v1559
  %v1816 = vunpack.c.l.b16 %v1560
  %v1817 = vunpack.c.l.b16 %v1561
  %v1818 = vunpack.c.l.b16 %v1562
  %v1819 = vunpack.c.l.b16 %v1563
  %v1820 = vunpack.c.l.b16 %v1564
  %v1821 = vunpack.c.l.b16 %v1565
  %v1822 = vunpack.c.l.b16 %v1566
  %v1823 = vunpack.c.l.b16 %v1567
  %v1824 = vunpack.c.l.b16 %v1568
  %v1825 = vunpack.c.l.b16 %v1569
  %v1826 = vunpack.c.l.b16 %v1570
  %v1827 = vunpack.c.l.b16 %v1571
  %v1828 = vunpack.c.l.b16 %v1572
  %v1829 = vunpack.c.l.b16 %v1573
  %v1830 = vunpack.c.l.b16 %v1574
  %v1831 = vunpack.c.l.b16 %v1575
  %v1832 = vunpack.c.l.b16 %v1576
  %v1833 = vunpack.c.l.b16 %v1577
  %v1834 = vunpack.c.l.b16 %v1578
  %v1835 = vunpack.c.l.b16 %v1579
  %v1836 = vunpack.c.l.b16 %v1580
  %v1837 = vunpack.c.l.b16 %v1581
  %v1838 = vunpack.c.l.b16 %v1582
  %v1839 = vunpack.c.l.b16 %v1583
  %v1840 = vunpack.c.l.b16 %v1584
  %v1841 = vunpack.c.l.b16 %v1585
  %v1842 = vunpack.c.l.b16 %v1586
  %v1843 = vunpack.c.l.b16 %v1587
  %v1844 = vunpack.c.l.b16 %v1588
  %v1845 = vunpack.c.l.b16 %v1589
  %v1846 = vunpack.c.l.b16 %v1590
  %v1847 = vunpack.c.l.b16 %v1591
  %v1848 = vunpack.c.l.b16 %v1592
  %v1849 = vunpack.c.l.b16 %v1593
  %v1850 = vunpack.c.l.b16 %v1594
  %v1851 = vunpack.c.l.b16 %v1595
  %v1852 = vunpack.c.l.b16 %v1596
  %v1853 = vunpack.c.l.b16 %v1597
  %v1854 = vunpack.c.l.b16 %v1598
  %v1855 = vunpack.c.l.b16 %v1599
  %v1856 = vunpack.c.l.b16 %v1600
  %v1857 = vunpack.c.l.b16 %v1601
  %v1858 = vunpack.c.l.b16 %v1602
  %v1859 = vunpack.c.l.b16 %v1603
  %v1860 = vunpack.c.l.b16 %v1604
  %v1861 = vunpack.c.l.b16 %v1605
  %v1862 = vunpack.c.l.b16 %v1606
  %v1863 = vunpack.c.l.b16 %v1607
  %v1864 = vunpack.c.l.b16 %v1608
  %v1865 = vunpack.c.l.b16 %v1609
  %v1866 = vunpack.c.l.b16 %v1610
  %v1867 = vunpack.c.l.b16 %v1611
  %v1868 = vunpack.c.l.b16 %v1612
  %v1869 = vunpack.c.l.b16 %v1613
  %v1870 = vunpack.c.l.b16 %v1614
  %v1871 = vunpack.c.l.b16 %v1615
  %v1872 = vunpack.c.l.b16 %v1616
  %v1873 = vunpack.c.l.b16 %v1617
  %v1874 = vunpack.c.l.b16 %v1618
  %v1875 = vunpack.c.l.b16 %v1619
  %v1876 = vunpack.c.l.b16 %v1620
  %v1877 = vunpack.c.l.b16 %v1621
  %v1878 = vunpack.c.l.b16 %v1622
  %v1879 = vunpack.c.l.b16 %v1623
  %v1880 = vunpack.c.l.b16 %v1624
  %v1881 = vunpack.c.l.b16 %v1625
  %v1882 = vunpack.c.l.b16 %v1626
  %v1883 = vunpack.c.l.b16 %v1627
  %v1884 = vunpack.c.l.b16 %v1628
  %v1885 = vunpack.c.l.b16 %v1629
  %v1886 = vunpack.c.l.b16 %v1630
  %v1887 = vunpack.c.l.b16 %v1631
  %v1888 = vunpack.c.l.b16 %v1632
  %v1889 = vunpack.c.l.b16 %v1633
  %v1890 = vunpack.c.l.b16 %v1634
  %v1891 = vunpack.c.l.b16 %v1635
  %v1892 = vunpack.c.l.b16 %v1636
  %v1893 = vunpack.c.l.b16 %v1637
  %v1894 = vunpack.c.l.b16 %v1638
  %v1895 = vunpack.c.l.b16 %v1639
  %v1896 = vunpack.c.l.b16 %v1640
  %v1897 = vunpack.c.l.b16 %v1641
  %v1898 = vunpack.c.l.b16 %v1642
  %v1899 = vunpack.c.l.b16 %v1643
  %v1900 = vunpack.c.l.b16 %v1644
  %v1901 = vunpack.c.l.b16 %v1645
  %v1902 = vunpack.c.l.b16 %v1646
  %v1903 = vunpack.c.l.b16 %v1647
  %v1904 = vunpack.c.l.b16 %v1648
  %v1905 = vunpack.c.l.b16 %v1649
  %v1906 = vunpack.c.l.b16 %v1650
  %v1907 = vunpack.c.l.b16 %v1651
  %v1908 = vunpack.c.l.b16 %v1652
  %v1909 = vunpack.c.l.b16 %v1653
  %v1910 = vunpack.c.l.b16 %v1654
  %v1911 = vunpack.c.l.b16 %v1655
  %v1912 = vunpack.c.l.b16 %v1656
  %v1913 = vunpack.c.l.b16 %v1657
  %v1914 = vunpack.c.l.b16 %v1658
  %v1915 = vunpack.c.l.b16 %v1659
  %v1916 = vunpack.c.l.b16 %v1660
  %v1917 = vunpack.c.l.b16 %v1661
  %v1918 = vunpack.c.l.b16 %v1662
  %v1919 = vunpack.c.l.b16 %v1663
  %v1920 = vunpack.c.l.b16 %v1664
  %v1921 = vunpack.c.l.b16 %v1665
  %v1922 = vunpack.c.l.b16 %v1666
  %v1923 = vunpack.c.l.b16 %v1667
  %v1924 = vunpack.c.l.b16 %v1668
  %v1925 = vunpack.c.l.b16 %v1669
  %v1926 = vunpack.c.l.b16 %v1670
  %v1927 = vunpack.c.l.b16 %v1671
  %v1928 = vpack.c.b16 %v1800, %v1800
  %v1929 = vpack.c.b16 %v1801, %v1801
  %v1930 = vpack.c.b16 %v1802, %v1802
  %v1931 = vpack.c.b16 %v1803, %v1803
  %v1932 = vpack.c.b16 %v1804, %v1804
  %v1933 = vpack.c.b16 %v1805, %v1805
  %v1934 = vpack.c.b16 %v1806, %v1806
  %v1935 = vpack.c.b16 %v1807, %v1807
  %v1936 = vpack.c.b16 %v1808, %v1808
  %v1937 = vpack.c.b16 %v1809, %v1809
  %v1938 = vpack.c.b16 %v1810, %v1810
  %v1939 = vpack.c.b16 %v1811, %v1811
  %v1940 = vpack.c.b16 %v1812, %v1812
  %v1941 = vpack.c.b16 %v1813, %v1813
  %v1942 = vpack.c.b16 %v1814, %v1814
  %v1943 = vpack.c.b16 %v1815, %v1815
  %v1944 = vpack.c.b16 %v1816, %v1816
  %v1945 = vpack.c.b16 %v1817, %v1817
  %v1946 = vpack.c.b16 %v1818, %v1818
  %v1947 = vpack.c.b16 %v1819, %v1819
  %v1948 = vpack.c.b16 %v1820, %v1820
  %v1949 = vpack.c.b16 %v1821, %v1821
  %v1950 = vpack.c.b16 %v1822, %v1822
  %v1951 = vpack.c.b16 %v1823, %v1823
  %v1952 = vpack.c.b16 %v1824, %v1824
  %v1953 = vpack.c.b16 %v1825, %v1825
  %v1954 = vpack.c.b16 %v1826, %v1826
  %v1955 = vpack.c.b16 %v1827, %v1827
  %v1956 = vpack.c.b16 %v1828, %v1828
  %v1957 = vpack.c.b16 %v1829, %v1829
  %v1958 = vpack.c.b16 %v1830, %v1830
  %v1959 = vpack.c.b16 %v1831, %v1831
  %v1960 = vpack.c.b16 %v1832, %v1832
  %v1961 = vpack.c.b16 %v1833, %v1833
  %v1962 = vpack.c.b16 %v1834, %v1834
  %v1963 = vpack.c.b16 %v1835, %v1835
  %v1964 = vpack.c.b16 %v1836, %v1836
  %v1965 = vpack.c.b16 %v1837, %v1837
  %v1966 = vpack.c.b16 %v1838, %v1838
  %v1967 = vpack.c.b16 %v1839, %v1839
  %v1968 = vpack.c.b16 %v1840, %v1840
  %v1969 = vpack.c.b16 %v1841, %v1841
  %v1970 = vpack.c.b16 %v1842, %v1842
  %v1971 = vpack.c.b16 %v1843, %v1843
  %v1972 = vpack.c.b16 %v1844, %v1844
  %v1973 = vpack.c.b16 %v1845, %v1845
  %v1974 = vpack.c.b16 %v1846, %v1846
  %v1975 = vpack.c.b16 %v1847, %v1847
  %v1976 = vpack.c.b16 %v1848, %v1848
  %v1977 = vpack.c.b16 %v1849, %v1849
  %v1978 = vpack.c.b16 %v1850, %v1850
  %v1979 = vpack.c.b16 %v1851, %v1851
  %v1980 = vpack.c.b16 %v1852, %v1852
  %v1981 = vpack.c.b16 %v1853, %v1853
  %v1982 = vpack.c.b16 %v1854, %v1854
  %v1983 = vpack.c.b16 %v1855, %v1855
  %v1984 = vpack.c.b16 %v1856, %v1856
  %v1985 = vpack.c.b16 %v1857, %v1857
  %v1986 = vpack.c.b16 %v1858, %v1858
  %v1987 = vpack.c.b16 %v1859, %v1859
  %v1988 = vpack.c.b16 %v1860, %v1860
  %v1989 = vpack.c.b16 %v1861, %v1861
  %v1990 = vpack.c.b16 %v1862, %v1862
  %v1991 = vpack.c.b16 %v1863, %v1863
  %v1992 = vpack.c.b16 %v1864, %v1864
  %v1993 = vpack.c.b16 %v1865, %v1865
  %v1994 = vpack.c.b16 %v1866, %v1866
  %v1995 = vpack.c.b16 %v1867, %v1867
  %v1996 = vpack.c.b16 %v1868, %v1868
  %v1997 = vpack.c.b16 %v1869, %v1869
  %v1998 = vpack.c.b16 %v1870, %v1870
  %v1999 = vpack.c.b16 %v1871, %v1871
  %v2000 = vpack.c.b16 %v1872, %v1872
  %v2001 = vpack.c.b16 %v1873, %v1873
  %v2002 = vpack.c.b16 %v1874, %v1874
  %v2003 = vpack.c.b16 %v1875, %v1875
  %v2004 = vpack.c.b16 %v1876, %v1876
  %v2005 = vpack.c.b16 %v1877, %v1877
  %v2006 = vpack.c.b16 %v1878, %v1878
  %v2007 = vpack.c.b16 %v1879, %v1879
  %v2008 = vpack.c.b16 %v1880, %v1880
  %v2009 = vpack.c.b16 %v1881, %v1881
  %v2010 = vpack.c.b16 %v1882, %v1882
  %v2011 = vpack.c.b16 %v1883, %v1883
  %v2012 = vpack.c.b16 %v1884, %v1884
  %v2013 = vpack.c.b16 %v1885, %v1885
  %v2014 = vpack.c.b16 %v1886, %v1886
  %v2015 = vpack.c.b16 %v1887, %v1887
  %v2016 = vpack.c.b16 %v1888, %v1888
  %v2017 = vpack.c.b16 %v1889, %v1889
  %v2018 = vpack.c.b16 %v1890, %v1890
  %v2019 = vpack.c.b16 %v1891, %v1891
  %v2020 = vpack.c.b16 %v1892, %v1892
  %v2021 = vpack.c.b16 %v1893, %v1893
  %v2022 = vpack.c.b16 %v1894, %v1894
  %v2023 = vpack.c.b16 %v1895, %v1895
  %v2024 = vpack.c.b16 %v1896, %v1896
  %v2025 = vpack.c.b16 %v1897, %v1897
  %v2026 = vpack.c.b16 %v1898, %v1898
  %v2027 = vpack.c.b16 %v1899, %v1899
  %v2028 = vpack.c.b16 %v1900, %v1900
  %v2029 = vpack.c.b16 %v1901, %v1901
  %v2030 = vpack.c.b16 %v1902, %v1902
  %v2031 = vpack.c.b16 %v1903, %v1903
  %v2032 = vpack.c.b16 %v1904, %v1904
  %v2033 = vpack.c.b16 %v1905, %v1905
  %v2034 = vpack.c.b16 %v1906, %v1906
  %v2035 = vpack.c.b16 %v1907, %v1907
  %v2036 = vpack.c.b16 %v1908, %v1908
  %v2037 = vpack.c.b16 %v1909, %v1909
  %v2038 = vpack.c.b16 %v1910, %v1910
  %v2039 = vpack.c.b16 %v1911, %v1911
  %v2040 = vpack.c.b16 %v1912, %v1912
  %v2041 = vpack.c.b16 %v1913, %v1913
  %v2042 = vpack.c.b16 %v1914, %v1914
  %v2043 = vpack.c.b16 %v1915, %v1915
  %v2044 = vpack.c.b16 %v1916, %v1916
  %v2045 = vpack.c.b16 %v1917, %v1917
  %v2046 = vpack.c.b16 %v1918, %v1918
  %v2047 = vpack.c.b16 %v1919, %v1919
  %v2048 = vpack.c.b16 %v1920, %v1920
  %v2049 = vpack.c.b16 %v1921, %v1921
  %v2050 = vpack.c.b16 %v1922, %v1922
  %v2051 = vpack.c.b16 %v1923, %v1923
  %v2052 = vpack.c.b16 %v1924, %v1924
  %v2053 = vpack.c.b16 %v1925, %v1925
  %v2054 = vpack.c.b16 %v1926, %v1926
  %v2055 = vpack.c.b16 %v1927, %v1927
  %v2056 = vunpack.c.l.b16 %v1928
  %v2057 = vunpack.c.l.b16 %v1929
  %v2058 = vunpack.c.l.b16 %v1930
  %v2059 = vunpack.c.l.b16 %v1931
  %v2060 = vunpack.c.l.b16 %v1932
  %v2061 = vunpack.c.l.b16 %v1933
  %v2062 = vunpack.c.l.b16 %v1934
  %v2063 = vunpack.c.l.b16 %v1935
  %v2064 = vunpack.c.l.b16 %v1936
  %v2065 = vunpack.c.l.b16 %v1937
  %v2066 = vunpack.c.l.b16 %v1938
  %v2067 = vunpack.c.l.b16 %v1939
  %v2068 = vunpack.c.l.b16 %v1940
  %v2069 = vunpack.c.l.b16 %v1941
  %v2070 = vunpack.c.l.b16 %v1942
  %v2071 = vunpack.c.l.b16 %v1943
  %v2072 = vunpack.c.l.b16 %v1944
  %v2073 = vunpack.c.l.b16 %v1945
  %v2074 = vunpack.c.l.b16 %v1946
  %v2075 = vunpack.c.l.b16 %v1947
  %v2076 = vunpack.c.l.b16 %v1948
  %v2077 = vunpack.c.l.b16 %v1949
  %v2078 = vunpack.c.l.b16 %v1950
  %v2079 = vunpack.c.l.b16 %v1951
  %v2080 = vunpack.c.l.b16 %v1952
  %v2081 = vunpack.c.l.b16 %v1953
  %v2082 = vunpack.c.l.b16 %v1954
  %v2083 = vunpack.c.l.b16 %v1955
  %v2084 = vunpack.c.l.b16 %v1956
  %v2085 = vunpack.c.l.b16 %v1957
  %v2086 = vunpack.c.l.b16 %v1958
  %v2087 = vunpack.c.l.b16 %v1959
  %v2088 = vunpack.c.l.b16 %v1960
  %v2089 = vunpack.c.l.b16 %v1961
  %v2090 = vunpack.c.l.b16 %v1962
  %v2091 = vunpack.c.l.b16 %v1963
  %v2092 = vunpack.c.l.b16 %v1964
  %v2093 = vunpack.c.l.b16 %v1965
  %v2094 = vunpack.c.l.b16 %v1966
  %v2095 = vunpack.c.l.b16 %v1967
  %v2096 = vunpack.c.l.b16 %v1968
  %v2097 = vunpack.c.l.b16 %v1969
  %v2098 = vunpack.c.l.b16 %v1970
  %v2099 = vunpack.c.l.b16 %v1971
  %v2100 = vunpack.c.l.b16 %v1972
  %v2101 = vunpack.c.l.b16 %v1973
  %v2102 = vunpack.c.l.b16 %v1974
  %v2103 = vunpack.c.l.b16 %v1975
  %v2104 = vunpack.c.l.b16 %v1976
  %v2105 = vunpack.c.l.b16 %v1977
  %v2106 = vunpack.c.l.b16 %v1978
  %v2107 = vunpack.c.l.b16 %v1979
  %v2108 = vunpack.c.l.b16 %v1980
  %v2109 = vunpack.c.l.b16 %v1981
  %v2110 = vunpack.c.l.b16 %v1982
  %v2111 = vunpack.c.l.b16 %v1983
  %v2112 = vunpack.c.l.b16 %v1984
  %v2113 = vunpack.c.l.b16 %v1985
  %v2114 = vunpack.c.l.b16 %v1986
  %v2115 = vunpack.c.l.b16 %v1987
  %v2116 = vunpack.c.l.b16 %v1988
  %v2117 = vunpack.c.l.b16 %v1989
  %v2118 = vunpack.c.l.b16 %v1990
  %v2119 = vunpack.c.l.b16 %v1991
  %v2120 = vunpack.c.l.b16 %v1992
  %v2121 = vunpack.c.l.b16 %v1993
  %v2122 = vunpack.c.l.b16 %v1994
  %v2123 = vunpack.c.l.b16 %v1995
  %v2124 = vunpack.c.l.b16 %v1996
  %v2125 = vunpack.c.l.b16 %v1997
  %v2126 = vunpack.c.l.b16 %v1998
  %v2127 = vunpack.c.l.b16 %v1999
  %v2128 = vunpack.c.l.b16 %v2000
  %v2129 = vunpack.c.l.b16 %v2001
  %v2130 = vunpack.c.l.b16 %v2002
  %v2131 = vunpack.c.l.b16 %v2003
  %v2132 = vunpack.c.l.b16 %v2004
  %v2133 = vunpack.c.l.b16 %v2005
  %v2134 = vunpack.c.l.b16 %v2006
  %v2135 = vunpack.c.l.b16 %v2007
  %v2136 = vunpack.c.l.b16 %v2008
  %v2137 = vunpack.c.l.b16 %v2009
  %v2138 = vunpack.c.l.b16 %v2010
  %v2139 = vunpack.c.l.b16 %v2011
  %v2140 = vunpack.c.l.b16 %v2012
  %v2141 = vunpack.c.l.b16 %v2013
  %v2142 = vunpack.c.l.b16 %v2014
  %v2143 = vunpack.c.l.b16 %v2015
  %v2144 = vunpack.c.l.b16 %v2016
  %v2145 = vunpack.c.l.b16 %v2017
  %v2146 = vunpack.c.l.b16 %v2018
  %v2147 = vunpack.c.l.b16 %v2019
  %v2148 = vunpack.c.l.b16 %v2020
  %v2149 = vunpack.c.l.b16 %v2021
  %v2150 = vunpack.c.l.b16 %v2022
  %v2151 = vunpack.c.l.b16 %v2023
  %v2152 = vunpack.c.l.b16 %v2024
  %v2153 = vunpack.c.l.b16 %v2025
  %v2154 = vunpack.c.l.b16 %v2026
  %v2155 = vunpack.c.l.b16 %v2027
  %v2156 = vunpack.c.l.b16 %v2028
  %v2157 = vunpack.c.l.b16 %v2029
  %v2158 = vunpack.c.l.b16 %v2030
  %v2159 = vunpack.c.l.b16 %v2031
  %v2160 = vunpack.c.l.b16 %v2032
  %v2161 = vunpack.c.l.b16 %v2033
  %v2162 = vunpack.c.l.b16 %v2034
  %v2163 = vunpack.c.l.b16 %v2035
  %v2164 = vunpack.c.l.b16 %v2036
  %v2165 = vunpack.c.l.b16 %v2037
  %v2166 = vunpack.c.l.b16 %v2038
  %v2167 = vunpack.c.l.b16 %v2039
  %v2168 = vunpack.c.l.b16 %v2040
  %v2169 = vunpack.c.l.b16 %v2041
  %v2170 = vunpack.c.l.b16 %v2042
  %v2171 = vunpack.c.l.b16 %v2043
  %v2172 = vunpack.c.l.b16 %v2044
  %v2173 = vunpack.c.l.b16 %v2045
  %v2174 = vunpack.c.l.b16 %v2046
  %v2175 = vunpack.c.l.b16 %v2047
  %v2176 = vunpack.c.l.b16 %v2048
  %v2177 = vunpack.c.l.b16 %v2049
  %v2178 = vunpack.c.l.b16 %v2050
  %v2179 = vunpack.c.l.b16 %v2051
  %v2180 = vunpack.c.l.b16 %v2052
  %v2181 = vunpack.c.l.b16 %v2053
  %v2182 = vunpack.c.l.b16 %v2054
  %v2183 = vunpack.c.l.b16 %v2055
  %v2184 = vrot.slane %v2057, 7
  %vm2185 = vcmask 1041409
  %v2186 = vsel %vm2185, %v2184, %v2056
  %v2187 = vrot.slane %v2058, 6
  %vm2188 = vcmask 1042434
  %v2189 = vsel %vm2188, %v2187, %v2186
  %v2190 = vrot.slane %v2059, 5
  %vm2191 = vcmask 1043459
  %v2192 = vsel %vm2191, %v2190, %v2189
  %v2193 = vrot.slane %v2060, 4
  %vm2194 = vcmask 1044484
  %v2195 = vsel %vm2194, %v2193, %v2192
  %v2196 = vrot.slane %v2061, 3
  %vm2197 = vcmask 1045509
  %v2198 = vsel %vm2197, %v2196, %v2195
  %v2199 = vrot.slane %v2062, 2
  %vm2200 = vcmask 1046534
  %v2201 = vsel %vm2200, %v2199, %v2198
  %v2202 = vrot.slane %v2063, 1
  %vm2203 = vcmask 1047559
  %v2204 = vsel %vm2203, %v2202, %v2201
  %v2205 = vrot.slane %v2065, 7
  %v2206 = vsel %vm2185, %v2205, %v2064
  %v2207 = vrot.slane %v2066, 6
  %v2208 = vsel %vm2188, %v2207, %v2206
  %v2209 = vrot.slane %v2067, 5
  %v2210 = vsel %vm2191, %v2209, %v2208
  %v2211 = vrot.slane %v2068, 4
  %v2212 = vsel %vm2194, %v2211, %v2210
  %v2213 = vrot.slane %v2069, 3
  %v2214 = vsel %vm2197, %v2213, %v2212
  %v2215 = vrot.slane %v2070, 2
  %v2216 = vsel %vm2200, %v2215, %v2214
  %v2217 = vrot.slane %v2071, 1
  %v2218 = vsel %vm2203, %v2217, %v2216
  %v2219 = vrot.slane %v2073, 7
  %v2220 = vsel %vm2185, %v2219, %v2072
  %v2221 = vrot.slane %v2074, 6
  %v2222 = vsel %vm2188, %v2221, %v2220
  %v2223 = vrot.slane %v2075, 5
  %v2224 = vsel %vm2191, %v2223, %v2222
  %v2225 = vrot.slane %v2076, 4
  %v2226 = vsel %vm2194, %v2225, %v2224
  %v2227 = vrot.slane %v2077, 3
  %v2228 = vsel %vm2197, %v2227, %v2226
  %v2229 = vrot.slane %v2078, 2
  %v2230 = vsel %vm2200, %v2229, %v2228
  %v2231 = vrot.slane %v2079, 1
  %v2232 = vsel %vm2203, %v2231, %v2230
  %v2233 = vrot.slane %v2081, 7
  %v2234 = vsel %vm2185, %v2233, %v2080
  %v2235 = vrot.slane %v2082, 6
  %v2236 = vsel %vm2188, %v2235, %v2234
  %v2237 = vrot.slane %v2083, 5
  %v2238 = vsel %vm2191, %v2237, %v2236
  %v2239 = vrot.slane %v2084, 4
  %v2240 = vsel %vm2194, %v2239, %v2238
  %v2241 = vrot.slane %v2085, 3
  %v2242 = vsel %vm2197, %v2241, %v2240
  %v2243 = vrot.slane %v2086, 2
  %v2244 = vsel %vm2200, %v2243, %v2242
  %v2245 = vrot.slane %v2087, 1
  %v2246 = vsel %vm2203, %v2245, %v2244
  %v2247 = vrot.slane %v2089, 7
  %v2248 = vsel %vm2185, %v2247, %v2088
  %v2249 = vrot.slane %v2090, 6
  %v2250 = vsel %vm2188, %v2249, %v2248
  %v2251 = vrot.slane %v2091, 5
  %v2252 = vsel %vm2191, %v2251, %v2250
  %v2253 = vrot.slane %v2092, 4
  %v2254 = vsel %vm2194, %v2253, %v2252
  %v2255 = vrot.slane %v2093, 3
  %v2256 = vsel %vm2197, %v2255, %v2254
  %v2257 = vrot.slane %v2094, 2
  %v2258 = vsel %vm2200, %v2257, %v2256
  %v2259 = vrot.slane %v2095, 1
  %v2260 = vsel %vm2203, %v2259, %v2258
  %v2261 = vrot.slane %v2097, 7
  %v2262 = vsel %vm2185, %v2261, %v2096
  %v2263 = vrot.slane %v2098, 6
  %v2264 = vsel %vm2188, %v2263, %v2262
  %v2265 = vrot.slane %v2099, 5
  %v2266 = vsel %vm2191, %v2265, %v2264
  %v2267 = vrot.slane %v2100, 4
  %v2268 = vsel %vm2194, %v2267, %v2266
  %v2269 = vrot.slane %v2101, 3
  %v2270 = vsel %vm2197, %v2269, %v2268
  %v2271 = vrot.slane %v2102, 2
  %v2272 = vsel %vm2200, %v2271, %v2270
  %v2273 = vrot.slane %v2103, 1
  %v2274 = vsel %vm2203, %v2273, %v2272
  %v2275 = vrot.slane %v2105, 7
  %v2276 = vsel %vm2185, %v2275, %v2104
  %v2277 = vrot.slane %v2106, 6
  %v2278 = vsel %vm2188, %v2277, %v2276
  %v2279 = vrot.slane %v2107, 5
  %v2280 = vsel %vm2191, %v2279, %v2278
  %v2281 = vrot.slane %v2108, 4
  %v2282 = vsel %vm2194, %v2281, %v2280
  %v2283 = vrot.slane %v2109, 3
  %v2284 = vsel %vm2197, %v2283, %v2282
  %v2285 = vrot.slane %v2110, 2
  %v2286 = vsel %vm2200, %v2285, %v2284
  %v2287 = vrot.slane %v2111, 1
  %v2288 = vsel %vm2203, %v2287, %v2286
  %v2289 = vrot.slane %v2113, 7
  %v2290 = vsel %vm2185, %v2289, %v2112
  %v2291 = vrot.slane %v2114, 6
  %v2292 = vsel %vm2188, %v2291, %v2290
  %v2293 = vrot.slane %v2115, 5
  %v2294 = vsel %vm2191, %v2293, %v2292
  %v2295 = vrot.slane %v2116, 4
  %v2296 = vsel %vm2194, %v2295, %v2294
  %v2297 = vrot.slane %v2117, 3
  %v2298 = vsel %vm2197, %v2297, %v2296
  %v2299 = vrot.slane %v2118, 2
  %v2300 = vsel %vm2200, %v2299, %v2298
  %v2301 = vrot.slane %v2119, 1
  %v2302 = vsel %vm2203, %v2301, %v2300
  %v2303 = vrot.slane %v2121, 7
  %v2304 = vsel %vm2185, %v2303, %v2120
  %v2305 = vrot.slane %v2122, 6
  %v2306 = vsel %vm2188, %v2305, %v2304
  %v2307 = vrot.slane %v2123, 5
  %v2308 = vsel %vm2191, %v2307, %v2306
  %v2309 = vrot.slane %v2124, 4
  %v2310 = vsel %vm2194, %v2309, %v2308
  %v2311 = vrot.slane %v2125, 3
  %v2312 = vsel %vm2197, %v2311, %v2310
  %v2313 = vrot.slane %v2126, 2
  %v2314 = vsel %vm2200, %v2313, %v2312
  %v2315 = vrot.slane %v2127, 1
  %v2316 = vsel %vm2203, %v2315, %v2314
  %v2317 = vrot.slane %v2129, 7
  %v2318 = vsel %vm2185, %v2317, %v2128
  %v2319 = vrot.slane %v2130, 6
  %v2320 = vsel %vm2188, %v2319, %v2318
  %v2321 = vrot.slane %v2131, 5
  %v2322 = vsel %vm2191, %v2321, %v2320
  %v2323 = vrot.slane %v2132, 4
  %v2324 = vsel %vm2194, %v2323, %v2322
  %v2325 = vrot.slane %v2133, 3
  %v2326 = vsel %vm2197, %v2325, %v2324
  %v2327 = vrot.slane %v2134, 2
  %v2328 = vsel %vm2200, %v2327, %v2326
  %v2329 = vrot.slane %v2135, 1
  %v2330 = vsel %vm2203, %v2329, %v2328
  %v2331 = vrot.slane %v2137, 7
  %v2332 = vsel %vm2185, %v2331, %v2136
  %v2333 = vrot.slane %v2138, 6
  %v2334 = vsel %vm2188, %v2333, %v2332
  %v2335 = vrot.slane %v2139, 5
  %v2336 = vsel %vm2191, %v2335, %v2334
  %v2337 = vrot.slane %v2140, 4
  %v2338 = vsel %vm2194, %v2337, %v2336
  %v2339 = vrot.slane %v2141, 3
  %v2340 = vsel %vm2197, %v2339, %v2338
  %v2341 = vrot.slane %v2142, 2
  %v2342 = vsel %vm2200, %v2341, %v2340
  %v2343 = vrot.slane %v2143, 1
  %v2344 = vsel %vm2203, %v2343, %v2342
  %v2345 = vrot.slane %v2145, 7
  %v2346 = vsel %vm2185, %v2345, %v2144
  %v2347 = vrot.slane %v2146, 6
  %v2348 = vsel %vm2188, %v2347, %v2346
  %v2349 = vrot.slane %v2147, 5
  %v2350 = vsel %vm2191, %v2349, %v2348
  %v2351 = vrot.slane %v2148, 4
  %v2352 = vsel %vm2194, %v2351, %v2350
  %v2353 = vrot.slane %v2149, 3
  %v2354 = vsel %vm2197, %v2353, %v2352
  %v2355 = vrot.slane %v2150, 2
  %v2356 = vsel %vm2200, %v2355, %v2354
  %v2357 = vrot.slane %v2151, 1
  %v2358 = vsel %vm2203, %v2357, %v2356
  %v2359 = vrot.slane %v2153, 7
  %v2360 = vsel %vm2185, %v2359, %v2152
  %v2361 = vrot.slane %v2154, 6
  %v2362 = vsel %vm2188, %v2361, %v2360
  %v2363 = vrot.slane %v2155, 5
  %v2364 = vsel %vm2191, %v2363, %v2362
  %v2365 = vrot.slane %v2156, 4
  %v2366 = vsel %vm2194, %v2365, %v2364
  %v2367 = vrot.slane %v2157, 3
  %v2368 = vsel %vm2197, %v2367, %v2366
  %v2369 = vrot.slane %v2158, 2
  %v2370 = vsel %vm2200, %v2369, %v2368
  %v2371 = vrot.slane %v2159, 1
  %v2372 = vsel %vm2203, %v2371, %v2370
  %v2373 = vrot.slane %v2161, 7
  %v2374 = vsel %vm2185, %v2373, %v2160
  %v2375 = vrot.slane %v2162, 6
  %v2376 = vsel %vm2188, %v2375, %v2374
  %v2377 = vrot.slane %v2163, 5
  %v2378 = vsel %vm2191, %v2377, %v2376
  %v2379 = vrot.slane %v2164, 4
  %v2380 = vsel %vm2194, %v2379, %v2378
  %v2381 = vrot.slane %v2165, 3
  %v2382 = vsel %vm2197, %v2381, %v2380
  %v2383 = vrot.slane %v2166, 2
  %v2384 = vsel %vm2200, %v2383, %v2382
  %v2385 = vrot.slane %v2167, 1
  %v2386 = vsel %vm2203, %v2385, %v2384
  %v2387 = vrot.slane %v2169, 7
  %v2388 = vsel %vm2185, %v2387, %v2168
  %v2389 = vrot.slane %v2170, 6
  %v2390 = vsel %vm2188, %v2389, %v2388
  %v2391 = vrot.slane %v2171, 5
  %v2392 = vsel %vm2191, %v2391, %v2390
  %v2393 = vrot.slane %v2172, 4
  %v2394 = vsel %vm2194, %v2393, %v2392
  %v2395 = vrot.slane %v2173, 3
  %v2396 = vsel %vm2197, %v2395, %v2394
  %v2397 = vrot.slane %v2174, 2
  %v2398 = vsel %vm2200, %v2397, %v2396
  %v2399 = vrot.slane %v2175, 1
  %v2400 = vsel %vm2203, %v2399, %v2398
  %v2401 = vrot.slane %v2177, 7
  %v2402 = vsel %vm2185, %v2401, %v2176
  %v2403 = vrot.slane %v2178, 6
  %v2404 = vsel %vm2188, %v2403, %v2402
  %v2405 = vrot.slane %v2179, 5
  %v2406 = vsel %vm2191, %v2405, %v2404
  %v2407 = vrot.slane %v2180, 4
  %v2408 = vsel %vm2194, %v2407, %v2406
  %v2409 = vrot.slane %v2181, 3
  %v2410 = vsel %vm2197, %v2409, %v2408
  %v2411 = vrot.slane %v2182, 2
  %v2412 = vsel %vm2200, %v2411, %v2410
  %v2413 = vrot.slane %v2183, 1
  %v2414 = vsel %vm2203, %v2413, %v2412
  %v2415 = vpack.c.b16 %v2204, %v2204
  %v2416 = vpack.c.b16 %v2218, %v2218
  %v2417 = vpack.c.b16 %v2232, %v2232
  %v2418 = vpack.c.b16 %v2246, %v2246
  %v2419 = vpack.c.b16 %v2260, %v2260
  %v2420 = vpack.c.b16 %v2274, %v2274
  %v2421 = vpack.c.b16 %v2288, %v2288
  %v2422 = vpack.c.b16 %v2302, %v2302
  %v2423 = vpack.c.b16 %v2316, %v2316
  %v2424 = vpack.c.b16 %v2330, %v2330
  %v2425 = vpack.c.b16 %v2344, %v2344
  %v2426 = vpack.c.b16 %v2358, %v2358
  %v2427 = vpack.c.b16 %v2372, %v2372
  %v2428 = vpack.c.b16 %v2386, %v2386
  %v2429 = vpack.c.b16 %v2400, %v2400
  %v2430 = vpack.c.b16 %v2414, %v2414
  %vm2447 = vcmask 27648
  %2448 = vst.msk [vmem:[%s1] sm:$0xf] %vm2447, %v2415
  %2449 = vst.msk [vmem:[%s1 + $0x4] sm:$0xf] %vm2447, %v2416
  %2450 = vst.msk [vmem:[%s1 + $0x8] sm:$0xf] %vm2447, %v2417
  %2451 = vst.msk [vmem:[%s1 + $0xc] sm:$0xf] %vm2447, %v2418
  %2452 = vst.msk [vmem:[%s1 + $0x10] sm:$0xf] %vm2447, %v2419
  %2453 = vst.msk [vmem:[%s1 + $0x14] sm:$0xf] %vm2447, %v2420
  %2454 = vst.msk [vmem:[%s1 + $0x18] sm:$0xf] %vm2447, %v2421
  %2455 = vst.msk [vmem:[%s1 + $0x1c] sm:$0xf] %vm2447, %v2422
  %2456 = vst.msk [vmem:[%s1 + $0x20] sm:$0xf] %vm2447, %v2423
  %2457 = vst.msk [vmem:[%s1 + $0x24] sm:$0xf] %vm2447, %v2424
  %2458 = vst.msk [vmem:[%s1 + $0x28] sm:$0xf] %vm2447, %v2425
  %2459 = vst.msk [vmem:[%s1 + $0x2c] sm:$0xf] %vm2447, %v2426
  %2460 = vst.msk [vmem:[%s1 + $0x30] sm:$0xf] %vm2447, %v2427
  %2461 = vst.msk [vmem:[%s1 + $0x34] sm:$0xf] %vm2447, %v2428
  %2462 = vst.msk [vmem:[%s1 + $0x38] sm:$0xf] %vm2447, %v2429
  %2463 = vst.msk [vmem:[%s1 + $0x3c] sm:$0xf] %vm2447, %v2430
  // Predicated region
  $region6: #{_lambda_.5} parent=0 // pred_check
    _
  $region7: #{_lambda_.5} parent=0 // pred_check_branch
    %2465 = sbr.rel (0) target = $region9
  $region8: #{_lambda_.5} parent=0 // pred_region
    _
  $region9: #{_lambda_.5} parent=0 // pred_fallthru
    _
  // Predicated region
  $region10: #{_lambda_.5} parent=0 // pred_check
    _
  $region11: #{_lambda_.5} parent=0 // pred_check_branch
    %2467 = sbr.rel (0) target = $region13
  $region12: #{_lambda_.5} parent=0 // pred_region
    _
  $region13: #{_lambda_.5} parent=0 // pred_fallthru
    _

</llo_original>
